<compile_context>
chip_gen: v6e
topology: v6e:2x2x1
jax: 0.10.0
libtpu: 0.0.40
codegen_flags: <defaults>
</compile_context>

<pallas_src>
import jax
import jax.numpy as jnp
from jax.experimental import pallas as pl
from jax.experimental.pallas import tpu as pltpu


def _make_resblock_kernel(W: int, identity_skip: bool):
    """Build the fused residual-block kernel for a static image width W.

    identity_skip is a *static* flag: when True the skip path is a plain add
    (no skip matmul and no wskip/bskip operands at all).
    """

    def kernel(x_ref,                  # (1, HW, Cin)        bf16
               bn1_s_ref, bn1_b_ref,   # (1, Cin)            f32 (folded BN1)
               w1_ref, b1_ref,         # (Cin, Cmid) bf16, (1, Cmid) f32  [BN2 folded in]
               w3_ref, b3_ref,         # (9, Cmid, Cmid) bf16, (1, Cmid) f32 [BN3 folded in]
               w5_ref, b5_ref,         # (Cmid, Cout) bf16, (1, Cout) f32
               *rest):
        if identity_skip:
            out_ref, ypad_ref = rest
        else:
            wskip_ref, bskip_ref, out_ref, ypad_ref = rest

        HW = x_ref.shape[1]
        Cmid = w1_ref.shape[1]
        PAD = (ypad_ref.shape[0] - HW) // 2      # zero rows above/below the image

        x_bf = x_ref[0]                          # (HW, Cin) bf16
        x_f32 = x_bf.astype(jnp.float32)

        # --- BN1 (eval-mode affine) + ReLU in f32 ---
        y = jnp.maximum(x_f32 * bn1_s_ref[...] + bn1_b_ref[...], 0.0)

        # --- 1x1 conv Cin->Cmid (BN2 pre-folded into w1/b1) + ReLU ---
        y = jnp.dot(y.astype(jnp.bfloat16), w1_ref[...],
                    preferred_element_type=jnp.float32) + b1_ref[...]
        y = jnp.maximum(y, 0.0)

        # --- stage the mid activations into the row-padded flat buffer ---
        # Only the small borders are (re-)zeroed; the interior is fully
        # overwritten every step, so a "parallel" batch axis stays correct.
        ypad_ref[pl.ds(0, PAD), :] = jnp.zeros((PAD, Cmid), jnp.bfloat16)
        ypad_ref[pl.ds(PAD + HW, PAD), :] = jnp.zeros((PAD, Cmid), jnp.bfloat16)
        ypad_ref[pl.ds(PAD, HW), :] = y.astype(jnp.bfloat16)

        # --- 3x3 conv (stride 1, pad 1) as 9 sublane-shifted (HW,Cmid)x(Cmid,Cmid)
        # matmuls.  Vertical (dy) out-of-bounds taps land in the zero pad;
        # horizontal (dx) wrap-around is killed by two per-dx column masks. ---
        col = jax.lax.broadcasted_iota(jnp.int32, (HW, 1), 0) % W
        acc = jnp.zeros((HW, Cmid), jnp.float32) + b3_ref[...]
        for dx in (-1, 0, 1):
            part = jnp.zeros((HW, Cmid), jnp.float32)
            for dy in (-1, 0, 1):
                t = (dy + 1) * 3 + (dx + 1)
                tap = ypad_ref[pl.ds(PAD + dy * W + dx, HW), :]   # static offsets
                part = part + jnp.dot(tap, w3_ref[t],
                                      preferred_element_type=jnp.float32)
            if dx == -1:
                part = jnp.where(col > 0, part, 0.0)
            elif dx == 1:
                part = jnp.where(col < W - 1, part, 0.0)
            acc = acc + part

        # --- (BN3 pre-folded)  ReLU + final 1x1 conv Cmid->Cout ---
        y = jnp.maximum(acc, 0.0)
        conv = jnp.dot(y.astype(jnp.bfloat16), w5_ref[...],
                       preferred_element_type=jnp.float32) + b5_ref[...]

        # --- skip path ---
        if identity_skip:
            out = conv + x_f32                                   # no matmul at all
        else:
            out = conv + jnp.dot(x_bf, wskip_ref[...],
                                 preferred_element_type=jnp.float32) + bskip_ref[...]

        out_ref[0] = out.astype(out_ref.dtype)

    return kernel


def residual_block(x_nchw, params, in_channels, out_channels, eps=1e-5):
    N, C, H, W = x_nchw.shape
    assert C == in_channels
    Cmid = out_channels // 2
    HW = H * W
    identity_skip = (in_channels == out_channels)

    # NCHW -> (N, H*W, C): channels on TPU lanes, spatial flattened on sublanes.
    # TODO(synk): keep the surrounding model NHWC/bf16 end-to-end so these
    # boundary transposes (a full HBM round-trip of the activation) disappear.
    x = jnp.transpose(x_nchw, (0, 2, 3, 1)).reshape(N, HW, C).astype(jnp.bfloat16)

    # TODO(synk): training-mode BatchNorm (batch statistics + running-stat
    # update) is not implemented; eval-mode affine BN is folded below.
    def fold(bn):
        scale = bn["gamma"] / jnp.sqrt(bn["var"] + eps)
        shift = bn["beta"] - bn["mean"] * scale
        return scale.astype(jnp.float32), shift.astype(jnp.float32)

    s1, t1 = fold(params["bn1"])
    s2, t2 = fold(params["bn2"])
    s3, t3 = fold(params["bn3"])

    bn1_s = s1.reshape(1, -1)
    bn1_b = t1.reshape(1, -1)

    # PyTorch OIHW conv weights -> matmul weights; BN2/BN3 folded into the
    # output channels of the conv that precedes them.
    w1 = (params["w1"][:, :, 0, 0].T * s2[None, :]).astype(jnp.bfloat16)
    b1 = (params["b1"] * s2 + t2).reshape(1, -1).astype(jnp.float32)
    w3 = (jnp.transpose(params["w3"], (2, 3, 1, 0)).reshape(9, Cmid, Cmid)
          * s3[None, None, :]).astype(jnp.bfloat16)
    b3 = (params["b3"] * s3 + t3).reshape(1, -1).astype(jnp.float32)
    w5 = params["w5"][:, :, 0, 0].T.astype(jnp.bfloat16)
    b5 = params["b5"].reshape(1, -1).astype(jnp.float32)

    ins = [x, bn1_s, bn1_b, w1, b1, w3, b3, w5, b5]
    if not identity_skip:
        ins.append(params["wskip"][:, :, 0, 0].T.astype(jnp.bfloat16))
        ins.append(params["bskip"].reshape(1, -1).astype(jnp.float32))

    def full(a):
        nd = a.ndim
        return pl.BlockSpec(a.shape, lambda n, _nd=nd: (0,) * _nd)

    # Flat-row zero pad around the image: >= W+1 rows each side, rounded up to
    # the bf16 sublane tiling (16) so the interior store stays aligned.
    PAD = -(-(W + 1) // 16) * 16

    in_specs = [pl.BlockSpec((1, HW, in_channels), lambda n: (n, 0, 0))]
    in_specs += [full(a) for a in ins[1:]]

    # TODO(synk): for large H/W add a second (row-strip) grid axis with a
    # 1-row halo and per-generation tile sizing / vmem_limit_bytes; at these
    # shapes a whole image fits comfortably in VMEM on v5e/v6e/v7x.
    # TODO(synk): if deployed channel counts really are 4-8, flip to a
    # lane-dense (C, HW) layout; channels-on-lanes only pays off for C >= 128.
    grid_spec = pltpu.PrefetchScalarGridSpec(
        num_scalar_prefetch=0,
        grid=(N,),                                  # one image per grid step
        in_specs=in_specs,
        out_specs=pl.BlockSpec((1, HW, out_channels), lambda n: (n, 0, 0)),
        scratch_shapes=[pltpu.VMEM((HW + 2 * PAD, Cmid), jnp.bfloat16)],
    )

    out = pl.pallas_call(
        _make_resblock_kernel(W, identity_skip),
        out_shape=jax.ShapeDtypeStruct((N, HW, out_channels), jnp.float32),
        grid_spec=grid_spec,
        compiler_params=pltpu.CompilerParams(
            dimension_semantics=("parallel",)),     # images independent -> both v7x TCs
    )(*ins)

    return jnp.transpose(out.reshape(N, H, W, out_channels), (0, 3, 1, 2))


def init_params(key, Cin, Cout):
    Cmid = Cout // 2
    ks = iter(jax.random.split(key, 24))

    def conv(co, ci, kh, kw):
        bound = 1.0 / float(ci * kh * kw) ** 0.5
        w = jax.random.uniform(next(ks), (co, ci, kh, kw), jnp.float32, -bound, bound)
        b = jax.random.uniform(next(ks), (co,), jnp.float32, -bound, bound)
        return w, b

    def bn(c):
        return {
            "gamma": jax.random.uniform(next(ks), (c,), jnp.float32, 0.5, 1.5),
            "beta": 0.1 * jax.random.normal(next(ks), (c,), jnp.float32),
            "mean": 0.1 * jax.random.normal(next(ks), (c,), jnp.float32),
            "var": jax.random.uniform(next(ks), (c,), jnp.float32, 0.5, 1.5),
        }

    w1, b1 = conv(Cmid, Cin, 1, 1)
    w3, b3 = conv(Cmid, Cmid, 3, 3)
    w5, b5 = conv(Cout, Cmid, 1, 1)
    wskip, bskip = conv(Cout, Cin, 1, 1)
    return {"bn1": bn(Cin), "bn2": bn(Cmid), "bn3": bn(Cmid),
            "w1": w1, "b1": b1, "w3": w3, "b3": b3, "w5": w5, "b5": b5,
            "wskip": wskip, "bskip": bskip}


def ref_forward(x, p, Cin, Cout, eps=1e-5):
    def bn(v, q):
        g, b, m, s = (q[k].reshape(1, -1, 1, 1) for k in ("gamma", "beta", "mean", "var"))
        return (v - m) / jnp.sqrt(s + eps) * g + b

    def conv(v, w, b, pad):
        y = jax.lax.conv_general_dilated(
            v, w, window_strides=(1, 1), padding=[(pad, pad), (pad, pad)],
            dimension_numbers=("NCHW", "OIHW", "NCHW"))
        return y + b.reshape(1, -1, 1, 1)

    y = jax.nn.relu(bn(x, p["bn1"]))
    y = conv(y, p["w1"], p["b1"], 0)
    y = jax.nn.relu(bn(y, p["bn2"]))
    y = conv(y, p["w3"], p["b3"], 1)
    y = jax.nn.relu(bn(y, p["bn3"]))
    y = conv(y, p["w5"], p["b5"], 0)
    skip = x if Cin == Cout else conv(x, p["wskip"], p["bskip"], 0)
    return y + skip


if __name__ == "__main__":
    k1, k2, k3, k4 = jax.random.split(jax.random.PRNGKey(0), 4)

    # Case 1: Cin != Cout  -> conv-skip kernel variant.
    N, Cin, Cout, H, W = 2, 4, 8, 16, 16
    x = jax.random.normal(k1, (N, Cin, H, W), jnp.float32)
    params = init_params(k2, Cin, Cout)

    out = jax.block_until_ready(residual_block(x, params, Cin, Cout))
    assert out.shape == (N, Cout, H, W)
    ref = ref_forward(x, params, Cin, Cout)
    rel = float(jnp.linalg.norm(out - ref) / jnp.linalg.norm(ref))
    # bf16 matmul path -> compare in relative L2 (f32 reference).
    assert rel < 5e-2, f"conv-skip rel l2 err {rel}"

    # Case 2: Cin == Cout -> identity-skip kernel variant (no skip matmul).
    Cin2 = Cout2 = 8
    x2 = jax.random.normal(k3, (N, Cin2, H, W), jnp.float32)
    params2 = init_params(k4, Cin2, Cout2)

    out2 = jax.block_until_ready(residual_block(x2, params2, Cin2, Cout2))
    assert out2.shape == (N, Cout2, H, W)
    ref2 = ref_forward(x2, params2, Cin2, Cout2)
    rel2 = float(jnp.linalg.norm(out2 - ref2) / jnp.linalg.norm(ref2))
    assert rel2 < 5e-2, f"identity-skip rel l2 err {rel2}"

    print("KERNEL_OK")
</pallas_src>

<mosaic_0001>
module attributes {stable_mosaic.version = 11 : i64} {
  func.func @kernel(%arg0: i32, %arg1: memref<1x256x4xbf16, #tpu.memory_space<vmem>>, %arg2: memref<1x4xf32, #tpu.memory_space<vmem>>, %arg3: memref<1x4xf32, #tpu.memory_space<vmem>>, %arg4: memref<4x4xbf16, #tpu.memory_space<vmem>>, %arg5: memref<1x4xf32, #tpu.memory_space<vmem>>, %arg6: memref<9x4x4xbf16, #tpu.memory_space<vmem>>, %arg7: memref<1x4xf32, #tpu.memory_space<vmem>>, %arg8: memref<4x8xbf16, #tpu.memory_space<vmem>>, %arg9: memref<1x8xf32, #tpu.memory_space<vmem>>, %arg10: memref<4x8xbf16, #tpu.memory_space<vmem>>, %arg11: memref<1x8xf32, #tpu.memory_space<vmem>>, %arg12: memref<1x256x8xf32, #tpu.memory_space<vmem>>, %arg13: memref<320x4xbf16, #tpu.memory_space<vmem>>) attributes {dimension_semantics = [#tpu.dimension_semantics<parallel>], iteration_bounds = array<i64: 2>, scalar_prefetch = 0 : i64, scratch_operands = 1 : i64, tpu.core_type = #tpu.core_type<tc>, window_params = [{transform_indices = @transform_0, window_bounds = array<i64: 1, 256, 4>}, {pipeline_mode = #tpu.pipeline_mode<synchronous>, transform_indices = @transform_1, window_bounds = array<i64: 1, 4>}, {pipeline_mode = #tpu.pipeline_mode<synchronous>, transform_indices = @transform_2, window_bounds = array<i64: 1, 4>}, {pipeline_mode = #tpu.pipeline_mode<synchronous>, transform_indices = @transform_3, window_bounds = array<i64: 4, 4>}, {pipeline_mode = #tpu.pipeline_mode<synchronous>, transform_indices = @transform_4, window_bounds = array<i64: 1, 4>}, {pipeline_mode = #tpu.pipeline_mode<synchronous>, transform_indices = @transform_5, window_bounds = array<i64: 9, 4, 4>}, {pipeline_mode = #tpu.pipeline_mode<synchronous>, transform_indices = @transform_6, window_bounds = array<i64: 1, 4>}, {pipeline_mode = #tpu.pipeline_mode<synchronous>, transform_indices = @transform_7, window_bounds = array<i64: 4, 8>}, {pipeline_mode = #tpu.pipeline_mode<synchronous>, transform_indices = @transform_8, window_bounds = array<i64: 1, 8>}, {pipeline_mode = #tpu.pipeline_mode<synchronous>, transform_indices = @transform_9, window_bounds = array<i64: 4, 8>}, {pipeline_mode = #tpu.pipeline_mode<synchronous>, transform_indices = @transform_10, window_bounds = array<i64: 1, 8>}, {transform_indices = @transform_11, window_bounds = array<i64: 1, 256, 8>}]} {
    %c0 = arith.constant 0 : index
    %c0_0 = arith.constant 0 : index
    %c0_1 = arith.constant 0 : index
    %0 = vector.load %arg1[%c0, %c0_0, %c0_1] : memref<1x256x4xbf16, #tpu.memory_space<vmem>>, vector<1x256x4xbf16>
    %1 = vector.shape_cast %0 : vector<1x256x4xbf16> to vector<256x4xbf16>
    %2 = arith.extf %1 : vector<256x4xbf16> to vector<256x4xf32>
    %c0_2 = arith.constant 0 : index
    %c0_3 = arith.constant 0 : index
    %3 = vector.load %arg2[%c0_2, %c0_3] : memref<1x4xf32, #tpu.memory_space<vmem>>, vector<1x4xf32>
    %4 = vector.broadcast %3 : vector<1x4xf32> to vector<256x4xf32>
    %5 = arith.mulf %2, %4 : vector<256x4xf32>
    %c0_4 = arith.constant 0 : index
    %c0_5 = arith.constant 0 : index
    %6 = vector.load %arg3[%c0_4, %c0_5] : memref<1x4xf32, #tpu.memory_space<vmem>>, vector<1x4xf32>
    %7 = vector.broadcast %6 : vector<1x4xf32> to vector<256x4xf32>
    %8 = arith.addf %5, %7 : vector<256x4xf32>
    %cst = arith.constant 0.000000e+00 : f32
    %9 = vector.broadcast %cst : f32 to vector<256x4xf32>
    %10 = arith.maximumf %8, %9 : vector<256x4xf32>
    %11 = arith.truncf %10 : vector<256x4xf32> to vector<256x4xbf16>
    %c0_6 = arith.constant 0 : index
    %c0_7 = arith.constant 0 : index
    %12 = vector.load %arg4[%c0_6, %c0_7] : memref<4x4xbf16, #tpu.memory_space<vmem>>, vector<4x4xbf16>
    %cst_8 = arith.constant dense<0.000000e+00> : vector<256x4xf32>
    %13 = tpu.matmul %11, %12, %cst_8 {dimension_numbers = #tpu.dot_dimension_numbers<[1], [0], [0], [1], [0, 0, 1, 1], [], []>} : vector<256x4xbf16>, vector<4x4xbf16>, vector<256x4xf32> -> vector<256x4xf32>
    %c0_9 = arith.constant 0 : index
    %c0_10 = arith.constant 0 : index
    %14 = vector.load %arg5[%c0_9, %c0_10] : memref<1x4xf32, #tpu.memory_space<vmem>>, vector<1x4xf32>
    %15 = vector.broadcast %14 : vector<1x4xf32> to vector<256x4xf32>
    %16 = arith.addf %13, %15 : vector<256x4xf32>
    %cst_11 = arith.constant 0.000000e+00 : f32
    %17 = vector.broadcast %cst_11 : f32 to vector<256x4xf32>
    %18 = arith.maximumf %16, %17 : vector<256x4xf32>
    %cst_12 = arith.constant 0.000000e+00 : bf16
    %19 = vector.broadcast %cst_12 : bf16 to vector<32x4xbf16>
    %c0_13 = arith.constant 0 : index
    %c0_14 = arith.constant 0 : index
    %20 = vector.load %arg13[%c0_13, %c0_14] : memref<320x4xbf16, #tpu.memory_space<vmem>>, vector<32x4xbf16>
    tpu.vector_store %arg13[%c0_13, %c0_14], %19 {strides = array<i32>} : memref<320x4xbf16, #tpu.memory_space<vmem>>, vector<32x4xbf16>,
    %cst_15 = arith.constant 0.000000e+00 : bf16
    %21 = vector.broadcast %cst_15 : bf16 to vector<32x4xbf16>
    %c288 = arith.constant 288 : index
    %c0_16 = arith.constant 0 : index
    %22 = vector.load %arg13[%c288, %c0_16] : memref<320x4xbf16, #tpu.memory_space<vmem>>, vector<32x4xbf16>
    tpu.vector_store %arg13[%c288, %c0_16], %21 {strides = array<i32>} : memref<320x4xbf16, #tpu.memory_space<vmem>>, vector<32x4xbf16>,
    %23 = arith.truncf %18 : vector<256x4xf32> to vector<256x4xbf16>
    %c32 = arith.constant 32 : index
    %c0_17 = arith.constant 0 : index
    %24 = vector.load %arg13[%c32, %c0_17] : memref<320x4xbf16, #tpu.memory_space<vmem>>, vector<256x4xbf16>
    tpu.vector_store %arg13[%c32, %c0_17], %23 {strides = array<i32>} : memref<320x4xbf16, #tpu.memory_space<vmem>>, vector<256x4xbf16>,
    %25 = tpu.iota {dimensions = array<i32: 0>} : vector<256x1xi32>
    %c16_i32 = arith.constant 16 : i32
    %c0_i32 = arith.constant 0 : i32
    %26 = arith.cmpi eq, %c16_i32, %c0_i32 : i32
    %c1_i32 = arith.constant 1 : i32
    %27 = arith.select %26, %c1_i32, %c16_i32 : i32
    %28 = vector.broadcast %27 : i32 to vector<256x1xi32>
    %29 = arith.remsi %25, %28 : vector<256x1xi32>
    %c0_i32_18 = arith.constant 0 : i32
    %30 = vector.broadcast %c0_i32_18 : i32 to vector<256x1xi32>
    %31 = arith.cmpi ne, %29, %30 : vector<256x1xi32>
    %c0_i32_19 = arith.constant 0 : i32
    %32 = vector.broadcast %c0_i32_19 : i32 to vector<256x1xi32>
    %33 = arith.cmpi slt, %29, %32 : vector<256x1xi32>
    %c0_i32_20 = arith.constant 0 : i32
    %34 = arith.cmpi slt, %27, %c0_i32_20 : i32
    %35 = vector.broadcast %34 : i1 to vector<256x1xi1>
    %36 = vector.broadcast %35 : vector<256x1xi1> to vector<256x1xi1>
    %37 = arith.xori %33, %36 : vector<256x1xi1>
    %38 = arith.andi %37, %31 : vector<256x1xi1>
    %39 = vector.broadcast %27 : i32 to vector<256x1xi32>
    %40 = arith.addi %29, %39 : vector<256x1xi32>
    %41 = arith.select %38, %40, %29 : vector<256x1xi1>, vector<256x1xi32>
    %cst_21 = arith.constant 0.000000e+00 : f32
    %42 = vector.broadcast %cst_21 : f32 to vector<256x4xf32>
    %c0_22 = arith.constant 0 : index
    %c0_23 = arith.constant 0 : index
    %43 = vector.load %arg7[%c0_22, %c0_23] : memref<1x4xf32, #tpu.memory_space<vmem>>, vector<1x4xf32>
    %44 = vector.broadcast %43 : vector<1x4xf32> to vector<256x4xf32>
    %45 = arith.addf %42, %44 : vector<256x4xf32>
    %cst_24 = arith.constant 0.000000e+00 : f32
    %46 = vector.broadcast %cst_24 : f32 to vector<256x4xf32>
    %c15 = arith.constant 15 : index
    %c0_25 = arith.constant 0 : index
    %47 = vector.load %arg13[%c15, %c0_25] : memref<320x4xbf16, #tpu.memory_space<vmem>>, vector<256x4xbf16>
    %c0_26 = arith.constant 0 : index
    %c0_27 = arith.constant 0 : index
    %c0_28 = arith.constant 0 : index
    %48 = vector.load %arg6[%c0_26, %c0_27, %c0_28] : memref<9x4x4xbf16, #tpu.memory_space<vmem>>, vector<1x4x4xbf16>
    %49 = vector.shape_cast %48 : vector<1x4x4xbf16> to vector<4x4xbf16>
    %cst_29 = arith.constant dense<0.000000e+00> : vector<256x4xf32>
    %50 = tpu.matmul %47, %49, %cst_29 {dimension_numbers = #tpu.dot_dimension_numbers<[1], [0], [0], [1], [0, 0, 1, 1], [], []>} : vector<256x4xbf16>, vector<4x4xbf16>, vector<256x4xf32> -> vector<256x4xf32>
    %51 = arith.addf %46, %50 : vector<256x4xf32>
    %c31 = arith.constant 31 : index
    %c0_30 = arith.constant 0 : index
    %52 = vector.load %arg13[%c31, %c0_30] : memref<320x4xbf16, #tpu.memory_space<vmem>>, vector<256x4xbf16>
    %c3 = arith.constant 3 : index
    %c0_31 = arith.constant 0 : index
    %c0_32 = arith.constant 0 : index
    %53 = vector.load %arg6[%c3, %c0_31, %c0_32] : memref<9x4x4xbf16, #tpu.memory_space<vmem>>, vector<1x4x4xbf16>
    %54 = vector.shape_cast %53 : vector<1x4x4xbf16> to vector<4x4xbf16>
    %cst_33 = arith.constant dense<0.000000e+00> : vector<256x4xf32>
    %55 = tpu.matmul %52, %54, %cst_33 {dimension_numbers = #tpu.dot_dimension_numbers<[1], [0], [0], [1], [0, 0, 1, 1], [], []>} : vector<256x4xbf16>, vector<4x4xbf16>, vector<256x4xf32> -> vector<256x4xf32>
    %56 = arith.addf %51, %55 : vector<256x4xf32>
    %c47 = arith.constant 47 : index
    %c0_34 = arith.constant 0 : index
    %57 = vector.load %arg13[%c47, %c0_34] : memref<320x4xbf16, #tpu.memory_space<vmem>>, vector<256x4xbf16>
    %c6 = arith.constant 6 : index
    %c0_35 = arith.constant 0 : index
    %c0_36 = arith.constant 0 : index
    %58 = vector.load %arg6[%c6, %c0_35, %c0_36] : memref<9x4x4xbf16, #tpu.memory_space<vmem>>, vector<1x4x4xbf16>
    %59 = vector.shape_cast %58 : vector<1x4x4xbf16> to vector<4x4xbf16>
    %cst_37 = arith.constant dense<0.000000e+00> : vector<256x4xf32>
    %60 = tpu.matmul %57, %59, %cst_37 {dimension_numbers = #tpu.dot_dimension_numbers<[1], [0], [0], [1], [0, 0, 1, 1], [], []>} : vector<256x4xbf16>, vector<4x4xbf16>, vector<256x4xf32> -> vector<256x4xf32>
    %61 = arith.addf %56, %60 : vector<256x4xf32>
    %c0_i32_38 = arith.constant 0 : i32
    %62 = vector.broadcast %c0_i32_38 : i32 to vector<256x1xi32>
    %63 = arith.cmpi sgt, %41, %62 : vector<256x1xi32>
    %cst_39 = arith.constant 0.000000e+00 : f32
    %64 = vector.shape_cast %63 : vector<256x1xi1> to vector<256x1xi1>
    %65 = vector.broadcast %64 : vector<256x1xi1> to vector<256x4xi1>
    %66 = vector.broadcast %cst_39 : f32 to vector<256x4xf32>
    %67 = arith.select %65, %61, %66 : vector<256x4xi1>, vector<256x4xf32>
    %68 = arith.addf %45, %67 : vector<256x4xf32>
    %cst_40 = arith.constant 0.000000e+00 : f32
    %69 = vector.broadcast %cst_40 : f32 to vector<256x4xf32>
    %c16 = arith.constant 16 : index
    %c0_41 = arith.constant 0 : index
    %70 = vector.load %arg13[%c16, %c0_41] : memref<320x4xbf16, #tpu.memory_space<vmem>>, vector<256x4xbf16>
    %c1 = arith.constant 1 : index
    %c0_42 = arith.constant 0 : index
    %c0_43 = arith.constant 0 : index
    %71 = vector.load %arg6[%c1, %c0_42, %c0_43] : memref<9x4x4xbf16, #tpu.memory_space<vmem>>, vector<1x4x4xbf16>
    %72 = vector.shape_cast %71 : vector<1x4x4xbf16> to vector<4x4xbf16>
    %cst_44 = arith.constant dense<0.000000e+00> : vector<256x4xf32>
    %73 = tpu.matmul %70, %72, %cst_44 {dimension_numbers = #tpu.dot_dimension_numbers<[1], [0], [0], [1], [0, 0, 1, 1], [], []>} : vector<256x4xbf16>, vector<4x4xbf16>, vector<256x4xf32> -> vector<256x4xf32>
    %74 = arith.addf %69, %73 : vector<256x4xf32>
    %c32_45 = arith.constant 32 : index
    %c0_46 = arith.constant 0 : index
    %75 = vector.load %arg13[%c32_45, %c0_46] : memref<320x4xbf16, #tpu.memory_space<vmem>>, vector<256x4xbf16>
    %c4 = arith.constant 4 : index
    %c0_47 = arith.constant 0 : index
    %c0_48 = arith.constant 0 : index
    %76 = vector.load %arg6[%c4, %c0_47, %c0_48] : memref<9x4x4xbf16, #tpu.memory_space<vmem>>, vector<1x4x4xbf16>
    %77 = vector.shape_cast %76 : vector<1x4x4xbf16> to vector<4x4xbf16>
    %cst_49 = arith.constant dense<0.000000e+00> : vector<256x4xf32>
    %78 = tpu.matmul %75, %77, %cst_49 {dimension_numbers = #tpu.dot_dimension_numbers<[1], [0], [0], [1], [0, 0, 1, 1], [], []>} : vector<256x4xbf16>, vector<4x4xbf16>, vector<256x4xf32> -> vector<256x4xf32>
    %79 = arith.addf %74, %78 : vector<256x4xf32>
    %c48 = arith.constant 48 : index
    %c0_50 = arith.constant 0 : index
    %80 = vector.load %arg13[%c48, %c0_50] : memref<320x4xbf16, #tpu.memory_space<vmem>>, vector<256x4xbf16>
    %c7 = arith.constant 7 : index
    %c0_51 = arith.constant 0 : index
    %c0_52 = arith.constant 0 : index
    %81 = vector.load %arg6[%c7, %c0_51, %c0_52] : memref<9x4x4xbf16, #tpu.memory_space<vmem>>, vector<1x4x4xbf16>
    %82 = vector.shape_cast %81 : vector<1x4x4xbf16> to vector<4x4xbf16>
    %cst_53 = arith.constant dense<0.000000e+00> : vector<256x4xf32>
    %83 = tpu.matmul %80, %82, %cst_53 {dimension_numbers = #tpu.dot_dimension_numbers<[1], [0], [0], [1], [0, 0, 1, 1], [], []>} : vector<256x4xbf16>, vector<4x4xbf16>, vector<256x4xf32> -> vector<256x4xf32>
    %84 = arith.addf %79, %83 : vector<256x4xf32>
    %85 = arith.addf %68, %84 : vector<256x4xf32>
    %cst_54 = arith.constant 0.000000e+00 : f32
    %86 = vector.broadcast %cst_54 : f32 to vector<256x4xf32>
    %c17 = arith.constant 17 : index
    %c0_55 = arith.constant 0 : index
    %87 = vector.load %arg13[%c17, %c0_55] : memref<320x4xbf16, #tpu.memory_space<vmem>>, vector<256x4xbf16>
    %c2 = arith.constant 2 : index
    %c0_56 = arith.constant 0 : index
    %c0_57 = arith.constant 0 : index
    %88 = vector.load %arg6[%c2, %c0_56, %c0_57] : memref<9x4x4xbf16, #tpu.memory_space<vmem>>, vector<1x4x4xbf16>
    %89 = vector.shape_cast %88 : vector<1x4x4xbf16> to vector<4x4xbf16>
    %cst_58 = arith.constant dense<0.000000e+00> : vector<256x4xf32>
    %90 = tpu.matmul %87, %89, %cst_58 {dimension_numbers = #tpu.dot_dimension_numbers<[1], [0], [0], [1], [0, 0, 1, 1], [], []>} : vector<256x4xbf16>, vector<4x4xbf16>, vector<256x4xf32> -> vector<256x4xf32>
    %91 = arith.addf %86, %90 : vector<256x4xf32>
    %c33 = arith.constant 33 : index
    %c0_59 = arith.constant 0 : index
    %92 = vector.load %arg13[%c33, %c0_59] : memref<320x4xbf16, #tpu.memory_space<vmem>>, vector<256x4xbf16>
    %c5 = arith.constant 5 : index
    %c0_60 = arith.constant 0 : index
    %c0_61 = arith.constant 0 : index
    %93 = vector.load %arg6[%c5, %c0_60, %c0_61] : memref<9x4x4xbf16, #tpu.memory_space<vmem>>, vector<1x4x4xbf16>
    %94 = vector.shape_cast %93 : vector<1x4x4xbf16> to vector<4x4xbf16>
    %cst_62 = arith.constant dense<0.000000e+00> : vector<256x4xf32>
    %95 = tpu.matmul %92, %94, %cst_62 {dimension_numbers = #tpu.dot_dimension_numbers<[1], [0], [0], [1], [0, 0, 1, 1], [], []>} : vector<256x4xbf16>, vector<4x4xbf16>, vector<256x4xf32> -> vector<256x4xf32>
    %96 = arith.addf %91, %95 : vector<256x4xf32>
    %c49 = arith.constant 49 : index
    %c0_63 = arith.constant 0 : index
    %97 = vector.load %arg13[%c49, %c0_63] : memref<320x4xbf16, #tpu.memory_space<vmem>>, vector<256x4xbf16>
    %c8 = arith.constant 8 : index
    %c0_64 = arith.constant 0 : index
    %c0_65 = arith.constant 0 : index
    %98 = vector.load %arg6[%c8, %c0_64, %c0_65] : memref<9x4x4xbf16, #tpu.memory_space<vmem>>, vector<1x4x4xbf16>
    %99 = vector.shape_cast %98 : vector<1x4x4xbf16> to vector<4x4xbf16>
    %cst_66 = arith.constant dense<0.000000e+00> : vector<256x4xf32>
    %100 = tpu.matmul %97, %99, %cst_66 {dimension_numbers = #tpu.dot_dimension_numbers<[1], [0], [0], [1], [0, 0, 1, 1], [], []>} : vector<256x4xbf16>, vector<4x4xbf16>, vector<256x4xf32> -> vector<256x4xf32>
    %101 = arith.addf %96, %100 : vector<256x4xf32>
    %c15_i32 = arith.constant 15 : i32
    %102 = vector.broadcast %c15_i32 : i32 to vector<256x1xi32>
    %103 = arith.cmpi slt, %41, %102 : vector<256x1xi32>
    %cst_67 = arith.constant 0.000000e+00 : f32
    %104 = vector.shape_cast %103 : vector<256x1xi1> to vector<256x1xi1>
    %105 = vector.broadcast %104 : vector<256x1xi1> to vector<256x4xi1>
    %106 = vector.broadcast %cst_67 : f32 to vector<256x4xf32>
    %107 = arith.select %105, %101, %106 : vector<256x4xi1>, vector<256x4xf32>
    %108 = arith.addf %85, %107 : vector<256x4xf32>
    %cst_68 = arith.constant 0.000000e+00 : f32
    %109 = vector.broadcast %cst_68 : f32 to vector<256x4xf32>
    %110 = arith.maximumf %108, %109 : vector<256x4xf32>
    %111 = arith.truncf %110 : vector<256x4xf32> to vector<256x4xbf16>
    %c0_69 = arith.constant 0 : index
    %c0_70 = arith.constant 0 : index
    %112 = vector.load %arg8[%c0_69, %c0_70] : memref<4x8xbf16, #tpu.memory_space<vmem>>, vector<4x8xbf16>
    %cst_71 = arith.constant dense<0.000000e+00> : vector<256x8xf32>
    %113 = tpu.matmul %111, %112, %cst_71 {dimension_numbers = #tpu.dot_dimension_numbers<[1], [0], [0], [1], [0, 0, 1, 1], [], []>} : vector<256x4xbf16>, vector<4x8xbf16>, vector<256x8xf32> -> vector<256x8xf32>
    %c0_72 = arith.constant 0 : index
    %c0_73 = arith.constant 0 : index
    %114 = vector.load %arg9[%c0_72, %c0_73] : memref<1x8xf32, #tpu.memory_space<vmem>>, vector<1x8xf32>
    %115 = vector.broadcast %114 : vector<1x8xf32> to vector<256x8xf32>
    %116 = arith.addf %113, %115 : vector<256x8xf32>
    %c0_74 = arith.constant 0 : index
    %c0_75 = arith.constant 0 : index
    %117 = vector.load %arg10[%c0_74, %c0_75] : memref<4x8xbf16, #tpu.memory_space<vmem>>, vector<4x8xbf16>
    %cst_76 = arith.constant dense<0.000000e+00> : vector<256x8xf32>
    %118 = tpu.matmul %1, %117, %cst_76 {dimension_numbers = #tpu.dot_dimension_numbers<[1], [0], [0], [1], [0, 0, 1, 1], [], []>} : vector<256x4xbf16>, vector<4x8xbf16>, vector<256x8xf32> -> vector<256x8xf32>
    %119 = arith.addf %116, %118 : vector<256x8xf32>
    %c0_77 = arith.constant 0 : index
    %c0_78 = arith.constant 0 : index
    %120 = vector.load %arg11[%c0_77, %c0_78] : memref<1x8xf32, #tpu.memory_space<vmem>>, vector<1x8xf32>
    %121 = vector.broadcast %120 : vector<1x8xf32> to vector<256x8xf32>
    %122 = arith.addf %119, %121 : vector<256x8xf32>
    %c0_79 = arith.constant 0 : index
    %c0_80 = arith.constant 0 : index
    %c0_81 = arith.constant 0 : index
    %123 = vector.load %arg12[%c0_79, %c0_80, %c0_81] : memref<1x256x8xf32, #tpu.memory_space<vmem>>, vector<1x256x8xf32>
    %124 = vector.shape_cast %123 : vector<1x256x8xf32> to vector<256x8xf32>
    %125 = vector.shape_cast %122 : vector<256x8xf32> to vector<1x256x8xf32>
    tpu.vector_store %arg12[%c0_79, %c0_80, %c0_81], %125 {strides = array<i32>} : memref<1x256x8xf32, #tpu.memory_space<vmem>>, vector<1x256x8xf32>,
    return
  }
  func.func @transform_0(%arg0: i32) -> (i32, i32, i32) {
    %c0_i32 = arith.constant 0 : i32
    %c0_i32_0 = arith.constant 0 : i32
    %c0_i32_1 = arith.constant 0 : i32
    return %arg0, %c0_i32, %c0_i32_0 : i32, i32, i32
  }
  func.func @transform_1(%arg0: i32) -> (i32, i32) {
    %c0_i32 = arith.constant 0 : i32
    %c0_i32_0 = arith.constant 0 : i32
    %c0_i32_1 = arith.constant 0 : i32
    return %c0_i32, %c0_i32_0 : i32, i32
  }
  func.func @transform_2(%arg0: i32) -> (i32, i32) {
    %c0_i32 = arith.constant 0 : i32
    %c0_i32_0 = arith.constant 0 : i32
    %c0_i32_1 = arith.constant 0 : i32
    return %c0_i32, %c0_i32_0 : i32, i32
  }
  func.func @transform_3(%arg0: i32) -> (i32, i32) {
    %c0_i32 = arith.constant 0 : i32
    %c0_i32_0 = arith.constant 0 : i32
    %c0_i32_1 = arith.constant 0 : i32
    return %c0_i32, %c0_i32_0 : i32, i32
  }
  func.func @transform_4(%arg0: i32) -> (i32, i32) {
    %c0_i32 = arith.constant 0 : i32
    %c0_i32_0 = arith.constant 0 : i32
    %c0_i32_1 = arith.constant 0 : i32
    return %c0_i32, %c0_i32_0 : i32, i32
  }
  func.func @transform_5(%arg0: i32) -> (i32, i32, i32) {
    %c0_i32 = arith.constant 0 : i32
    %c0_i32_0 = arith.constant 0 : i32
    %c0_i32_1 = arith.constant 0 : i32
    %c0_i32_2 = arith.constant 0 : i32
    return %c0_i32, %c0_i32_0, %c0_i32_1 : i32, i32, i32
  }
  func.func @transform_6(%arg0: i32) -> (i32, i32) {
    %c0_i32 = arith.constant 0 : i32
    %c0_i32_0 = arith.constant 0 : i32
    %c0_i32_1 = arith.constant 0 : i32
    return %c0_i32, %c0_i32_0 : i32, i32
  }
  func.func @transform_7(%arg0: i32) -> (i32, i32) {
    %c0_i32 = arith.constant 0 : i32
    %c0_i32_0 = arith.constant 0 : i32
    %c0_i32_1 = arith.constant 0 : i32
    return %c0_i32, %c0_i32_0 : i32, i32
  }
  func.func @transform_8(%arg0: i32) -> (i32, i32) {
    %c0_i32 = arith.constant 0 : i32
    %c0_i32_0 = arith.constant 0 : i32
    %c0_i32_1 = arith.constant 0 : i32
    return %c0_i32, %c0_i32_0 : i32, i32
  }
  func.func @transform_9(%arg0: i32) -> (i32, i32) {
    %c0_i32 = arith.constant 0 : i32
    %c0_i32_0 = arith.constant 0 : i32
    %c0_i32_1 = arith.constant 0 : i32
    return %c0_i32, %c0_i32_0 : i32, i32
  }
  func.func @transform_10(%arg0: i32) -> (i32, i32) {
    %c0_i32 = arith.constant 0 : i32
    %c0_i32_0 = arith.constant 0 : i32
    %c0_i32_1 = arith.constant 0 : i32
    return %c0_i32, %c0_i32_0 : i32, i32
  }
  func.func @transform_11(%arg0: i32) -> (i32, i32, i32) {
    %c0_i32 = arith.constant 0 : i32
    %c0_i32_0 = arith.constant 0 : i32
    %c0_i32_1 = arith.constant 0 : i32
    return %arg0, %c0_i32, %c0_i32_0 : i32, i32, i32
  }
}

</mosaic_0001>

<llo_original>
// kernel: tpu_custom_call.1
$region0: #{tpu_custom_call.1}
  #allocation0 [shape = 'u32[]', space=smem, size = 0x4, offset = 0x4, fixed_abs, tag = 'smem constant byte address 0x4 - core index']
  #allocation1 [shape = 'u32[144,128]{1,0:T(1,128)}', space=vmem, size = 0x12000, scoped, tag = 'internal scratch']
  #allocation2 [shape = 'bf16[320,4]{1,0:T(8,128)(2,1)}', space=vmem, size = 0x14000, scoped, tag = 'scratch operand']
  %s0 = inlined_call_operand.vmem [shape: bf16[2,256,4], index: 0, kind: input, shape index: {}]
  %s1 = inlined_call_operand.vmem [shape: f32[1,4], index: 1, kind: input, shape index: {}]
  %s2 = inlined_call_operand.vmem [shape: f32[1,4], index: 2, kind: input, shape index: {}]
  %s3 = inlined_call_operand.vmem [shape: bf16[4,4], index: 3, kind: input, shape index: {}]
  %s4 = inlined_call_operand.vmem [shape: f32[1,4], index: 4, kind: input, shape index: {}]
  %s5 = inlined_call_operand.vmem [shape: bf16[9,4,4], index: 5, kind: input, shape index: {}]
  %s6 = inlined_call_operand.vmem [shape: f32[1,4], index: 6, kind: input, shape index: {}]
  %s7 = inlined_call_operand.vmem [shape: bf16[4,8], index: 7, kind: input, shape index: {}]
  %s8 = inlined_call_operand.vmem [shape: f32[1,8], index: 8, kind: input, shape index: {}]
  %s9 = inlined_call_operand.vmem [shape: bf16[4,8], index: 9, kind: input, shape index: {}]
  %s10 = inlined_call_operand.vmem [shape: f32[1,8], index: 10, kind: input, shape index: {}]
  %s11 = inlined_call_operand.vmem [shape: f32[2,256,8], index: 11, kind: output, shape index: {}]
  %s12 = sld [smem:[#allocation0]]
  $region77: #{tpu_custom_call.1} parent=0
    _
  %s14 = ssub.s32 1, %s12
  %s15 = scalar_select 0, %s14, %s12
  loop: start=0, step=1, limit=4
  $region2: #{tpu_custom_call.1} parent=0 // loop_pre_header
    _
  $region3: #{tpu_custom_call.1} parent=0 // loop_header
    %s17 = sphi 0, %s21
    %p18 = scmp.ge.s32.totalorder %s17, 4
    %s27 = sphi 0, %s29
    %s30 = sphi 0, %s27
    %s31 = sphi 0, %s30
    %s47 = sphi 0, %s31
    %s51 = sphi 0, %s51
    %s53 = sphi 0, %s51
    %s54 = sphi 0, %s53
    %s68 = sphi 0, %s54
    %s72 = sphi 0, %s72
    %s74 = sphi 0, %s72
    %s75 = sphi 0, %s74
    %s89 = sphi 0, %s75
    %s93 = sphi 0, %s93
    %s95 = sphi 0, %s93
    %s96 = sphi 0, %s95
    %s110 = sphi 0, %s96
    %s114 = sphi 0, %s114
    %s116 = sphi 0, %s114
    %s117 = sphi 0, %s116
    %s131 = sphi 0, %s117
    %s135 = sphi 0, %s135
    %s137 = sphi 0, %s135
    %s138 = sphi 0, %s137
    %s152 = sphi 0, %s138
    %s156 = sphi 0, %s156
    %s158 = sphi 0, %s156
    %s159 = sphi 0, %s158
    %s173 = sphi 0, %s159
    %s177 = sphi 0, %s177
    %s179 = sphi 0, %s177
    %s180 = sphi 0, %s179
    %s194 = sphi 0, %s180
    %s198 = sphi 0, %s198
    %s200 = sphi 0, %s198
    %s201 = sphi 0, %s200
    %s215 = sphi 0, %s201
    %s219 = sphi 0, %s219
    %s221 = sphi 0, %s219
    %s222 = sphi 0, %s221
    %s236 = sphi 0, %s222
    %s240 = sphi 0, %s240
    %s242 = sphi 0, %s240
    %s243 = sphi 0, %s242
    %s257 = sphi 0, %s243
    %s263 = sphi 0, %s265
    %s266 = sphi 0, %s263
    %s267 = sphi 0, %s266
    %s283 = sphi 0, %s267
  $region4: #{tpu_custom_call.1} parent=0 // loop_header_branch
    %20 = sbr.rel (%p18) target = $region8
  $region5: #{tpu_custom_call.1} parent=0 // loop_body
    %s22 = ssub.s32 %s17, 1
    %s23 = ssub.s32 %s17, 2
    %s24 = sadd.s32 %s17, 1
    %s25 = ssub.s32 %s17, %s24
    %p26 = scmp.eq.s32.totalorder %s25, 0
    %s28 = sadd.s32 %s27, 1
    %s29 = scalar_select %p26, %s27, %s28
    %p32 = pneg %p26
    %p33 = scmp.eq.s32.totalorder %s17, 1
    %p34 = por %p32, %p33
    %p35 = scmp.ne.s32.totalorder %s27, %s30
    %p36 = scmp.eq.s32.totalorder %s17, 0
    %p37 = por %p35, %p36
    %p38 = scmp.ne.s32.totalorder %s27, %s30
    %p39 = scmp.eq.s32.totalorder %s22, 1
    %p40 = por %p38, %p39
    %p41 = scmp.ne.s32.totalorder %s30, %s31
    %p42 = scmp.eq.s32.totalorder %s22, 0
    %p43 = por %p41, %p42
    %p44 = scmp.ne.s32.totalorder %s30, %s31
    %p45 = scmp.eq.s32.totalorder %s23, 1
    %p46 = por %p44, %p45
    %p48 = scmp.ne.s32.totalorder %s31, %s47
    %p49 = scmp.eq.s32.totalorder %s23, 0
    %p50 = por %p48, %p49
    %s52 = sadd.s32 %s51, 1
    %p55 = scmp.eq.s32.totalorder %s17, 1
    %p56 = scmp.ne.s32.totalorder %s51, %s53
    %p57 = scmp.eq.s32.totalorder %s17, 0
    %p58 = por %p56, %p57
    %p59 = scmp.ne.s32.totalorder %s51, %s53
    %p60 = scmp.eq.s32.totalorder %s22, 1
    %p61 = por %p59, %p60
    %p62 = scmp.ne.s32.totalorder %s53, %s54
    %p63 = scmp.eq.s32.totalorder %s22, 0
    %p64 = por %p62, %p63
    %p65 = scmp.ne.s32.totalorder %s53, %s54
    %p66 = scmp.eq.s32.totalorder %s23, 1
    %p67 = por %p65, %p66
    %p69 = scmp.ne.s32.totalorder %s54, %s68
    %p70 = scmp.eq.s32.totalorder %s23, 0
    %p71 = por %p69, %p70
    %s73 = sadd.s32 %s72, 1
    %p76 = scmp.eq.s32.totalorder %s17, 1
    %p77 = scmp.ne.s32.totalorder %s72, %s74
    %p78 = scmp.eq.s32.totalorder %s17, 0
    %p79 = por %p77, %p78
    %p80 = scmp.ne.s32.totalorder %s72, %s74
    %p81 = scmp.eq.s32.totalorder %s22, 1
    %p82 = por %p80, %p81
    %p83 = scmp.ne.s32.totalorder %s74, %s75
    %p84 = scmp.eq.s32.totalorder %s22, 0
    %p85 = por %p83, %p84
    %p86 = scmp.ne.s32.totalorder %s74, %s75
    %p87 = scmp.eq.s32.totalorder %s23, 1
    %p88 = por %p86, %p87
    %p90 = scmp.ne.s32.totalorder %s75, %s89
    %p91 = scmp.eq.s32.totalorder %s23, 0
    %p92 = por %p90, %p91
    %s94 = sadd.s32 %s93, 1
    %p97 = scmp.eq.s32.totalorder %s17, 1
    %p98 = scmp.ne.s32.totalorder %s93, %s95
    %p99 = scmp.eq.s32.totalorder %s17, 0
    %p100 = por %p98, %p99
    %p101 = scmp.ne.s32.totalorder %s93, %s95
    %p102 = scmp.eq.s32.totalorder %s22, 1
    %p103 = por %p101, %p102
    %p104 = scmp.ne.s32.totalorder %s95, %s96
    %p105 = scmp.eq.s32.totalorder %s22, 0
    %p106 = por %p104, %p105
    %p107 = scmp.ne.s32.totalorder %s95, %s96
    %p108 = scmp.eq.s32.totalorder %s23, 1
    %p109 = por %p107, %p108
    %p111 = scmp.ne.s32.totalorder %s96, %s110
    %p112 = scmp.eq.s32.totalorder %s23, 0
    %p113 = por %p111, %p112
    %s115 = sadd.s32 %s114, 1
    %p118 = scmp.eq.s32.totalorder %s17, 1
    %p119 = scmp.ne.s32.totalorder %s114, %s116
    %p120 = scmp.eq.s32.totalorder %s17, 0
    %p121 = por %p119, %p120
    %p122 = scmp.ne.s32.totalorder %s114, %s116
    %p123 = scmp.eq.s32.totalorder %s22, 1
    %p124 = por %p122, %p123
    %p125 = scmp.ne.s32.totalorder %s116, %s117
    %p126 = scmp.eq.s32.totalorder %s22, 0
    %p127 = por %p125, %p126
    %p128 = scmp.ne.s32.totalorder %s116, %s117
    %p129 = scmp.eq.s32.totalorder %s23, 1
    %p130 = por %p128, %p129
    %p132 = scmp.ne.s32.totalorder %s117, %s131
    %p133 = scmp.eq.s32.totalorder %s23, 0
    %p134 = por %p132, %p133
    %s136 = sadd.s32 %s135, 1
    %p139 = scmp.eq.s32.totalorder %s17, 1
    %p140 = scmp.ne.s32.totalorder %s135, %s137
    %p141 = scmp.eq.s32.totalorder %s17, 0
    %p142 = por %p140, %p141
    %p143 = scmp.ne.s32.totalorder %s135, %s137
    %p144 = scmp.eq.s32.totalorder %s22, 1
    %p145 = por %p143, %p144
    %p146 = scmp.ne.s32.totalorder %s137, %s138
    %p147 = scmp.eq.s32.totalorder %s22, 0
    %p148 = por %p146, %p147
    %p149 = scmp.ne.s32.totalorder %s137, %s138
    %p150 = scmp.eq.s32.totalorder %s23, 1
    %p151 = por %p149, %p150
    %p153 = scmp.ne.s32.totalorder %s138, %s152
    %p154 = scmp.eq.s32.totalorder %s23, 0
    %p155 = por %p153, %p154
    %s157 = sadd.s32 %s156, 1
    %p160 = scmp.eq.s32.totalorder %s17, 1
    %p161 = scmp.ne.s32.totalorder %s156, %s158
    %p162 = scmp.eq.s32.totalorder %s17, 0
    %p163 = por %p161, %p162
    %p164 = scmp.ne.s32.totalorder %s156, %s158
    %p165 = scmp.eq.s32.totalorder %s22, 1
    %p166 = por %p164, %p165
    %p167 = scmp.ne.s32.totalorder %s158, %s159
    %p168 = scmp.eq.s32.totalorder %s22, 0
    %p169 = por %p167, %p168
    %p170 = scmp.ne.s32.totalorder %s158, %s159
    %p171 = scmp.eq.s32.totalorder %s23, 1
    %p172 = por %p170, %p171
    %p174 = scmp.ne.s32.totalorder %s159, %s173
    %p175 = scmp.eq.s32.totalorder %s23, 0
    %p176 = por %p174, %p175
    %s178 = sadd.s32 %s177, 1
    %p181 = scmp.eq.s32.totalorder %s17, 1
    %p182 = scmp.ne.s32.totalorder %s177, %s179
    %p183 = scmp.eq.s32.totalorder %s17, 0
    %p184 = por %p182, %p183
    %p185 = scmp.ne.s32.totalorder %s177, %s179
    %p186 = scmp.eq.s32.totalorder %s22, 1
    %p187 = por %p185, %p186
    %p188 = scmp.ne.s32.totalorder %s179, %s180
    %p189 = scmp.eq.s32.totalorder %s22, 0
    %p190 = por %p188, %p189
    %p191 = scmp.ne.s32.totalorder %s179, %s180
    %p192 = scmp.eq.s32.totalorder %s23, 1
    %p193 = por %p191, %p192
    %p195 = scmp.ne.s32.totalorder %s180, %s194
    %p196 = scmp.eq.s32.totalorder %s23, 0
    %p197 = por %p195, %p196
    %s199 = sadd.s32 %s198, 1
    %p202 = scmp.eq.s32.totalorder %s17, 1
    %p203 = scmp.ne.s32.totalorder %s198, %s200
    %p204 = scmp.eq.s32.totalorder %s17, 0
    %p205 = por %p203, %p204
    %p206 = scmp.ne.s32.totalorder %s198, %s200
    %p207 = scmp.eq.s32.totalorder %s22, 1
    %p208 = por %p206, %p207
    %p209 = scmp.ne.s32.totalorder %s200, %s201
    %p210 = scmp.eq.s32.totalorder %s22, 0
    %p211 = por %p209, %p210
    %p212 = scmp.ne.s32.totalorder %s200, %s201
    %p213 = scmp.eq.s32.totalorder %s23, 1
    %p214 = por %p212, %p213
    %p216 = scmp.ne.s32.totalorder %s201, %s215
    %p217 = scmp.eq.s32.totalorder %s23, 0
    %p218 = por %p216, %p217
    %s220 = sadd.s32 %s219, 1
    %p223 = scmp.eq.s32.totalorder %s17, 1
    %p224 = scmp.ne.s32.totalorder %s219, %s221
    %p225 = scmp.eq.s32.totalorder %s17, 0
    %p226 = por %p224, %p225
    %p227 = scmp.ne.s32.totalorder %s219, %s221
    %p228 = scmp.eq.s32.totalorder %s22, 1
    %p229 = por %p227, %p228
    %p230 = scmp.ne.s32.totalorder %s221, %s222
    %p231 = scmp.eq.s32.totalorder %s22, 0
    %p232 = por %p230, %p231
    %p233 = scmp.ne.s32.totalorder %s221, %s222
    %p234 = scmp.eq.s32.totalorder %s23, 1
    %p235 = por %p233, %p234
    %p237 = scmp.ne.s32.totalorder %s222, %s236
    %p238 = scmp.eq.s32.totalorder %s23, 0
    %p239 = por %p237, %p238
    %s241 = sadd.s32 %s240, 1
    %p244 = scmp.eq.s32.totalorder %s17, 1
    %p245 = scmp.ne.s32.totalorder %s240, %s242
    %p246 = scmp.eq.s32.totalorder %s17, 0
    %p247 = por %p245, %p246
    %p248 = scmp.ne.s32.totalorder %s240, %s242
    %p249 = scmp.eq.s32.totalorder %s22, 1
    %p250 = por %p248, %p249
    %p251 = scmp.ne.s32.totalorder %s242, %s243
    %p252 = scmp.eq.s32.totalorder %s22, 0
    %p253 = por %p251, %p252
    %p254 = scmp.ne.s32.totalorder %s242, %s243
    %p255 = scmp.eq.s32.totalorder %s23, 1
    %p256 = por %p254, %p255
    %p258 = scmp.ne.s32.totalorder %s243, %s257
    %p259 = scmp.eq.s32.totalorder %s23, 0
    %p260 = por %p258, %p259
    %s261 = ssub.s32 %s17, %s24
    %p262 = scmp.eq.s32.totalorder %s261, 0
    %s264 = sadd.s32 %s263, 1
    %s265 = scalar_select %p262, %s263, %s264
    %p268 = pneg %p262
    %p269 = scmp.eq.s32.totalorder %s17, 1
    %p270 = por %p268, %p269
    %p271 = scmp.ne.s32.totalorder %s263, %s266
    %p272 = scmp.eq.s32.totalorder %s17, 0
    %p273 = por %p271, %p272
    %p274 = scmp.ne.s32.totalorder %s263, %s266
    %p275 = scmp.eq.s32.totalorder %s22, 1
    %p276 = por %p274, %p275
    %p277 = scmp.ne.s32.totalorder %s266, %s267
    %p278 = scmp.eq.s32.totalorder %s22, 0
    %p279 = por %p277, %p278
    %p280 = scmp.ne.s32.totalorder %s266, %s267
    %p281 = scmp.eq.s32.totalorder %s23, 1
    %p282 = por %p280, %p281
    %p284 = scmp.ne.s32.totalorder %s267, %s283
    %p285 = scmp.eq.s32.totalorder %s23, 0
    %p286 = por %p284, %p285
    %p287 = scmp.le.s32.totalorder 1, %s17
    %p288 = scmp.lt.s32.totalorder %s17, 3
    %p289 = pnand %p287, %p288
    %p290 = pneg %p289
    // Predicated region
    $region9: #{tpu_custom_call.1} parent=5 // pred_check
      _
    $region10: #{tpu_custom_call.1} parent=5 // pred_check_branch
      %292 = sbr.rel (%p289) target = $region12
    $region11: #{tpu_custom_call.1} parent=5 // pred_region
      %s293 = ssub.s32 %s17, 1
      // Predicated region
      $region13: #{tpu_custom_call.1} parent=11 // pred_check
        %p294 = pneg %p64
      $region14: #{tpu_custom_call.1} parent=11 // pred_check_branch
        %296 = sbr.rel (%p294) target = $region16
      $region15: #{tpu_custom_call.1} parent=11 // pred_region
        _
      $region16: #{tpu_custom_call.1} parent=11 // pred_fallthru
        _
      // Predicated region
      $region17: #{tpu_custom_call.1} parent=11 // pred_check
        %p297 = pneg %p85
      $region18: #{tpu_custom_call.1} parent=11 // pred_check_branch
        %299 = sbr.rel (%p297) target = $region20
      $region19: #{tpu_custom_call.1} parent=11 // pred_region
        _
      $region20: #{tpu_custom_call.1} parent=11 // pred_fallthru
        _
      // Predicated region
      $region21: #{tpu_custom_call.1} parent=11 // pred_check
        %p300 = pneg %p106
      $region22: #{tpu_custom_call.1} parent=11 // pred_check_branch
        %302 = sbr.rel (%p300) target = $region24
      $region23: #{tpu_custom_call.1} parent=11 // pred_region
        _
      $region24: #{tpu_custom_call.1} parent=11 // pred_fallthru
        _
      // Predicated region
      $region25: #{tpu_custom_call.1} parent=11 // pred_check
        %p303 = pneg %p127
      $region26: #{tpu_custom_call.1} parent=11 // pred_check_branch
        %305 = sbr.rel (%p303) target = $region28
      $region27: #{tpu_custom_call.1} parent=11 // pred_region
        _
      $region28: #{tpu_custom_call.1} parent=11 // pred_fallthru
        _
      // Predicated region
      $region29: #{tpu_custom_call.1} parent=11 // pred_check
        %p306 = pneg %p148
      $region30: #{tpu_custom_call.1} parent=11 // pred_check_branch
        %308 = sbr.rel (%p306) target = $region32
      $region31: #{tpu_custom_call.1} parent=11 // pred_region
        _
      $region32: #{tpu_custom_call.1} parent=11 // pred_fallthru
        _
      // Predicated region
      $region33: #{tpu_custom_call.1} parent=11 // pred_check
        %p309 = pneg %p169
      $region34: #{tpu_custom_call.1} parent=11 // pred_check_branch
        %311 = sbr.rel (%p309) target = $region36
      $region35: #{tpu_custom_call.1} parent=11 // pred_region
        _
      $region36: #{tpu_custom_call.1} parent=11 // pred_fallthru
        _
      // Predicated region
      $region37: #{tpu_custom_call.1} parent=11 // pred_check
        %p312 = pneg %p190
      $region38: #{tpu_custom_call.1} parent=11 // pred_check_branch
        %314 = sbr.rel (%p312) target = $region40
      $region39: #{tpu_custom_call.1} parent=11 // pred_region
        _
      $region40: #{tpu_custom_call.1} parent=11 // pred_fallthru
        _
      // Predicated region
      $region41: #{tpu_custom_call.1} parent=11 // pred_check
        %p315 = pneg %p211
      $region42: #{tpu_custom_call.1} parent=11 // pred_check_branch
        %317 = sbr.rel (%p315) target = $region44
      $region43: #{tpu_custom_call.1} parent=11 // pred_region
        _
      $region44: #{tpu_custom_call.1} parent=11 // pred_fallthru
        _
      // Predicated region
      $region45: #{tpu_custom_call.1} parent=11 // pred_check
        %p318 = pneg %p232
      $region46: #{tpu_custom_call.1} parent=11 // pred_check_branch
        %320 = sbr.rel (%p318) target = $region48
      $region47: #{tpu_custom_call.1} parent=11 // pred_region
        _
      $region48: #{tpu_custom_call.1} parent=11 // pred_fallthru
        _
      // Predicated region
      $region49: #{tpu_custom_call.1} parent=11 // pred_check
        %p321 = pneg %p253
      $region50: #{tpu_custom_call.1} parent=11 // pred_check_branch
        %323 = sbr.rel (%p321) target = $region52
      $region51: #{tpu_custom_call.1} parent=11 // pred_region
        _
      $region52: #{tpu_custom_call.1} parent=11 // pred_fallthru
        _
    $region12: #{tpu_custom_call.1} parent=5 // pred_fallthru
      _
    %p324 = scmp.lt.s32.totalorder %s17, 2
    // Predicated region
    $region53: #{tpu_custom_call.1} parent=5 // pred_check
      %p325 = pneg %p324
    $region54: #{tpu_custom_call.1} parent=5 // pred_check_branch
      %327 = sbr.rel (%p325) target = $region56
    $region55: #{tpu_custom_call.1} parent=5 // pred_region
      // Predicated region
      $region57: #{tpu_custom_call.1} parent=55 // pred_check
        %p328 = pneg %p37
      $region58: #{tpu_custom_call.1} parent=55 // pred_check_branch
        %330 = sbr.rel (%p328) target = $region60
      $region59: #{tpu_custom_call.1} parent=55 // pred_region
        %p331 = scmp.lt.s32.totalorder %s17, 1
        %s332 = scalar_select %p331, %s17, 1
        %s333 = smul.addr %s332, 32
        %s334 = smul.addr %s333, 4
        %s335 = scalar_lea.vmem %s0, %s334
      $region60: #{tpu_custom_call.1} parent=55 // pred_fallthru
        _
    $region56: #{tpu_custom_call.1} parent=5 // pred_fallthru
      _
    %p336 = scmp.le.s32.totalorder 1, %s17
    %p337 = scmp.lt.s32.totalorder %s17, 3
    %p338 = pnand %p336, %p337
    %p339 = pneg %p338
    // Predicated region
    $region61: #{tpu_custom_call.1} parent=5 // pred_check
      _
    $region62: #{tpu_custom_call.1} parent=5 // pred_check_branch
      %341 = sbr.rel (%p338) target = $region64
    $region63: #{tpu_custom_call.1} parent=5 // pred_region
      %s342 = ssub.s32 %s17, 1
      %p343 = scmp.lt.s32.totalorder %s22, 1
      %s344 = scalar_select %p343, %s22, 1
      %s345 = smul.addr %s344, 32
      %s346 = smul.addr %s345, 4
      %s347 = scalar_lea.vmem %s0, %s346
      %p348 = pneg %p43
      %p349 = pneg %p40
      %p350 = pneg %p64
      %p351 = pneg %p61
      %p352 = pneg %p85
      %p353 = pneg %p82
      %p354 = pneg %p106
      %p355 = pneg %p103
      %p356 = pneg %p127
      %p357 = pneg %p124
      %p358 = pneg %p148
      %p359 = pneg %p145
      %p360 = pneg %p169
      %p361 = pneg %p166
      %p362 = pneg %p190
      %p363 = pneg %p187
      %p364 = pneg %p211
      %p365 = pneg %p208
      %p366 = pneg %p232
      %p367 = pneg %p229
      %p368 = pneg %p253
      %p369 = pneg %p250
      %p370 = pneg %p279
      %p371 = pneg %p276
      %p372 = scmp.lt.s32.totalorder %s22, 1
      %s373 = scalar_select %p372, %s22, 1
      %s374 = smul.addr %s373, 32
      %s375 = smul.addr %s374, 8
      %s376 = scalar_lea.vmem %s11, %s375
      %p377 = scmp.lt.s32.totalorder %s22, 1
      %s378 = scalar_select %p377, %s22, 1
      %s379 = smul.addr %s378, 32
      %s380 = smul.addr %s379, 4
      %s381 = scalar_lea.vmem %s0, %s380
      %p382 = scmp.lt.s32.totalorder %s22, 1
      %s383 = scalar_select %p382, %s22, 1
      %s384 = smul.addr %s383, 32
      %s385 = smul.addr %s384, 8
      %s386 = scalar_lea.vmem %s11, %s385
      %v388 = vld [vmem:[%s381] sm:$0xf]
      %v389 = vld [vmem:[%s381 + $0x4] sm:$0xf]
      %v390 = vld [vmem:[%s381 + $0x8] sm:$0xf]
      %v391 = vld [vmem:[%s381 + $0xc] sm:$0xf]
      %v392 = vld [vmem:[%s381 + $0x10] sm:$0xf]
      %v393 = vld [vmem:[%s381 + $0x14] sm:$0xf]
      %v394 = vld [vmem:[%s381 + $0x18] sm:$0xf]
      %v395 = vld [vmem:[%s381 + $0x1c] sm:$0xf]
      %v396 = vld [vmem:[%s381 + $0x20] sm:$0xf]
      %v397 = vld [vmem:[%s381 + $0x24] sm:$0xf]
      %v398 = vld [vmem:[%s381 + $0x28] sm:$0xf]
      %v399 = vld [vmem:[%s381 + $0x2c] sm:$0xf]
      %v400 = vld [vmem:[%s381 + $0x30] sm:$0xf]
      %v401 = vld [vmem:[%s381 + $0x34] sm:$0xf]
      %v402 = vld [vmem:[%s381 + $0x38] sm:$0xf]
      %v403 = vld [vmem:[%s381 + $0x3c] sm:$0xf]
      %v404 = vld [vmem:[%s381 + $0x40] sm:$0xf]
      %v405 = vld [vmem:[%s381 + $0x44] sm:$0xf]
      %v406 = vld [vmem:[%s381 + $0x48] sm:$0xf]
      %v407 = vld [vmem:[%s381 + $0x4c] sm:$0xf]
      %v408 = vld [vmem:[%s381 + $0x50] sm:$0xf]
      %v409 = vld [vmem:[%s381 + $0x54] sm:$0xf]
      %v410 = vld [vmem:[%s381 + $0x58] sm:$0xf]
      %v411 = vld [vmem:[%s381 + $0x5c] sm:$0xf]
      %v412 = vld [vmem:[%s381 + $0x60] sm:$0xf]
      %v413 = vld [vmem:[%s381 + $0x64] sm:$0xf]
      %v414 = vld [vmem:[%s381 + $0x68] sm:$0xf]
      %v415 = vld [vmem:[%s381 + $0x6c] sm:$0xf]
      %v416 = vld [vmem:[%s381 + $0x70] sm:$0xf]
      %v417 = vld [vmem:[%s381 + $0x74] sm:$0xf]
      %v418 = vld [vmem:[%s381 + $0x78] sm:$0xf]
      %v419 = vld [vmem:[%s381 + $0x7c] sm:$0xf]
      %v420 = vunpack.c.l.bf16 %v388
      %v421 = vunpack.c.l.bf16 %v389
      %v422 = vunpack.c.l.bf16 %v390
      %v423 = vunpack.c.l.bf16 %v391
      %v424 = vunpack.c.l.bf16 %v392
      %v425 = vunpack.c.l.bf16 %v393
      %v426 = vunpack.c.l.bf16 %v394
      %v427 = vunpack.c.l.bf16 %v395
      %v428 = vunpack.c.l.bf16 %v396
      %v429 = vunpack.c.l.bf16 %v397
      %v430 = vunpack.c.l.bf16 %v398
      %v431 = vunpack.c.l.bf16 %v399
      %v432 = vunpack.c.l.bf16 %v400
      %v433 = vunpack.c.l.bf16 %v401
      %v434 = vunpack.c.l.bf16 %v402
      %v435 = vunpack.c.l.bf16 %v403
      %v436 = vunpack.c.l.bf16 %v404
      %v437 = vunpack.c.l.bf16 %v405
      %v438 = vunpack.c.l.bf16 %v406
      %v439 = vunpack.c.l.bf16 %v407
      %v440 = vunpack.c.l.bf16 %v408
      %v441 = vunpack.c.l.bf16 %v409
      %v442 = vunpack.c.l.bf16 %v410
      %v443 = vunpack.c.l.bf16 %v411
      %v444 = vunpack.c.l.bf16 %v412
      %v445 = vunpack.c.l.bf16 %v413
      %v446 = vunpack.c.l.bf16 %v414
      %v447 = vunpack.c.l.bf16 %v415
      %v448 = vunpack.c.l.bf16 %v416
      %v449 = vunpack.c.l.bf16 %v417
      %v450 = vunpack.c.l.bf16 %v418
      %v451 = vunpack.c.l.bf16 %v419
      %v452 = vld [vmem:[%s1] sm:$0x1]
      %v454 = vlaneseq
      %v455 = vshrl.u32 %v454, 7
      %v456 = vsub.s32 0, %v455
      %v457 = vrot.slane %v452, %v456
      %v459 = vmul.f32 %v420, %v457
      %v460 = vmul.f32 %v421, %v457
      %v461 = vmul.f32 %v422, %v457
      %v462 = vmul.f32 %v423, %v457
      %v463 = vmul.f32 %v424, %v457
      %v464 = vmul.f32 %v425, %v457
      %v465 = vmul.f32 %v426, %v457
      %v466 = vmul.f32 %v427, %v457
      %v467 = vmul.f32 %v428, %v457
      %v468 = vmul.f32 %v429, %v457
      %v469 = vmul.f32 %v430, %v457
      %v470 = vmul.f32 %v431, %v457
      %v471 = vmul.f32 %v432, %v457
      %v472 = vmul.f32 %v433, %v457
      %v473 = vmul.f32 %v434, %v457
      %v474 = vmul.f32 %v435, %v457
      %v475 = vmul.f32 %v436, %v457
      %v476 = vmul.f32 %v437, %v457
      %v477 = vmul.f32 %v438, %v457
      %v478 = vmul.f32 %v439, %v457
      %v479 = vmul.f32 %v440, %v457
      %v480 = vmul.f32 %v441, %v457
      %v481 = vmul.f32 %v442, %v457
      %v482 = vmul.f32 %v443, %v457
      %v483 = vmul.f32 %v444, %v457
      %v484 = vmul.f32 %v445, %v457
      %v485 = vmul.f32 %v446, %v457
      %v486 = vmul.f32 %v447, %v457
      %v487 = vmul.f32 %v448, %v457
      %v488 = vmul.f32 %v449, %v457
      %v489 = vmul.f32 %v450, %v457
      %v490 = vmul.f32 %v451, %v457
      %v491 = vld [vmem:[%s2] sm:$0x1]
      %v493 = vlaneseq
      %v494 = vshrl.u32 %v493, 7
      %v495 = vsub.s32 0, %v494
      %v496 = vrot.slane %v491, %v495
      %v498 = vadd.f32 %v459, %v496
      %v499 = vadd.f32 %v460, %v496
      %v500 = vadd.f32 %v461, %v496
      %v501 = vadd.f32 %v462, %v496
      %v502 = vadd.f32 %v463, %v496
      %v503 = vadd.f32 %v464, %v496
      %v504 = vadd.f32 %v465, %v496
      %v505 = vadd.f32 %v466, %v496
      %v506 = vadd.f32 %v467, %v496
      %v507 = vadd.f32 %v468, %v496
      %v508 = vadd.f32 %v469, %v496
      %v509 = vadd.f32 %v470, %v496
      %v510 = vadd.f32 %v471, %v496
      %v511 = vadd.f32 %v472, %v496
      %v512 = vadd.f32 %v473, %v496
      %v513 = vadd.f32 %v474, %v496
      %v514 = vadd.f32 %v475, %v496
      %v515 = vadd.f32 %v476, %v496
      %v516 = vadd.f32 %v477, %v496
      %v517 = vadd.f32 %v478, %v496
      %v518 = vadd.f32 %v479, %v496
      %v519 = vadd.f32 %v480, %v496
      %v520 = vadd.f32 %v481, %v496
      %v521 = vadd.f32 %v482, %v496
      %v522 = vadd.f32 %v483, %v496
      %v523 = vadd.f32 %v484, %v496
      %v524 = vadd.f32 %v485, %v496
      %v525 = vadd.f32 %v486, %v496
      %v526 = vadd.f32 %v487, %v496
      %v527 = vadd.f32 %v488, %v496
      %v528 = vadd.f32 %v489, %v496
      %v529 = vadd.f32 %v490, %v496
      %v530 = vmax.f32 %v498, 0.0
      %v531 = vmax.f32 %v499, 0.0
      %v532 = vmax.f32 %v500, 0.0
      %v533 = vmax.f32 %v501, 0.0
      %v534 = vmax.f32 %v502, 0.0
      %v535 = vmax.f32 %v503, 0.0
      %v536 = vmax.f32 %v504, 0.0
      %v537 = vmax.f32 %v505, 0.0
      %v538 = vmax.f32 %v506, 0.0
      %v539 = vmax.f32 %v507, 0.0
      %v540 = vmax.f32 %v508, 0.0
      %v541 = vmax.f32 %v509, 0.0
      %v542 = vmax.f32 %v510, 0.0
      %v543 = vmax.f32 %v511, 0.0
      %v544 = vmax.f32 %v512, 0.0
      %v545 = vmax.f32 %v513, 0.0
      %v546 = vmax.f32 %v514, 0.0
      %v547 = vmax.f32 %v515, 0.0
      %v548 = vmax.f32 %v516, 0.0
      %v549 = vmax.f32 %v517, 0.0
      %v550 = vmax.f32 %v518, 0.0
      %v551 = vmax.f32 %v519, 0.0
      %v552 = vmax.f32 %v520, 0.0
      %v553 = vmax.f32 %v521, 0.0
      %v554 = vmax.f32 %v522, 0.0
      %v555 = vmax.f32 %v523, 0.0
      %v556 = vmax.f32 %v524, 0.0
      %v557 = vmax.f32 %v525, 0.0
      %v558 = vmax.f32 %v526, 0.0
      %v559 = vmax.f32 %v527, 0.0
      %v560 = vmax.f32 %v528, 0.0
      %v561 = vmax.f32 %v529, 0.0
      %v562 = vpack.c.bf16 %v531, %v530
      %v563 = vpack.c.bf16 %v533, %v532
      %v564 = vpack.c.bf16 %v535, %v534
      %v565 = vpack.c.bf16 %v537, %v536
      %v566 = vpack.c.bf16 %v539, %v538
      %v567 = vpack.c.bf16 %v541, %v540
      %v568 = vpack.c.bf16 %v543, %v542
      %v569 = vpack.c.bf16 %v545, %v544
      %v570 = vpack.c.bf16 %v547, %v546
      %v571 = vpack.c.bf16 %v549, %v548
      %v572 = vpack.c.bf16 %v551, %v550
      %v573 = vpack.c.bf16 %v553, %v552
      %v574 = vpack.c.bf16 %v555, %v554
      %v575 = vpack.c.bf16 %v557, %v556
      %v576 = vpack.c.bf16 %v559, %v558
      %v577 = vpack.c.bf16 %v561, %v560
      %v578 = vld [vmem:[%s3] sm:$0x3]
      %v579 = vld [vmem:[%s4] sm:$0x1]
      %v581 = vlaneseq
      %v582 = vshrl.u32 %v581, 7
      %v583 = vsub.s32 0, %v582
      %v584 = vrot.slane %v579, %v583
      %vm586 = vcmask 31744
      %v588 = vsel %vm586, %v562, 0
      %v591 = vsel %vm586, %v563, 0
      %v594 = vsel %vm586, %v564, 0
      %v597 = vsel %vm586, %v565, 0
      %v600 = vsel %vm586, %v566, 0
      %v603 = vsel %vm586, %v567, 0
      %v606 = vsel %vm586, %v568, 0
      %v609 = vsel %vm586, %v569, 0
      %v612 = vsel %vm586, %v570, 0
      %v615 = vsel %vm586, %v571, 0
      %v618 = vsel %vm586, %v572, 0
      %v621 = vsel %vm586, %v573, 0
      %v624 = vsel %vm586, %v574, 0
      %v627 = vsel %vm586, %v575, 0
      %v630 = vsel %vm586, %v576, 0
      %v633 = vsel %vm586, %v577, 0
      %vm635 = vcmask 1041408
      %v637 = vsel %vm635, %v578, 0
      %639 = vmatprep.subr.bf16.mxu0 0
      %640 = vmatpush1.bf16.msra.mxu0 0
      %641 = vmatprep.subr.bf16.mxu0 0
      %642 = vmatpush1.bf16.msra.mxu0 0
      %643 = vmatprep.subr.bf16.mxu0 0
      %644 = vmatpush1.bf16.msra.mxu0 0
      %645 = vmatprep.subr.bf16.mxu0 0
      %646 = vmatpush1.bf16.msra.mxu0 0
      %647 = vmatprep.subr.bf16.mxu0 0
      %648 = vmatpush1.bf16.msra.mxu0 0
      %649 = vmatprep.subr.bf16.mxu0 0
      %650 = vmatpush1.bf16.msra.mxu0 0
      %651 = vmatprep.subr.bf16.mxu0 0
      %652 = vmatpush1.bf16.msra.mxu0 0
      %653 = vmatprep.subr.bf16.mxu0 0
      %654 = vmatpush1.bf16.msra.mxu0 %v637
      %655 = vmatprep.subr.bf16.mxu0 0
      %656 = vmatpush2.bf16.msra.mxu0 0
      %657 = vmatprep.subr.bf16.mxu0 0
      %658 = vmatpush2.bf16.msra.mxu0 0
      %659 = vmatprep.subr.bf16.mxu0 0
      %660 = vmatpush2.bf16.msra.mxu0 0
      %661 = vmatprep.subr.bf16.mxu0 0
      %662 = vmatpush2.bf16.msra.mxu0 0
      %663 = vmatprep.subr.bf16.mxu0 0
      %664 = vmatpush2.bf16.msra.mxu0 0
      %665 = vmatprep.subr.bf16.mxu0 0
      %666 = vmatpush2.bf16.msra.mxu0 0
      %667 = vmatprep.subr.bf16.mxu0 0
      %668 = vmatpush2.bf16.msra.mxu0 0
      %669 = vmatprep.subr.bf16.mxu0 0
      %670 = vmatpush2.bf16.msra.mxu0 0
      %671 = vmatprep.mubr.bf16.mxu0 0
      %672 = vmatmul.mubr.bf16.gmra.mxu0 %v588
      %v673 = vpop.f32.mrf.mxu0
      %v674 = vadd.f32 %v584, %v673
      %v675 = vpop.f32.mrf.mxu0
      %v676 = vpop.f32.mrf.mxu0
      %v677 = vadd.f32 %v584, %v676
      %v678 = vpop.f32.mrf.mxu0
      %679 = vmatprep.mubr.bf16.mxu0 0
      %680 = vmatmul.mubr.bf16.gmra.mxu0 %v591
      %v681 = vpop.f32.mrf.mxu0
      %v682 = vadd.f32 %v584, %v681
      %v683 = vpop.f32.mrf.mxu0
      %v684 = vpop.f32.mrf.mxu0
      %v685 = vadd.f32 %v584, %v684
      %v686 = vpop.f32.mrf.mxu0
      %687 = vmatprep.mubr.bf16.mxu0 0
      %688 = vmatmul.mubr.bf16.gmra.mxu0 %v594
      %v689 = vpop.f32.mrf.mxu0
      %v690 = vadd.f32 %v584, %v689
      %v691 = vpop.f32.mrf.mxu0
      %v692 = vpop.f32.mrf.mxu0
      %v693 = vadd.f32 %v584, %v692
      %v694 = vpop.f32.mrf.mxu0
      %695 = vmatprep.mubr.bf16.mxu0 0
      %696 = vmatmul.mubr.bf16.gmra.mxu0 %v597
      %v697 = vpop.f32.mrf.mxu0
      %v698 = vadd.f32 %v584, %v697
      %v699 = vpop.f32.mrf.mxu0
      %v700 = vpop.f32.mrf.mxu0
      %v701 = vadd.f32 %v584, %v700
      %v702 = vpop.f32.mrf.mxu0
      %703 = vmatprep.mubr.bf16.mxu0 0
      %704 = vmatmul.mubr.bf16.gmra.mxu0 %v600
      %v705 = vpop.f32.mrf.mxu0
      %v706 = vadd.f32 %v584, %v705
      %v707 = vpop.f32.mrf.mxu0
      %v708 = vpop.f32.mrf.mxu0
      %v709 = vadd.f32 %v584, %v708
      %v710 = vpop.f32.mrf.mxu0
      %711 = vmatprep.mubr.bf16.mxu0 0
      %712 = vmatmul.mubr.bf16.gmra.mxu0 %v603
      %v713 = vpop.f32.mrf.mxu0
      %v714 = vadd.f32 %v584, %v713
      %v715 = vpop.f32.mrf.mxu0
      %v716 = vpop.f32.mrf.mxu0
      %v717 = vadd.f32 %v584, %v716
      %v718 = vpop.f32.mrf.mxu0
      %719 = vmatprep.mubr.bf16.mxu0 0
      %720 = vmatmul.mubr.bf16.gmra.mxu0 %v606
      %v721 = vpop.f32.mrf.mxu0
      %v722 = vadd.f32 %v584, %v721
      %v723 = vpop.f32.mrf.mxu0
      %v724 = vpop.f32.mrf.mxu0
      %v725 = vadd.f32 %v584, %v724
      %v726 = vpop.f32.mrf.mxu0
      %727 = vmatprep.mubr.bf16.mxu0 0
      %728 = vmatmul.mubr.bf16.gmra.mxu0 %v609
      %v729 = vpop.f32.mrf.mxu0
      %v730 = vadd.f32 %v584, %v729
      %v731 = vpop.f32.mrf.mxu0
      %v732 = vpop.f32.mrf.mxu0
      %v733 = vadd.f32 %v584, %v732
      %v734 = vpop.f32.mrf.mxu0
      %735 = vmatprep.mubr.bf16.mxu0 0
      %736 = vmatmul.mubr.bf16.gmra.mxu0 %v612
      %v737 = vpop.f32.mrf.mxu0
      %v738 = vadd.f32 %v584, %v737
      %v739 = vpop.f32.mrf.mxu0
      %v740 = vpop.f32.mrf.mxu0
      %v741 = vadd.f32 %v584, %v740
      %v742 = vpop.f32.mrf.mxu0
      %743 = vmatprep.mubr.bf16.mxu0 0
      %744 = vmatmul.mubr.bf16.gmra.mxu0 %v615
      %v745 = vpop.f32.mrf.mxu0
      %v746 = vadd.f32 %v584, %v745
      %v747 = vpop.f32.mrf.mxu0
      %v748 = vpop.f32.mrf.mxu0
      %v749 = vadd.f32 %v584, %v748
      %v750 = vpop.f32.mrf.mxu0
      %751 = vmatprep.mubr.bf16.mxu0 0
      %752 = vmatmul.mubr.bf16.gmra.mxu0 %v618
      %v753 = vpop.f32.mrf.mxu0
      %v754 = vadd.f32 %v584, %v753
      %v755 = vpop.f32.mrf.mxu0
      %v756 = vpop.f32.mrf.mxu0
      %v757 = vadd.f32 %v584, %v756
      %v758 = vpop.f32.mrf.mxu0
      %759 = vmatprep.mubr.bf16.mxu0 0
      %760 = vmatmul.mubr.bf16.gmra.mxu0 %v621
      %v761 = vpop.f32.mrf.mxu0
      %v762 = vadd.f32 %v584, %v761
      %v763 = vpop.f32.mrf.mxu0
      %v764 = vpop.f32.mrf.mxu0
      %v765 = vadd.f32 %v584, %v764
      %v766 = vpop.f32.mrf.mxu0
      %767 = vmatprep.mubr.bf16.mxu0 0
      %768 = vmatmul.mubr.bf16.gmra.mxu0 %v624
      %v769 = vpop.f32.mrf.mxu0
      %v770 = vadd.f32 %v584, %v769
      %v771 = vpop.f32.mrf.mxu0
      %v772 = vpop.f32.mrf.mxu0
      %v773 = vadd.f32 %v584, %v772
      %v774 = vpop.f32.mrf.mxu0
      %775 = vmatprep.mubr.bf16.mxu0 0
      %776 = vmatmul.mubr.bf16.gmra.mxu0 %v627
      %v777 = vpop.f32.mrf.mxu0
      %v778 = vadd.f32 %v584, %v777
      %v779 = vpop.f32.mrf.mxu0
      %v780 = vpop.f32.mrf.mxu0
      %v781 = vadd.f32 %v584, %v780
      %v782 = vpop.f32.mrf.mxu0
      %783 = vmatprep.mubr.bf16.mxu0 0
      %784 = vmatmul.mubr.bf16.gmra.mxu0 %v630
      %v785 = vpop.f32.mrf.mxu0
      %v786 = vadd.f32 %v584, %v785
      %v787 = vpop.f32.mrf.mxu0
      %v788 = vpop.f32.mrf.mxu0
      %v789 = vadd.f32 %v584, %v788
      %v790 = vpop.f32.mrf.mxu0
      %791 = vmatprep.mubr.bf16.mxu0 0
      %792 = vmatmul.mubr.bf16.gmra.mxu0 %v633
      %v793 = vpop.f32.mrf.mxu0
      %v794 = vadd.f32 %v584, %v793
      %v795 = vpop.f32.mrf.mxu0
      %v796 = vpop.f32.mrf.mxu0
      %v797 = vadd.f32 %v584, %v796
      %v798 = vpop.f32.mrf.mxu0
      %799 = vdwg.mxu0
      %v800 = vmax.f32 %v674, 0.0
      %v801 = vmax.f32 %v677, 0.0
      %v802 = vmax.f32 %v682, 0.0
      %v803 = vmax.f32 %v685, 0.0
      %v804 = vmax.f32 %v690, 0.0
      %v805 = vmax.f32 %v693, 0.0
      %v806 = vmax.f32 %v698, 0.0
      %v807 = vmax.f32 %v701, 0.0
      %v808 = vmax.f32 %v706, 0.0
      %v809 = vmax.f32 %v709, 0.0
      %v810 = vmax.f32 %v714, 0.0
      %v811 = vmax.f32 %v717, 0.0
      %v812 = vmax.f32 %v722, 0.0
      %v813 = vmax.f32 %v725, 0.0
      %v814 = vmax.f32 %v730, 0.0
      %v815 = vmax.f32 %v733, 0.0
      %v816 = vmax.f32 %v738, 0.0
      %v817 = vmax.f32 %v741, 0.0
      %v818 = vmax.f32 %v746, 0.0
      %v819 = vmax.f32 %v749, 0.0
      %v820 = vmax.f32 %v754, 0.0
      %v821 = vmax.f32 %v757, 0.0
      %v822 = vmax.f32 %v762, 0.0
      %v823 = vmax.f32 %v765, 0.0
      %v824 = vmax.f32 %v770, 0.0
      %v825 = vmax.f32 %v773, 0.0
      %v826 = vmax.f32 %v778, 0.0
      %v827 = vmax.f32 %v781, 0.0
      %v828 = vmax.f32 %v786, 0.0
      %v829 = vmax.f32 %v789, 0.0
      %v830 = vmax.f32 %v794, 0.0
      %v831 = vmax.f32 %v797, 0.0
      %vm832 = vcmask 27648
      %833 = vst.msk [vmem:[#allocation2] sm:$0xf] %vm832, 0
      %834 = vst.msk [vmem:[#allocation2 + $0x4] sm:$0xf] %vm832, 0
      %835 = vst.msk [vmem:[#allocation2 + $0x8] sm:$0xf] %vm832, 0
      %836 = vst.msk [vmem:[#allocation2 + $0xc] sm:$0xf] %vm832, 0
      %837 = vst.msk [vmem:[#allocation2 + $0x90] sm:$0xf] %vm832, 0
      %838 = vst.msk [vmem:[#allocation2 + $0x94] sm:$0xf] %vm832, 0
      %839 = vst.msk [vmem:[#allocation2 + $0x98] sm:$0xf] %vm832, 0
      %840 = vst.msk [vmem:[#allocation2 + $0x9c] sm:$0xf] %vm832, 0
      %v841 = vpack.c.bf16 %v801, %v800
      %v842 = vpack.c.bf16 %v803, %v802
      %v843 = vpack.c.bf16 %v805, %v804
      %v844 = vpack.c.bf16 %v807, %v806
      %v845 = vpack.c.bf16 %v809, %v808
      %v846 = vpack.c.bf16 %v811, %v810
      %v847 = vpack.c.bf16 %v813, %v812
      %v848 = vpack.c.bf16 %v815, %v814
      %v849 = vpack.c.bf16 %v817, %v816
      %v850 = vpack.c.bf16 %v819, %v818
      %v851 = vpack.c.bf16 %v821, %v820
      %v852 = vpack.c.bf16 %v823, %v822
      %v853 = vpack.c.bf16 %v825, %v824
      %v854 = vpack.c.bf16 %v827, %v826
      %v855 = vpack.c.bf16 %v829, %v828
      %v856 = vpack.c.bf16 %v831, %v830
      %v873 = vunpack.c.l.b16 %v841
      %v874 = vunpack.c.h.b16 %v841
      %v875 = vunpack.c.l.b16 %v842
      %v876 = vunpack.c.h.b16 %v842
      %v877 = vunpack.c.l.b16 %v843
      %v878 = vunpack.c.h.b16 %v843
      %v879 = vunpack.c.l.b16 %v844
      %v880 = vunpack.c.h.b16 %v844
      %v881 = vunpack.c.l.b16 %v845
      %v882 = vunpack.c.h.b16 %v845
      %v883 = vunpack.c.l.b16 %v846
      %v884 = vunpack.c.h.b16 %v846
      %v885 = vunpack.c.l.b16 %v847
      %v886 = vunpack.c.h.b16 %v847
      %v887 = vunpack.c.l.b16 %v848
      %v888 = vunpack.c.h.b16 %v848
      %v889 = vunpack.c.l.b16 %v849
      %v890 = vunpack.c.h.b16 %v849
      %v891 = vunpack.c.l.b16 %v850
      %v892 = vunpack.c.h.b16 %v850
      %v893 = vunpack.c.l.b16 %v851
      %v894 = vunpack.c.h.b16 %v851
      %v895 = vunpack.c.l.b16 %v852
      %v896 = vunpack.c.h.b16 %v852
      %v897 = vunpack.c.l.b16 %v853
      %v898 = vunpack.c.h.b16 %v853
      %v899 = vunpack.c.l.b16 %v854
      %v900 = vunpack.c.h.b16 %v854
      %v901 = vunpack.c.l.b16 %v855
      %v902 = vunpack.c.h.b16 %v855
      %v903 = vunpack.c.l.b16 %v856
      %v904 = vunpack.c.h.b16 %v856
      %v905 = vpack.c.b16 %v873, %v873
      %v906 = vpack.c.b16 %v874, %v874
      %v907 = vpack.c.b16 %v875, %v875
      %v908 = vpack.c.b16 %v876, %v876
      %v909 = vpack.c.b16 %v877, %v877
      %v910 = vpack.c.b16 %v878, %v878
      %v911 = vpack.c.b16 %v879, %v879
      %v912 = vpack.c.b16 %v880, %v880
      %v913 = vpack.c.b16 %v881, %v881
      %v914 = vpack.c.b16 %v882, %v882
      %v915 = vpack.c.b16 %v883, %v883
      %v916 = vpack.c.b16 %v884, %v884
      %v917 = vpack.c.b16 %v885, %v885
      %v918 = vpack.c.b16 %v886, %v886
      %v919 = vpack.c.b16 %v887, %v887
      %v920 = vpack.c.b16 %v888, %v888
      %v921 = vpack.c.b16 %v889, %v889
      %v922 = vpack.c.b16 %v890, %v890
      %v923 = vpack.c.b16 %v891, %v891
      %v924 = vpack.c.b16 %v892, %v892
      %v925 = vpack.c.b16 %v893, %v893
      %v926 = vpack.c.b16 %v894, %v894
      %v927 = vpack.c.b16 %v895, %v895
      %v928 = vpack.c.b16 %v896, %v896
      %v929 = vpack.c.b16 %v897, %v897
      %v930 = vpack.c.b16 %v898, %v898
      %v931 = vpack.c.b16 %v899, %v899
      %v932 = vpack.c.b16 %v900, %v900
      %v933 = vpack.c.b16 %v901, %v901
      %v934 = vpack.c.b16 %v902, %v902
      %v935 = vpack.c.b16 %v903, %v903
      %v936 = vpack.c.b16 %v904, %v904
      %969 = vst.msk [vmem:[#allocation2 + $0x10] sm:$0xf] %vm832, %v905
      %970 = vst.msk [vmem:[#allocation2 + $0x14] sm:$0xf] %vm832, %v906
      %971 = vst.msk [vmem:[#allocation2 + $0x18] sm:$0xf] %vm832, %v907
      %972 = vst.msk [vmem:[#allocation2 + $0x1c] sm:$0xf] %vm832, %v908
      %973 = vst.msk [vmem:[#allocation2 + $0x20] sm:$0xf] %vm832, %v909
      %974 = vst.msk [vmem:[#allocation2 + $0x24] sm:$0xf] %vm832, %v910
      %975 = vst.msk [vmem:[#allocation2 + $0x28] sm:$0xf] %vm832, %v911
      %976 = vst.msk [vmem:[#allocation2 + $0x2c] sm:$0xf] %vm832, %v912
      %977 = vst.msk [vmem:[#allocation2 + $0x30] sm:$0xf] %vm832, %v913
      %978 = vst.msk [vmem:[#allocation2 + $0x34] sm:$0xf] %vm832, %v914
      %979 = vst.msk [vmem:[#allocation2 + $0x38] sm:$0xf] %vm832, %v915
      %980 = vst.msk [vmem:[#allocation2 + $0x3c] sm:$0xf] %vm832, %v916
      %981 = vst.msk [vmem:[#allocation2 + $0x40] sm:$0xf] %vm832, %v917
      %982 = vst.msk [vmem:[#allocation2 + $0x44] sm:$0xf] %vm832, %v918
      %983 = vst.msk [vmem:[#allocation2 + $0x48] sm:$0xf] %vm832, %v919
      %984 = vst.msk [vmem:[#allocation2 + $0x4c] sm:$0xf] %vm832, %v920
      %985 = vst.msk [vmem:[#allocation2 + $0x50] sm:$0xf] %vm832, %v921
      %986 = vst.msk [vmem:[#allocation2 + $0x54] sm:$0xf] %vm832, %v922
      %987 = vst.msk [vmem:[#allocation2 + $0x58] sm:$0xf] %vm832, %v923
      %988 = vst.msk [vmem:[#allocation2 + $0x5c] sm:$0xf] %vm832, %v924
      %989 = vst.msk [vmem:[#allocation2 + $0x60] sm:$0xf] %vm832, %v925
      %990 = vst.msk [vmem:[#allocation2 + $0x64] sm:$0xf] %vm832, %v926
      %991 = vst.msk [vmem:[#allocation2 + $0x68] sm:$0xf] %vm832, %v927
      %992 = vst.msk [vmem:[#allocation2 + $0x6c] sm:$0xf] %vm832, %v928
      %993 = vst.msk [vmem:[#allocation2 + $0x70] sm:$0xf] %vm832, %v929
      %994 = vst.msk [vmem:[#allocation2 + $0x74] sm:$0xf] %vm832, %v930
      %995 = vst.msk [vmem:[#allocation2 + $0x78] sm:$0xf] %vm832, %v931
      %996 = vst.msk [vmem:[#allocation2 + $0x7c] sm:$0xf] %vm832, %v932
      %997 = vst.msk [vmem:[#allocation2 + $0x80] sm:$0xf] %vm832, %v933
      %998 = vst.msk [vmem:[#allocation2 + $0x84] sm:$0xf] %vm832, %v934
      %999 = vst.msk [vmem:[#allocation2 + $0x88] sm:$0xf] %vm832, %v935
      %1000 = vst.msk [vmem:[#allocation2 + $0x8c] sm:$0xf] %vm832, %v936
      %v1001 = vlaneseq
      %v1002 = vshrl.u32 %v1001, 7
      %v1003 = vadd.s32 %v1002, 8
      %v1004 = vadd.s32 %v1002, 16
      %v1005 = vadd.s32 %v1002, 24
      %v1006 = vadd.s32 %v1002, 32
      %v1007 = vadd.s32 %v1002, 40
      %v1008 = vadd.s32 %v1002, 48
      %v1009 = vadd.s32 %v1002, 56
      %v1010 = vadd.s32 %v1002, 64
      %v1011 = vadd.s32 %v1002, 72
      %v1012 = vadd.s32 %v1002, 80
      %v1013 = vadd.s32 %v1002, 88
      %v1014 = vadd.s32 %v1002, 96
      %v1015 = vadd.s32 %v1002, 104
      %v1016 = vadd.s32 %v1002, 112
      %v1017 = vadd.s32 %v1002, 120
      %v1018 = vadd.s32 %v1002, 128
      %v1019 = vadd.s32 %v1002, 136
      %v1020 = vadd.s32 %v1002, 144
      %v1021 = vadd.s32 %v1002, 152
      %v1022 = vadd.s32 %v1002, 160
      %v1023 = vadd.s32 %v1002, 168
      %v1024 = vadd.s32 %v1002, 176
      %v1025 = vadd.s32 %v1002, 184
      %v1026 = vadd.s32 %v1002, 192
      %v1027 = vadd.s32 %v1002, 200
      %v1028 = vadd.s32 %v1002, 208
      %v1029 = vadd.s32 %v1002, 216
      %v1030 = vadd.s32 %v1002, 224
      %v1031 = vadd.s32 %v1002, 232
      %v1032 = vadd.s32 %v1002, 240
      %v1033 = vadd.s32 %v1002, 248
      %vm1034 = vcmp.lt.s32.totalorder %v1002, 0
      %v1035 = vsub.s32 0, %v1002
      %v1036 = vsel %vm1034, %v1035, %v1002
      %v1037 = vshrl.u32 %v1036, 4
      %v1038 = vand.u32 %v1036, 15
      %v1039 = vsub.s32 0, %v1038
      %v1040 = vsel %vm1034, %v1039, %v1038
      %vm1041 = vcmp.lt.s32.totalorder %v1003, 0
      %v1042 = vsub.s32 0, %v1003
      %v1043 = vsel %vm1041, %v1042, %v1003
      %v1044 = vshrl.u32 %v1043, 4
      %v1045 = vand.u32 %v1043, 15
      %v1046 = vsub.s32 0, %v1045
      %v1047 = vsel %vm1041, %v1046, %v1045
      %vm1048 = vcmp.lt.s32.totalorder %v1004, 0
      %v1049 = vsub.s32 0, %v1004
      %v1050 = vsel %vm1048, %v1049, %v1004
      %v1051 = vshrl.u32 %v1050, 4
      %v1052 = vand.u32 %v1050, 15
      %v1053 = vsub.s32 0, %v1052
      %v1054 = vsel %vm1048, %v1053, %v1052
      %vm1055 = vcmp.lt.s32.totalorder %v1005, 0
      %v1056 = vsub.s32 0, %v1005
      %v1057 = vsel %vm1055, %v1056, %v1005
      %v1058 = vshrl.u32 %v1057, 4
      %v1059 = vand.u32 %v1057, 15
      %v1060 = vsub.s32 0, %v1059
      %v1061 = vsel %vm1055, %v1060, %v1059
      %vm1062 = vcmp.lt.s32.totalorder %v1006, 0
      %v1063 = vsub.s32 0, %v1006
      %v1064 = vsel %vm1062, %v1063, %v1006
      %v1065 = vshrl.u32 %v1064, 4
      %v1066 = vand.u32 %v1064, 15
      %v1067 = vsub.s32 0, %v1066
      %v1068 = vsel %vm1062, %v1067, %v1066
      %vm1069 = vcmp.lt.s32.totalorder %v1007, 0
      %v1070 = vsub.s32 0, %v1007
      %v1071 = vsel %vm1069, %v1070, %v1007
      %v1072 = vshrl.u32 %v1071, 4
      %v1073 = vand.u32 %v1071, 15
      %v1074 = vsub.s32 0, %v1073
      %v1075 = vsel %vm1069, %v1074, %v1073
      %vm1076 = vcmp.lt.s32.totalorder %v1008, 0
      %v1077 = vsub.s32 0, %v1008
      %v1078 = vsel %vm1076, %v1077, %v1008
      %v1079 = vshrl.u32 %v1078, 4
      %v1080 = vand.u32 %v1078, 15
      %v1081 = vsub.s32 0, %v1080
      %v1082 = vsel %vm1076, %v1081, %v1080
      %vm1083 = vcmp.lt.s32.totalorder %v1009, 0
      %v1084 = vsub.s32 0, %v1009
      %v1085 = vsel %vm1083, %v1084, %v1009
      %v1086 = vshrl.u32 %v1085, 4
      %v1087 = vand.u32 %v1085, 15
      %v1088 = vsub.s32 0, %v1087
      %v1089 = vsel %vm1083, %v1088, %v1087
      %vm1090 = vcmp.lt.s32.totalorder %v1010, 0
      %v1091 = vsub.s32 0, %v1010
      %v1092 = vsel %vm1090, %v1091, %v1010
      %v1093 = vshrl.u32 %v1092, 4
      %v1094 = vand.u32 %v1092, 15
      %v1095 = vsub.s32 0, %v1094
      %v1096 = vsel %vm1090, %v1095, %v1094
      %vm1097 = vcmp.lt.s32.totalorder %v1011, 0
      %v1098 = vsub.s32 0, %v1011
      %v1099 = vsel %vm1097, %v1098, %v1011
      %v1100 = vshrl.u32 %v1099, 4
      %v1101 = vand.u32 %v1099, 15
      %v1102 = vsub.s32 0, %v1101
      %v1103 = vsel %vm1097, %v1102, %v1101
      %vm1104 = vcmp.lt.s32.totalorder %v1012, 0
      %v1105 = vsub.s32 0, %v1012
      %v1106 = vsel %vm1104, %v1105, %v1012
      %v1107 = vshrl.u32 %v1106, 4
      %v1108 = vand.u32 %v1106, 15
      %v1109 = vsub.s32 0, %v1108
      %v1110 = vsel %vm1104, %v1109, %v1108
      %vm1111 = vcmp.lt.s32.totalorder %v1013, 0
      %v1112 = vsub.s32 0, %v1013
      %v1113 = vsel %vm1111, %v1112, %v1013
      %v1114 = vshrl.u32 %v1113, 4
      %v1115 = vand.u32 %v1113, 15
      %v1116 = vsub.s32 0, %v1115
      %v1117 = vsel %vm1111, %v1116, %v1115
      %vm1118 = vcmp.lt.s32.totalorder %v1014, 0
      %v1119 = vsub.s32 0, %v1014
      %v1120 = vsel %vm1118, %v1119, %v1014
      %v1121 = vshrl.u32 %v1120, 4
      %v1122 = vand.u32 %v1120, 15
      %v1123 = vsub.s32 0, %v1122
      %v1124 = vsel %vm1118, %v1123, %v1122
      %vm1125 = vcmp.lt.s32.totalorder %v1015, 0
      %v1126 = vsub.s32 0, %v1015
      %v1127 = vsel %vm1125, %v1126, %v1015
      %v1128 = vshrl.u32 %v1127, 4
      %v1129 = vand.u32 %v1127, 15
      %v1130 = vsub.s32 0, %v1129
      %v1131 = vsel %vm1125, %v1130, %v1129
      %vm1132 = vcmp.lt.s32.totalorder %v1016, 0
      %v1133 = vsub.s32 0, %v1016
      %v1134 = vsel %vm1132, %v1133, %v1016
      %v1135 = vshrl.u32 %v1134, 4
      %v1136 = vand.u32 %v1134, 15
      %v1137 = vsub.s32 0, %v1136
      %v1138 = vsel %vm1132, %v1137, %v1136
      %vm1139 = vcmp.lt.s32.totalorder %v1017, 0
      %v1140 = vsub.s32 0, %v1017
      %v1141 = vsel %vm1139, %v1140, %v1017
      %v1142 = vshrl.u32 %v1141, 4
      %v1143 = vand.u32 %v1141, 15
      %v1144 = vsub.s32 0, %v1143
      %v1145 = vsel %vm1139, %v1144, %v1143
      %vm1146 = vcmp.lt.s32.totalorder %v1018, 0
      %v1147 = vsub.s32 0, %v1018
      %v1148 = vsel %vm1146, %v1147, %v1018
      %v1149 = vshrl.u32 %v1148, 4
      %v1150 = vand.u32 %v1148, 15
      %v1151 = vsub.s32 0, %v1150
      %v1152 = vsel %vm1146, %v1151, %v1150
      %vm1153 = vcmp.lt.s32.totalorder %v1019, 0
      %v1154 = vsub.s32 0, %v1019
      %v1155 = vsel %vm1153, %v1154, %v1019
      %v1156 = vshrl.u32 %v1155, 4
      %v1157 = vand.u32 %v1155, 15
      %v1158 = vsub.s32 0, %v1157
      %v1159 = vsel %vm1153, %v1158, %v1157
      %vm1160 = vcmp.lt.s32.totalorder %v1020, 0
      %v1161 = vsub.s32 0, %v1020
      %v1162 = vsel %vm1160, %v1161, %v1020
      %v1163 = vshrl.u32 %v1162, 4
      %v1164 = vand.u32 %v1162, 15
      %v1165 = vsub.s32 0, %v1164
      %v1166 = vsel %vm1160, %v1165, %v1164
      %vm1167 = vcmp.lt.s32.totalorder %v1021, 0
      %v1168 = vsub.s32 0, %v1021
      %v1169 = vsel %vm1167, %v1168, %v1021
      %v1170 = vshrl.u32 %v1169, 4
      %v1171 = vand.u32 %v1169, 15
      %v1172 = vsub.s32 0, %v1171
      %v1173 = vsel %vm1167, %v1172, %v1171
      %vm1174 = vcmp.lt.s32.totalorder %v1022, 0
      %v1175 = vsub.s32 0, %v1022
      %v1176 = vsel %vm1174, %v1175, %v1022
      %v1177 = vshrl.u32 %v1176, 4
      %v1178 = vand.u32 %v1176, 15
      %v1179 = vsub.s32 0, %v1178
      %v1180 = vsel %vm1174, %v1179, %v1178
      %vm1181 = vcmp.lt.s32.totalorder %v1023, 0
      %v1182 = vsub.s32 0, %v1023
      %v1183 = vsel %vm1181, %v1182, %v1023
      %v1184 = vshrl.u32 %v1183, 4
      %v1185 = vand.u32 %v1183, 15
      %v1186 = vsub.s32 0, %v1185
      %v1187 = vsel %vm1181, %v1186, %v1185
      %vm1188 = vcmp.lt.s32.totalorder %v1024, 0
      %v1189 = vsub.s32 0, %v1024
      %v1190 = vsel %vm1188, %v1189, %v1024
      %v1191 = vshrl.u32 %v1190, 4
      %v1192 = vand.u32 %v1190, 15
      %v1193 = vsub.s32 0, %v1192
      %v1194 = vsel %vm1188, %v1193, %v1192
      %vm1195 = vcmp.lt.s32.totalorder %v1025, 0
      %v1196 = vsub.s32 0, %v1025
      %v1197 = vsel %vm1195, %v1196, %v1025
      %v1198 = vshrl.u32 %v1197, 4
      %v1199 = vand.u32 %v1197, 15
      %v1200 = vsub.s32 0, %v1199
      %v1201 = vsel %vm1195, %v1200, %v1199
      %vm1202 = vcmp.lt.s32.totalorder %v1026, 0
      %v1203 = vsub.s32 0, %v1026
      %v1204 = vsel %vm1202, %v1203, %v1026
      %v1205 = vshrl.u32 %v1204, 4
      %v1206 = vand.u32 %v1204, 15
      %v1207 = vsub.s32 0, %v1206
      %v1208 = vsel %vm1202, %v1207, %v1206
      %vm1209 = vcmp.lt.s32.totalorder %v1027, 0
      %v1210 = vsub.s32 0, %v1027
      %v1211 = vsel %vm1209, %v1210, %v1027
      %v1212 = vshrl.u32 %v1211, 4
      %v1213 = vand.u32 %v1211, 15
      %v1214 = vsub.s32 0, %v1213
      %v1215 = vsel %vm1209, %v1214, %v1213
      %vm1216 = vcmp.lt.s32.totalorder %v1028, 0
      %v1217 = vsub.s32 0, %v1028
      %v1218 = vsel %vm1216, %v1217, %v1028
      %v1219 = vshrl.u32 %v1218, 4
      %v1220 = vand.u32 %v1218, 15
      %v1221 = vsub.s32 0, %v1220
      %v1222 = vsel %vm1216, %v1221, %v1220
      %vm1223 = vcmp.lt.s32.totalorder %v1029, 0
      %v1224 = vsub.s32 0, %v1029
      %v1225 = vsel %vm1223, %v1224, %v1029
      %v1226 = vshrl.u32 %v1225, 4
      %v1227 = vand.u32 %v1225, 15
      %v1228 = vsub.s32 0, %v1227
      %v1229 = vsel %vm1223, %v1228, %v1227
      %vm1230 = vcmp.lt.s32.totalorder %v1030, 0
      %v1231 = vsub.s32 0, %v1030
      %v1232 = vsel %vm1230, %v1231, %v1030
      %v1233 = vshrl.u32 %v1232, 4
      %v1234 = vand.u32 %v1232, 15
      %v1235 = vsub.s32 0, %v1234
      %v1236 = vsel %vm1230, %v1235, %v1234
      %vm1237 = vcmp.lt.s32.totalorder %v1031, 0
      %v1238 = vsub.s32 0, %v1031
      %v1239 = vsel %vm1237, %v1238, %v1031
      %v1240 = vshrl.u32 %v1239, 4
      %v1241 = vand.u32 %v1239, 15
      %v1242 = vsub.s32 0, %v1241
      %v1243 = vsel %vm1237, %v1242, %v1241
      %vm1244 = vcmp.lt.s32.totalorder %v1032, 0
      %v1245 = vsub.s32 0, %v1032
      %v1246 = vsel %vm1244, %v1245, %v1032
      %v1247 = vshrl.u32 %v1246, 4
      %v1248 = vand.u32 %v1246, 15
      %v1249 = vsub.s32 0, %v1248
      %v1250 = vsel %vm1244, %v1249, %v1248
      %vm1251 = vcmp.lt.s32.totalorder %v1033, 0
      %v1252 = vsub.s32 0, %v1033
      %v1253 = vsel %vm1251, %v1252, %v1033
      %v1254 = vshrl.u32 %v1253, 4
      %v1255 = vand.u32 %v1253, 15
      %v1256 = vsub.s32 0, %v1255
      %v1257 = vsel %vm1251, %v1256, %v1255
      %vm1258 = vcmp.ne.s32.totalorder %v1040, 0
      %vm1259 = vcmp.ne.s32.totalorder %v1047, 0
      %vm1260 = vcmp.ne.s32.totalorder %v1054, 0
      %vm1261 = vcmp.ne.s32.totalorder %v1061, 0
      %vm1262 = vcmp.ne.s32.totalorder %v1068, 0
      %vm1263 = vcmp.ne.s32.totalorder %v1075, 0
      %vm1264 = vcmp.ne.s32.totalorder %v1082, 0
      %vm1265 = vcmp.ne.s32.totalorder %v1089, 0
      %vm1266 = vcmp.ne.s32.totalorder %v1096, 0
      %vm1267 = vcmp.ne.s32.totalorder %v1103, 0
      %vm1268 = vcmp.ne.s32.totalorder %v1110, 0
      %vm1269 = vcmp.ne.s32.totalorder %v1117, 0
      %vm1270 = vcmp.ne.s32.totalorder %v1124, 0
      %vm1271 = vcmp.ne.s32.totalorder %v1131, 0
      %vm1272 = vcmp.ne.s32.totalorder %v1138, 0
      %vm1273 = vcmp.ne.s32.totalorder %v1145, 0
      %vm1274 = vcmp.ne.s32.totalorder %v1152, 0
      %vm1275 = vcmp.ne.s32.totalorder %v1159, 0
      %vm1276 = vcmp.ne.s32.totalorder %v1166, 0
      %vm1277 = vcmp.ne.s32.totalorder %v1173, 0
      %vm1278 = vcmp.ne.s32.totalorder %v1180, 0
      %vm1279 = vcmp.ne.s32.totalorder %v1187, 0
      %vm1280 = vcmp.ne.s32.totalorder %v1194, 0
      %vm1281 = vcmp.ne.s32.totalorder %v1201, 0
      %vm1282 = vcmp.ne.s32.totalorder %v1208, 0
      %vm1283 = vcmp.ne.s32.totalorder %v1215, 0
      %vm1284 = vcmp.ne.s32.totalorder %v1222, 0
      %vm1285 = vcmp.ne.s32.totalorder %v1229, 0
      %vm1286 = vcmp.ne.s32.totalorder %v1236, 0
      %vm1287 = vcmp.ne.s32.totalorder %v1243, 0
      %vm1288 = vcmp.ne.s32.totalorder %v1250, 0
      %vm1289 = vcmp.ne.s32.totalorder %v1257, 0
      %vm1290 = vcmp.lt.s32.totalorder %v1040, 0
      %vm1291 = vcmp.lt.s32.totalorder %v1047, 0
      %vm1292 = vcmp.lt.s32.totalorder %v1054, 0
      %vm1293 = vcmp.lt.s32.totalorder %v1061, 0
      %vm1294 = vcmp.lt.s32.totalorder %v1068, 0
      %vm1295 = vcmp.lt.s32.totalorder %v1075, 0
      %vm1296 = vcmp.lt.s32.totalorder %v1082, 0
      %vm1297 = vcmp.lt.s32.totalorder %v1089, 0
      %vm1298 = vcmp.lt.s32.totalorder %v1096, 0
      %vm1299 = vcmp.lt.s32.totalorder %v1103, 0
      %vm1300 = vcmp.lt.s32.totalorder %v1110, 0
      %vm1301 = vcmp.lt.s32.totalorder %v1117, 0
      %vm1302 = vcmp.lt.s32.totalorder %v1124, 0
      %vm1303 = vcmp.lt.s32.totalorder %v1131, 0
      %vm1304 = vcmp.lt.s32.totalorder %v1138, 0
      %vm1305 = vcmp.lt.s32.totalorder %v1145, 0
      %vm1306 = vcmp.lt.s32.totalorder %v1152, 0
      %vm1307 = vcmp.lt.s32.totalorder %v1159, 0
      %vm1308 = vcmp.lt.s32.totalorder %v1166, 0
      %vm1309 = vcmp.lt.s32.totalorder %v1173, 0
      %vm1310 = vcmp.lt.s32.totalorder %v1180, 0
      %vm1311 = vcmp.lt.s32.totalorder %v1187, 0
      %vm1312 = vcmp.lt.s32.totalorder %v1194, 0
      %vm1313 = vcmp.lt.s32.totalorder %v1201, 0
      %vm1314 = vcmp.lt.s32.totalorder %v1208, 0
      %vm1315 = vcmp.lt.s32.totalorder %v1215, 0
      %vm1316 = vcmp.lt.s32.totalorder %v1222, 0
      %vm1317 = vcmp.lt.s32.totalorder %v1229, 0
      %vm1318 = vcmp.lt.s32.totalorder %v1236, 0
      %vm1319 = vcmp.lt.s32.totalorder %v1243, 0
      %vm1320 = vcmp.lt.s32.totalorder %v1250, 0
      %vm1321 = vcmp.lt.s32.totalorder %v1257, 0
      %vm1322 = vmand %vm1290, %vm1258
      %vm1323 = vmand %vm1291, %vm1259
      %vm1324 = vmand %vm1292, %vm1260
      %vm1325 = vmand %vm1293, %vm1261
      %vm1326 = vmand %vm1294, %vm1262
      %vm1327 = vmand %vm1295, %vm1263
      %vm1328 = vmand %vm1296, %vm1264
      %vm1329 = vmand %vm1297, %vm1265
      %vm1330 = vmand %vm1298, %vm1266
      %vm1331 = vmand %vm1299, %vm1267
      %vm1332 = vmand %vm1300, %vm1268
      %vm1333 = vmand %vm1301, %vm1269
      %vm1334 = vmand %vm1302, %vm1270
      %vm1335 = vmand %vm1303, %vm1271
      %vm1336 = vmand %vm1304, %vm1272
      %vm1337 = vmand %vm1305, %vm1273
      %vm1338 = vmand %vm1306, %vm1274
      %vm1339 = vmand %vm1307, %vm1275
      %vm1340 = vmand %vm1308, %vm1276
      %vm1341 = vmand %vm1309, %vm1277
      %vm1342 = vmand %vm1310, %vm1278
      %vm1343 = vmand %vm1311, %vm1279
      %vm1344 = vmand %vm1312, %vm1280
      %vm1345 = vmand %vm1313, %vm1281
      %vm1346 = vmand %vm1314, %vm1282
      %vm1347 = vmand %vm1315, %vm1283
      %vm1348 = vmand %vm1316, %vm1284
      %vm1349 = vmand %vm1317, %vm1285
      %vm1350 = vmand %vm1318, %vm1286
      %vm1351 = vmand %vm1319, %vm1287
      %vm1352 = vmand %vm1320, %vm1288
      %vm1353 = vmand %vm1321, %vm1289
      %v1354 = vadd.s32 %v1040, 16
      %v1355 = vadd.s32 %v1047, 16
      %v1356 = vadd.s32 %v1054, 16
      %v1357 = vadd.s32 %v1061, 16
      %v1358 = vadd.s32 %v1068, 16
      %v1359 = vadd.s32 %v1075, 16
      %v1360 = vadd.s32 %v1082, 16
      %v1361 = vadd.s32 %v1089, 16
      %v1362 = vadd.s32 %v1096, 16
      %v1363 = vadd.s32 %v1103, 16
      %v1364 = vadd.s32 %v1110, 16
      %v1365 = vadd.s32 %v1117, 16
      %v1366 = vadd.s32 %v1124, 16
      %v1367 = vadd.s32 %v1131, 16
      %v1368 = vadd.s32 %v1138, 16
      %v1369 = vadd.s32 %v1145, 16
      %v1370 = vadd.s32 %v1152, 16
      %v1371 = vadd.s32 %v1159, 16
      %v1372 = vadd.s32 %v1166, 16
      %v1373 = vadd.s32 %v1173, 16
      %v1374 = vadd.s32 %v1180, 16
      %v1375 = vadd.s32 %v1187, 16
      %v1376 = vadd.s32 %v1194, 16
      %v1377 = vadd.s32 %v1201, 16
      %v1378 = vadd.s32 %v1208, 16
      %v1379 = vadd.s32 %v1215, 16
      %v1380 = vadd.s32 %v1222, 16
      %v1381 = vadd.s32 %v1229, 16
      %v1382 = vadd.s32 %v1236, 16
      %v1383 = vadd.s32 %v1243, 16
      %v1384 = vadd.s32 %v1250, 16
      %v1385 = vadd.s32 %v1257, 16
      %v1386 = vsel %vm1322, %v1354, %v1040
      %v1387 = vsel %vm1323, %v1355, %v1047
      %v1388 = vsel %vm1324, %v1356, %v1054
      %v1389 = vsel %vm1325, %v1357, %v1061
      %v1390 = vsel %vm1326, %v1358, %v1068
      %v1391 = vsel %vm1327, %v1359, %v1075
      %v1392 = vsel %vm1328, %v1360, %v1082
      %v1393 = vsel %vm1329, %v1361, %v1089
      %v1394 = vsel %vm1330, %v1362, %v1096
      %v1395 = vsel %vm1331, %v1363, %v1103
      %v1396 = vsel %vm1332, %v1364, %v1110
      %v1397 = vsel %vm1333, %v1365, %v1117
      %v1398 = vsel %vm1334, %v1366, %v1124
      %v1399 = vsel %vm1335, %v1367, %v1131
      %v1400 = vsel %vm1336, %v1368, %v1138
      %v1401 = vsel %vm1337, %v1369, %v1145
      %v1402 = vsel %vm1338, %v1370, %v1152
      %v1403 = vsel %vm1339, %v1371, %v1159
      %v1404 = vsel %vm1340, %v1372, %v1166
      %v1405 = vsel %vm1341, %v1373, %v1173
      %v1406 = vsel %vm1342, %v1374, %v1180
      %v1407 = vsel %vm1343, %v1375, %v1187
      %v1408 = vsel %vm1344, %v1376, %v1194
      %v1409 = vsel %vm1345, %v1377, %v1201
      %v1410 = vsel %vm1346, %v1378, %v1208
      %v1411 = vsel %vm1347, %v1379, %v1215
      %v1412 = vsel %vm1348, %v1380, %v1222
      %v1413 = vsel %vm1349, %v1381, %v1229
      %v1414 = vsel %vm1350, %v1382, %v1236
      %v1415 = vsel %vm1351, %v1383, %v1243
      %v1416 = vsel %vm1352, %v1384, %v1250
      %v1417 = vsel %vm1353, %v1385, %v1257
      %v1418 = vld [vmem:[%s6] sm:$0x1]
      %v1420 = vlaneseq
      %v1421 = vshrl.u32 %v1420, 7
      %v1422 = vsub.s32 0, %v1421
      %v1423 = vrot.slane %v1418, %v1422
      %v1425 = vadd.f32 %v1423, 0.0
      %v1426 = vld [vmem:[#allocation2 + $0x4] sm:$0x8]
      %v1427 = vld [vmem:[#allocation2 + $0x8] sm:$0xf]
      %v1428 = vld [vmem:[#allocation2 + $0xc] sm:$0xf]
      %v1429 = vld [vmem:[#allocation2 + $0x10] sm:$0xf]
      %v1430 = vld [vmem:[#allocation2 + $0x14] sm:$0xf]
      %v1431 = vld [vmem:[#allocation2 + $0x18] sm:$0xf]
      %v1432 = vld [vmem:[#allocation2 + $0x1c] sm:$0xf]
      %v1433 = vld [vmem:[#allocation2 + $0x20] sm:$0xf]
      %v1434 = vld [vmem:[#allocation2 + $0x24] sm:$0xf]
      %v1435 = vld [vmem:[#allocation2 + $0x28] sm:$0xf]
      %v1436 = vld [vmem:[#allocation2 + $0x2c] sm:$0xf]
      %v1437 = vld [vmem:[#allocation2 + $0x30] sm:$0xf]
      %v1438 = vld [vmem:[#allocation2 + $0x34] sm:$0xf]
      %v1439 = vld [vmem:[#allocation2 + $0x38] sm:$0xf]
      %v1440 = vld [vmem:[#allocation2 + $0x3c] sm:$0xf]
      %v1441 = vld [vmem:[#allocation2 + $0x40] sm:$0xf]
      %v1442 = vld [vmem:[#allocation2 + $0x44] sm:$0xf]
      %v1443 = vld [vmem:[#allocation2 + $0x48] sm:$0xf]
      %v1444 = vld [vmem:[#allocation2 + $0x4c] sm:$0xf]
      %v1445 = vld [vmem:[#allocation2 + $0x50] sm:$0xf]
      %v1446 = vld [vmem:[#allocation2 + $0x54] sm:$0xf]
      %v1447 = vld [vmem:[#allocation2 + $0x58] sm:$0xf]
      %v1448 = vld [vmem:[#allocation2 + $0x5c] sm:$0xf]
      %v1449 = vld [vmem:[#allocation2 + $0x60] sm:$0xf]
      %v1450 = vld [vmem:[#allocation2 + $0x64] sm:$0xf]
      %v1451 = vld [vmem:[#allocation2 + $0x68] sm:$0xf]
      %v1452 = vld [vmem:[#allocation2 + $0x6c] sm:$0xf]
      %v1453 = vld [vmem:[#allocation2 + $0x70] sm:$0xf]
      %v1454 = vld [vmem:[#allocation2 + $0x74] sm:$0xf]
      %v1455 = vld [vmem:[#allocation2 + $0x78] sm:$0xf]
      %v1456 = vld [vmem:[#allocation2 + $0x7c] sm:$0xf]
      %v1457 = vld [vmem:[#allocation2 + $0x80] sm:$0xf]
      %v1458 = vld [vmem:[#allocation2 + $0x84] sm:$0xf]
      %v1459 = vld [vmem:[%s5] sm:$0x3]
      %v1460 = vld [vmem:[#allocation2 + $0xc] sm:$0x8]
      %v1461 = vld [vmem:[#allocation2 + $0x88] sm:$0xf]
      %v1462 = vld [vmem:[#allocation2 + $0x8c] sm:$0xf]
      %s1463 = scalar_lea.vmem %s5, 6
      %v1464 = vld [vmem:[%s1463] sm:$0x3]
      %v1498 = vunpack.c.l.b16 %v1460
      %v1499 = vunpack.c.l.b16 %v1429
      %v1500 = vunpack.c.l.b16 %v1430
      %v1501 = vunpack.c.l.b16 %v1431
      %v1502 = vunpack.c.l.b16 %v1432
      %v1503 = vunpack.c.l.b16 %v1433
      %v1504 = vunpack.c.l.b16 %v1434
      %v1505 = vunpack.c.l.b16 %v1435
      %v1506 = vunpack.c.l.b16 %v1436
      %v1507 = vunpack.c.l.b16 %v1437
      %v1508 = vunpack.c.l.b16 %v1438
      %v1509 = vunpack.c.l.b16 %v1439
      %v1510 = vunpack.c.l.b16 %v1440
      %v1511 = vunpack.c.l.b16 %v1441
      %v1512 = vunpack.c.l.b16 %v1442
      %v1513 = vunpack.c.l.b16 %v1443
      %v1514 = vunpack.c.l.b16 %v1444
      %v1515 = vunpack.c.l.b16 %v1445
      %v1516 = vunpack.c.l.b16 %v1446
      %v1517 = vunpack.c.l.b16 %v1447
      %v1518 = vunpack.c.l.b16 %v1448
      %v1519 = vunpack.c.l.b16 %v1449
      %v1520 = vunpack.c.l.b16 %v1450
      %v1521 = vunpack.c.l.b16 %v1451
      %v1522 = vunpack.c.l.b16 %v1452
      %v1523 = vunpack.c.l.b16 %v1453
      %v1524 = vunpack.c.l.b16 %v1454
      %v1525 = vunpack.c.l.b16 %v1455
      %v1526 = vunpack.c.l.b16 %v1456
      %v1527 = vunpack.c.l.b16 %v1457
      %v1528 = vunpack.c.l.b16 %v1458
      %v1529 = vunpack.c.l.b16 %v1461
      %v1530 = vunpack.c.l.b16 %v1462
      %v1531 = vpack.c.b16 %v1499, %v1498
      %v1532 = vpack.c.b16 %v1501, %v1500
      %v1533 = vpack.c.b16 %v1503, %v1502
      %v1534 = vpack.c.b16 %v1505, %v1504
      %v1535 = vpack.c.b16 %v1507, %v1506
      %v1536 = vpack.c.b16 %v1509, %v1508
      %v1537 = vpack.c.b16 %v1511, %v1510
      %v1538 = vpack.c.b16 %v1513, %v1512
      %v1539 = vpack.c.b16 %v1515, %v1514
      %v1540 = vpack.c.b16 %v1517, %v1516
      %v1541 = vpack.c.b16 %v1519, %v1518
      %v1542 = vpack.c.b16 %v1521, %v1520
      %v1543 = vpack.c.b16 %v1523, %v1522
      %v1544 = vpack.c.b16 %v1525, %v1524
      %v1545 = vpack.c.b16 %v1527, %v1526
      %v1546 = vpack.c.b16 %v1529, %v1528
      %v1547 = vpack.c.b16 %v1530, %v1530
      %vm1548 = vsmask.f32 4352
      %v1550 = vshrl.u32 %v1531, 16
      %v1552 = vrot.slane %v1550, 3
      %v1553 = vshll.u32 %v1531, 16
      %v1555 = vrot.slane %v1553, 4
      %v1556 = vor.u32 %v1552, %v1555
      %v1558 = vshrl.u32 %v1532, 16
      %v1560 = vrot.slane %v1558, 3
      %v1561 = vshll.u32 %v1532, 16
      %v1563 = vrot.slane %v1561, 4
      %v1564 = vor.u32 %v1560, %v1563
      %v1565 = vsel %vm1548, %v1556, %v1564
      %v1567 = vshrl.u32 %v1533, 16
      %v1569 = vrot.slane %v1567, 3
      %v1570 = vshll.u32 %v1533, 16
      %v1572 = vrot.slane %v1570, 4
      %v1573 = vor.u32 %v1569, %v1572
      %v1574 = vsel %vm1548, %v1564, %v1573
      %v1576 = vshrl.u32 %v1534, 16
      %v1578 = vrot.slane %v1576, 3
      %v1579 = vshll.u32 %v1534, 16
      %v1581 = vrot.slane %v1579, 4
      %v1582 = vor.u32 %v1578, %v1581
      %v1583 = vsel %vm1548, %v1573, %v1582
      %v1585 = vshrl.u32 %v1535, 16
      %v1587 = vrot.slane %v1585, 3
      %v1588 = vshll.u32 %v1535, 16
      %v1590 = vrot.slane %v1588, 4
      %v1591 = vor.u32 %v1587, %v1590
      %v1592 = vsel %vm1548, %v1582, %v1591
      %v1594 = vshrl.u32 %v1536, 16
      %v1596 = vrot.slane %v1594, 3
      %v1597 = vshll.u32 %v1536, 16
      %v1599 = vrot.slane %v1597, 4
      %v1600 = vor.u32 %v1596, %v1599
      %v1601 = vsel %vm1548, %v1591, %v1600
      %v1603 = vshrl.u32 %v1537, 16
      %v1605 = vrot.slane %v1603, 3
      %v1606 = vshll.u32 %v1537, 16
      %v1608 = vrot.slane %v1606, 4
      %v1609 = vor.u32 %v1605, %v1608
      %v1610 = vsel %vm1548, %v1600, %v1609
      %v1612 = vshrl.u32 %v1538, 16
      %v1614 = vrot.slane %v1612, 3
      %v1615 = vshll.u32 %v1538, 16
      %v1617 = vrot.slane %v1615, 4
      %v1618 = vor.u32 %v1614, %v1617
      %v1619 = vsel %vm1548, %v1609, %v1618
      %v1621 = vshrl.u32 %v1539, 16
      %v1623 = vrot.slane %v1621, 3
      %v1624 = vshll.u32 %v1539, 16
      %v1626 = vrot.slane %v1624, 4
      %v1627 = vor.u32 %v1623, %v1626
      %v1628 = vsel %vm1548, %v1618, %v1627
      %v1630 = vshrl.u32 %v1540, 16
      %v1632 = vrot.slane %v1630, 3
      %v1633 = vshll.u32 %v1540, 16
      %v1635 = vrot.slane %v1633, 4
      %v1636 = vor.u32 %v1632, %v1635
      %v1637 = vsel %vm1548, %v1627, %v1636
      %v1639 = vshrl.u32 %v1541, 16
      %v1641 = vrot.slane %v1639, 3
      %v1642 = vshll.u32 %v1541, 16
      %v1644 = vrot.slane %v1642, 4
      %v1645 = vor.u32 %v1641, %v1644
      %v1646 = vsel %vm1548, %v1636, %v1645
      %v1648 = vshrl.u32 %v1542, 16
      %v1650 = vrot.slane %v1648, 3
      %v1651 = vshll.u32 %v1542, 16
      %v1653 = vrot.slane %v1651, 4
      %v1654 = vor.u32 %v1650, %v1653
      %v1655 = vsel %vm1548, %v1645, %v1654
      %v1657 = vshrl.u32 %v1543, 16
      %v1659 = vrot.slane %v1657, 3
      %v1660 = vshll.u32 %v1543, 16
      %v1662 = vrot.slane %v1660, 4
      %v1663 = vor.u32 %v1659, %v1662
      %v1664 = vsel %vm1548, %v1654, %v1663
      %v1666 = vshrl.u32 %v1544, 16
      %v1668 = vrot.slane %v1666, 3
      %v1669 = vshll.u32 %v1544, 16
      %v1671 = vrot.slane %v1669, 4
      %v1672 = vor.u32 %v1668, %v1671
      %v1673 = vsel %vm1548, %v1663, %v1672
      %v1675 = vshrl.u32 %v1545, 16
      %v1677 = vrot.slane %v1675, 3
      %v1678 = vshll.u32 %v1545, 16
      %v1680 = vrot.slane %v1678, 4
      %v1681 = vor.u32 %v1677, %v1680
      %v1682 = vsel %vm1548, %v1672, %v1681
      %v1684 = vshrl.u32 %v1546, 16
      %v1686 = vrot.slane %v1684, 3
      %v1687 = vshll.u32 %v1546, 16
      %v1689 = vrot.slane %v1687, 4
      %v1690 = vor.u32 %v1686, %v1689
      %v1691 = vsel %vm1548, %v1681, %v1690
      %v1693 = vshrl.u32 %v1547, 16
      %v1695 = vrot.slane %v1693, 3
      %v1696 = vshll.u32 %v1547, 16
      %v1698 = vrot.slane %v1696, 4
      %v1699 = vor.u32 %v1695, %v1698
      %v1700 = vsel %vm1548, %v1690, %v1699
      %v1702 = vsel %vm586, %v1565, 0
      %v1705 = vsel %vm586, %v1574, 0
      %v1708 = vsel %vm586, %v1583, 0
      %v1711 = vsel %vm586, %v1592, 0
      %v1714 = vsel %vm586, %v1601, 0
      %v1717 = vsel %vm586, %v1610, 0
      %v1720 = vsel %vm586, %v1619, 0
      %v1723 = vsel %vm586, %v1628, 0
      %v1726 = vsel %vm586, %v1637, 0
      %v1729 = vsel %vm586, %v1646, 0
      %v1732 = vsel %vm586, %v1655, 0
      %v1735 = vsel %vm586, %v1664, 0
      %v1738 = vsel %vm586, %v1673, 0
      %v1741 = vsel %vm586, %v1682, 0
      %v1744 = vsel %vm586, %v1691, 0
      %v1747 = vsel %vm586, %v1700, 0
      %v1750 = vsel %vm635, %v1464, 0
      %1752 = vmatprep.subr.bf16.mxu0 0
      %1753 = vmatpush1.bf16.msra.mxu0 0
      %1754 = vmatprep.subr.bf16.mxu0 0
      %1755 = vmatpush1.bf16.msra.mxu0 0
      %1756 = vmatprep.subr.bf16.mxu0 0
      %1757 = vmatpush1.bf16.msra.mxu0 0
      %1758 = vmatprep.subr.bf16.mxu0 0
      %1759 = vmatpush1.bf16.msra.mxu0 0
      %1760 = vmatprep.subr.bf16.mxu0 0
      %1761 = vmatpush1.bf16.msra.mxu0 0
      %1762 = vmatprep.subr.bf16.mxu0 0
      %1763 = vmatpush1.bf16.msra.mxu0 0
      %1764 = vmatprep.subr.bf16.mxu0 0
      %1765 = vmatpush1.bf16.msra.mxu0 0
      %1766 = vmatprep.subr.bf16.mxu0 0
      %1767 = vmatpush1.bf16.msra.mxu0 %v1750
      %1768 = vmatprep.subr.bf16.mxu0 0
      %1769 = vmatpush2.bf16.msra.mxu0 0
      %1770 = vmatprep.subr.bf16.mxu0 0
      %1771 = vmatpush2.bf16.msra.mxu0 0
      %1772 = vmatprep.subr.bf16.mxu0 0
      %1773 = vmatpush2.bf16.msra.mxu0 0
      %1774 = vmatprep.subr.bf16.mxu0 0
      %1775 = vmatpush2.bf16.msra.mxu0 0
      %1776 = vmatprep.subr.bf16.mxu0 0
      %1777 = vmatpush2.bf16.msra.mxu0 0
      %1778 = vmatprep.subr.bf16.mxu0 0
      %1779 = vmatpush2.bf16.msra.mxu0 0
      %1780 = vmatprep.subr.bf16.mxu0 0
      %1781 = vmatpush2.bf16.msra.mxu0 0
      %1782 = vmatprep.subr.bf16.mxu0 0
      %1783 = vmatpush2.bf16.msra.mxu0 0
      %1784 = vmatprep.mubr.bf16.mxu0 0
      %1785 = vmatmul.mubr.bf16.gmra.mxu0 %v1702
      %v1786 = vpop.f32.mrf.mxu0
      %v1787 = vadd.f32 0.0, %v1786
      %v1788 = vpop.f32.mrf.mxu0
      %v1789 = vpop.f32.mrf.mxu0
      %v1790 = vadd.f32 0.0, %v1789
      %v1791 = vpop.f32.mrf.mxu0
      %1792 = vmatprep.mubr.bf16.mxu0 0
      %1793 = vmatmul.mubr.bf16.gmra.mxu0 %v1705
      %v1794 = vpop.f32.mrf.mxu0
      %v1795 = vadd.f32 0.0, %v1794
      %v1796 = vpop.f32.mrf.mxu0
      %v1797 = vpop.f32.mrf.mxu0
      %v1798 = vadd.f32 0.0, %v1797
      %v1799 = vpop.f32.mrf.mxu0
      %1800 = vmatprep.mubr.bf16.mxu0 0
      %1801 = vmatmul.mubr.bf16.gmra.mxu0 %v1708
      %v1802 = vpop.f32.mrf.mxu0
      %v1803 = vadd.f32 0.0, %v1802
      %v1804 = vpop.f32.mrf.mxu0
      %v1805 = vpop.f32.mrf.mxu0
      %v1806 = vadd.f32 0.0, %v1805
      %v1807 = vpop.f32.mrf.mxu0
      %1808 = vmatprep.mubr.bf16.mxu0 0
      %1809 = vmatmul.mubr.bf16.gmra.mxu0 %v1711
      %v1810 = vpop.f32.mrf.mxu0
      %v1811 = vadd.f32 0.0, %v1810
      %v1812 = vpop.f32.mrf.mxu0
      %v1813 = vpop.f32.mrf.mxu0
      %v1814 = vadd.f32 0.0, %v1813
      %v1815 = vpop.f32.mrf.mxu0
      %1816 = vmatprep.mubr.bf16.mxu0 0
      %1817 = vmatmul.mubr.bf16.gmra.mxu0 %v1714
      %v1818 = vpop.f32.mrf.mxu0
      %v1819 = vadd.f32 0.0, %v1818
      %v1820 = vpop.f32.mrf.mxu0
      %v1821 = vpop.f32.mrf.mxu0
      %v1822 = vadd.f32 0.0, %v1821
      %v1823 = vpop.f32.mrf.mxu0
      %1824 = vmatprep.mubr.bf16.mxu0 0
      %1825 = vmatmul.mubr.bf16.gmra.mxu0 %v1717
      %v1826 = vpop.f32.mrf.mxu0
      %v1827 = vadd.f32 0.0, %v1826
      %v1828 = vpop.f32.mrf.mxu0
      %v1829 = vpop.f32.mrf.mxu0
      %v1830 = vadd.f32 0.0, %v1829
      %v1831 = vpop.f32.mrf.mxu0
      %1832 = vmatprep.mubr.bf16.mxu0 0
      %1833 = vmatmul.mubr.bf16.gmra.mxu0 %v1720
      %v1834 = vpop.f32.mrf.mxu0
      %v1835 = vadd.f32 0.0, %v1834
      %v1836 = vpop.f32.mrf.mxu0
      %v1837 = vpop.f32.mrf.mxu0
      %v1838 = vadd.f32 0.0, %v1837
      %v1839 = vpop.f32.mrf.mxu0
      %1840 = vmatprep.mubr.bf16.mxu0 0
      %1841 = vmatmul.mubr.bf16.gmra.mxu0 %v1723
      %v1842 = vpop.f32.mrf.mxu0
      %v1843 = vadd.f32 0.0, %v1842
      %v1844 = vpop.f32.mrf.mxu0
      %v1845 = vpop.f32.mrf.mxu0
      %v1846 = vadd.f32 0.0, %v1845
      %v1847 = vpop.f32.mrf.mxu0
      %1848 = vmatprep.mubr.bf16.mxu0 0
      %1849 = vmatmul.mubr.bf16.gmra.mxu0 %v1726
      %v1850 = vpop.f32.mrf.mxu0
      %v1851 = vadd.f32 0.0, %v1850
      %v1852 = vpop.f32.mrf.mxu0
      %v1853 = vpop.f32.mrf.mxu0
      %v1854 = vadd.f32 0.0, %v1853
      %v1855 = vpop.f32.mrf.mxu0
      %1856 = vmatprep.mubr.bf16.mxu0 0
      %1857 = vmatmul.mubr.bf16.gmra.mxu0 %v1729
      %v1858 = vpop.f32.mrf.mxu0
      %v1859 = vadd.f32 0.0, %v1858
      %v1860 = vpop.f32.mrf.mxu0
      %v1861 = vpop.f32.mrf.mxu0
      %v1862 = vadd.f32 0.0, %v1861
      %v1863 = vpop.f32.mrf.mxu0
      %1864 = vmatprep.mubr.bf16.mxu0 0
      %1865 = vmatmul.mubr.bf16.gmra.mxu0 %v1732
      %v1866 = vpop.f32.mrf.mxu0
      %v1867 = vadd.f32 0.0, %v1866
      %v1868 = vpop.f32.mrf.mxu0
      %v1869 = vpop.f32.mrf.mxu0
      %v1870 = vadd.f32 0.0, %v1869
      %v1871 = vpop.f32.mrf.mxu0
      %1872 = vmatprep.mubr.bf16.mxu0 0
      %1873 = vmatmul.mubr.bf16.gmra.mxu0 %v1735
      %v1874 = vpop.f32.mrf.mxu0
      %v1875 = vadd.f32 0.0, %v1874
      %v1876 = vpop.f32.mrf.mxu0
      %v1877 = vpop.f32.mrf.mxu0
      %v1878 = vadd.f32 0.0, %v1877
      %v1879 = vpop.f32.mrf.mxu0
      %1880 = vmatprep.mubr.bf16.mxu0 0
      %1881 = vmatmul.mubr.bf16.gmra.mxu0 %v1738
      %v1882 = vpop.f32.mrf.mxu0
      %v1883 = vadd.f32 0.0, %v1882
      %v1884 = vpop.f32.mrf.mxu0
      %v1885 = vpop.f32.mrf.mxu0
      %v1886 = vadd.f32 0.0, %v1885
      %v1887 = vpop.f32.mrf.mxu0
      %1888 = vmatprep.mubr.bf16.mxu0 0
      %1889 = vmatmul.mubr.bf16.gmra.mxu0 %v1741
      %v1890 = vpop.f32.mrf.mxu0
      %v1891 = vadd.f32 0.0, %v1890
      %v1892 = vpop.f32.mrf.mxu0
      %v1893 = vpop.f32.mrf.mxu0
      %v1894 = vadd.f32 0.0, %v1893
      %v1895 = vpop.f32.mrf.mxu0
      %1896 = vmatprep.mubr.bf16.mxu0 0
      %1897 = vmatmul.mubr.bf16.gmra.mxu0 %v1744
      %v1898 = vpop.f32.mrf.mxu0
      %v1899 = vadd.f32 0.0, %v1898
      %v1900 = vpop.f32.mrf.mxu0
      %v1901 = vpop.f32.mrf.mxu0
      %v1902 = vadd.f32 0.0, %v1901
      %v1903 = vpop.f32.mrf.mxu0
      %1904 = vmatprep.mubr.bf16.mxu0 0
      %1905 = vmatmul.mubr.bf16.gmra.mxu0 %v1747
      %v1906 = vpop.f32.mrf.mxu0
      %v1907 = vadd.f32 0.0, %v1906
      %v1908 = vpop.f32.mrf.mxu0
      %v1909 = vpop.f32.mrf.mxu0
      %v1910 = vadd.f32 0.0, %v1909
      %v1911 = vpop.f32.mrf.mxu0
      %1912 = vdwg.mxu0
      %v1916 = vunpack.c.l.b16 %v1426
      %v1917 = vunpack.c.l.b16 %v1427
      %v1918 = vunpack.c.l.b16 %v1428
      %v1919 = vpack.c.b16 %v1917, %v1916
      %v1920 = vpack.c.b16 %v1499, %v1918
      %v1921 = vpack.c.b16 %v1528, %v1528
      %v1923 = vshrl.u32 %v1919, 16
      %v1925 = vrot.slane %v1923, 3
      %v1926 = vshll.u32 %v1919, 16
      %v1928 = vrot.slane %v1926, 4
      %v1929 = vor.u32 %v1925, %v1928
      %v1931 = vshrl.u32 %v1920, 16
      %v1933 = vrot.slane %v1931, 3
      %v1934 = vshll.u32 %v1920, 16
      %v1936 = vrot.slane %v1934, 4
      %v1937 = vor.u32 %v1933, %v1936
      %v1938 = vsel %vm1548, %v1929, %v1937
      %v1939 = vsel %vm1548, %v1937, %v1564
      %v1941 = vshrl.u32 %v1921, 16
      %v1943 = vrot.slane %v1941, 3
      %v1944 = vshll.u32 %v1921, 16
      %v1946 = vrot.slane %v1944, 4
      %v1947 = vor.u32 %v1943, %v1946
      %v1948 = vsel %vm1548, %v1681, %v1947
      %v1950 = vsel %vm586, %v1938, 0
      %v1953 = vsel %vm586, %v1939, 0
      %v1956 = vsel %vm586, %v1948, 0
      %v1959 = vsel %vm635, %v1459, 0
      %1961 = vmatprep.subr.bf16.mxu0 0
      %1962 = vmatpush1.bf16.msra.mxu0 0
      %1963 = vmatprep.subr.bf16.mxu0 0
      %1964 = vmatpush1.bf16.msra.mxu0 0
      %1965 = vmatprep.subr.bf16.mxu0 0
      %1966 = vmatpush1.bf16.msra.mxu0 0
      %1967 = vmatprep.subr.bf16.mxu0 0
      %1968 = vmatpush1.bf16.msra.mxu0 0
      %1969 = vmatprep.subr.bf16.mxu0 0
      %1970 = vmatpush1.bf16.msra.mxu0 0
      %1971 = vmatprep.subr.bf16.mxu0 0
      %1972 = vmatpush1.bf16.msra.mxu0 0
      %1973 = vmatprep.subr.bf16.mxu0 0
      %1974 = vmatpush1.bf16.msra.mxu0 0
      %1975 = vmatprep.subr.bf16.mxu0 0
      %1976 = vmatpush1.bf16.msra.mxu0 %v1959
      %1977 = vmatprep.subr.bf16.mxu0 0
      %1978 = vmatpush2.bf16.msra.mxu0 0
      %1979 = vmatprep.subr.bf16.mxu0 0
      %1980 = vmatpush2.bf16.msra.mxu0 0
      %1981 = vmatprep.subr.bf16.mxu0 0
      %1982 = vmatpush2.bf16.msra.mxu0 0
      %1983 = vmatprep.subr.bf16.mxu0 0
      %1984 = vmatpush2.bf16.msra.mxu0 0
      %1985 = vmatprep.subr.bf16.mxu0 0
      %1986 = vmatpush2.bf16.msra.mxu0 0
      %1987 = vmatprep.subr.bf16.mxu0 0
      %1988 = vmatpush2.bf16.msra.mxu0 0
      %1989 = vmatprep.subr.bf16.mxu0 0
      %1990 = vmatpush2.bf16.msra.mxu0 0
      %1991 = vmatprep.subr.bf16.mxu0 0
      %1992 = vmatpush2.bf16.msra.mxu0 0
      %1993 = vmatprep.mubr.bf16.mxu0 0
      %1994 = vmatmul.mubr.bf16.gmra.mxu0 %v1950
      %v1995 = vpop.f32.mrf.mxu0
      %v1996 = vadd.f32 %v1787, %v1995
      %v1997 = vpop.f32.mrf.mxu0
      %v1998 = vpop.f32.mrf.mxu0
      %v1999 = vadd.f32 %v1790, %v1998
      %v2000 = vpop.f32.mrf.mxu0
      %2001 = vmatprep.mubr.bf16.mxu0 0
      %2002 = vmatmul.mubr.bf16.gmra.mxu0 %v1953
      %v2003 = vpop.f32.mrf.mxu0
      %v2004 = vadd.f32 %v1795, %v2003
      %v2005 = vpop.f32.mrf.mxu0
      %v2006 = vpop.f32.mrf.mxu0
      %v2007 = vadd.f32 %v1798, %v2006
      %v2008 = vpop.f32.mrf.mxu0
      %2009 = vmatprep.mubr.bf16.mxu0 0
      %2010 = vmatmul.mubr.bf16.gmra.mxu0 %v1705
      %v2011 = vpop.f32.mrf.mxu0
      %v2012 = vadd.f32 %v1803, %v2011
      %v2013 = vpop.f32.mrf.mxu0
      %v2014 = vpop.f32.mrf.mxu0
      %v2015 = vadd.f32 %v1806, %v2014
      %v2016 = vpop.f32.mrf.mxu0
      %2017 = vmatprep.mubr.bf16.mxu0 0
      %2018 = vmatmul.mubr.bf16.gmra.mxu0 %v1708
      %v2019 = vpop.f32.mrf.mxu0
      %v2020 = vadd.f32 %v1811, %v2019
      %v2021 = vpop.f32.mrf.mxu0
      %v2022 = vpop.f32.mrf.mxu0
      %v2023 = vadd.f32 %v1814, %v2022
      %v2024 = vpop.f32.mrf.mxu0
      %2025 = vmatprep.mubr.bf16.mxu0 0
      %2026 = vmatmul.mubr.bf16.gmra.mxu0 %v1711
      %v2027 = vpop.f32.mrf.mxu0
      %v2028 = vadd.f32 %v1819, %v2027
      %v2029 = vpop.f32.mrf.mxu0
      %v2030 = vpop.f32.mrf.mxu0
      %v2031 = vadd.f32 %v1822, %v2030
      %v2032 = vpop.f32.mrf.mxu0
      %2033 = vmatprep.mubr.bf16.mxu0 0
      %2034 = vmatmul.mubr.bf16.gmra.mxu0 %v1714
      %v2035 = vpop.f32.mrf.mxu0
      %v2036 = vadd.f32 %v1827, %v2035
      %v2037 = vpop.f32.mrf.mxu0
      %v2038 = vpop.f32.mrf.mxu0
      %v2039 = vadd.f32 %v1830, %v2038
      %v2040 = vpop.f32.mrf.mxu0
      %2041 = vmatprep.mubr.bf16.mxu0 0
      %2042 = vmatmul.mubr.bf16.gmra.mxu0 %v1717
      %v2043 = vpop.f32.mrf.mxu0
      %v2044 = vadd.f32 %v1835, %v2043
      %v2045 = vpop.f32.mrf.mxu0
      %v2046 = vpop.f32.mrf.mxu0
      %v2047 = vadd.f32 %v1838, %v2046
      %v2048 = vpop.f32.mrf.mxu0
      %2049 = vmatprep.mubr.bf16.mxu0 0
      %2050 = vmatmul.mubr.bf16.gmra.mxu0 %v1720
      %v2051 = vpop.f32.mrf.mxu0
      %v2052 = vadd.f32 %v1843, %v2051
      %v2053 = vpop.f32.mrf.mxu0
      %v2054 = vpop.f32.mrf.mxu0
      %v2055 = vadd.f32 %v1846, %v2054
      %v2056 = vpop.f32.mrf.mxu0
      %2057 = vmatprep.mubr.bf16.mxu0 0
      %2058 = vmatmul.mubr.bf16.gmra.mxu0 %v1723
      %v2059 = vpop.f32.mrf.mxu0
      %v2060 = vadd.f32 %v1851, %v2059
      %v2061 = vpop.f32.mrf.mxu0
      %v2062 = vpop.f32.mrf.mxu0
      %v2063 = vadd.f32 %v1854, %v2062
      %v2064 = vpop.f32.mrf.mxu0
      %2065 = vmatprep.mubr.bf16.mxu0 0
      %2066 = vmatmul.mubr.bf16.gmra.mxu0 %v1726
      %v2067 = vpop.f32.mrf.mxu0
      %v2068 = vadd.f32 %v1859, %v2067
      %v2069 = vpop.f32.mrf.mxu0
      %v2070 = vpop.f32.mrf.mxu0
      %v2071 = vadd.f32 %v1862, %v2070
      %v2072 = vpop.f32.mrf.mxu0
      %2073 = vmatprep.mubr.bf16.mxu0 0
      %2074 = vmatmul.mubr.bf16.gmra.mxu0 %v1729
      %v2075 = vpop.f32.mrf.mxu0
      %v2076 = vadd.f32 %v1867, %v2075
      %v2077 = vpop.f32.mrf.mxu0
      %v2078 = vpop.f32.mrf.mxu0
      %v2079 = vadd.f32 %v1870, %v2078
      %v2080 = vpop.f32.mrf.mxu0
      %2081 = vmatprep.mubr.bf16.mxu0 0
      %2082 = vmatmul.mubr.bf16.gmra.mxu0 %v1732
      %v2083 = vpop.f32.mrf.mxu0
      %v2084 = vadd.f32 %v1875, %v2083
      %v2085 = vpop.f32.mrf.mxu0
      %v2086 = vpop.f32.mrf.mxu0
      %v2087 = vadd.f32 %v1878, %v2086
      %v2088 = vpop.f32.mrf.mxu0
      %2089 = vmatprep.mubr.bf16.mxu0 0
      %2090 = vmatmul.mubr.bf16.gmra.mxu0 %v1735
      %v2091 = vpop.f32.mrf.mxu0
      %v2092 = vadd.f32 %v1883, %v2091
      %v2093 = vpop.f32.mrf.mxu0
      %v2094 = vpop.f32.mrf.mxu0
      %v2095 = vadd.f32 %v1886, %v2094
      %v2096 = vpop.f32.mrf.mxu0
      %2097 = vmatprep.mubr.bf16.mxu0 0
      %2098 = vmatmul.mubr.bf16.gmra.mxu0 %v1738
      %v2099 = vpop.f32.mrf.mxu0
      %v2100 = vadd.f32 %v1891, %v2099
      %v2101 = vpop.f32.mrf.mxu0
      %v2102 = vpop.f32.mrf.mxu0
      %v2103 = vadd.f32 %v1894, %v2102
      %v2104 = vpop.f32.mrf.mxu0
      %2105 = vmatprep.mubr.bf16.mxu0 0
      %2106 = vmatmul.mubr.bf16.gmra.mxu0 %v1741
      %v2107 = vpop.f32.mrf.mxu0
      %v2108 = vadd.f32 %v1899, %v2107
      %v2109 = vpop.f32.mrf.mxu0
      %v2110 = vpop.f32.mrf.mxu0
      %v2111 = vadd.f32 %v1902, %v2110
      %v2112 = vpop.f32.mrf.mxu0
      %2113 = vmatprep.mubr.bf16.mxu0 0
      %2114 = vmatmul.mubr.bf16.gmra.mxu0 %v1956
      %v2115 = vpop.f32.mrf.mxu0
      %v2116 = vadd.f32 %v1907, %v2115
      %v2117 = vpop.f32.mrf.mxu0
      %v2118 = vpop.f32.mrf.mxu0
      %v2119 = vadd.f32 %v1910, %v2118
      %v2120 = vpop.f32.mrf.mxu0
      %2121 = vdwg.mxu0
      %v2122 = vld [vmem:[#allocation2 + $0x14] sm:$0x8]
      %v2123 = vld [vmem:[#allocation2 + $0x18] sm:$0xf]
      %v2124 = vld [vmem:[#allocation2 + $0x1c] sm:$0xf]
      %v2125 = vld [vmem:[#allocation2 + $0x20] sm:$0xf]
      %v2126 = vld [vmem:[#allocation2 + $0x24] sm:$0xf]
      %v2127 = vld [vmem:[#allocation2 + $0x28] sm:$0xf]
      %v2128 = vld [vmem:[#allocation2 + $0x2c] sm:$0xf]
      %v2129 = vld [vmem:[#allocation2 + $0x30] sm:$0xf]
      %v2130 = vld [vmem:[#allocation2 + $0x34] sm:$0xf]
      %v2131 = vld [vmem:[#allocation2 + $0x38] sm:$0xf]
      %v2132 = vld [vmem:[#allocation2 + $0x3c] sm:$0xf]
      %v2133 = vld [vmem:[#allocation2 + $0x40] sm:$0xf]
      %v2134 = vld [vmem:[#allocation2 + $0x44] sm:$0xf]
      %v2135 = vld [vmem:[#allocation2 + $0x48] sm:$0xf]
      %v2136 = vld [vmem:[#allocation2 + $0x4c] sm:$0xf]
      %v2137 = vld [vmem:[#allocation2 + $0x50] sm:$0xf]
      %v2138 = vld [vmem:[#allocation2 + $0x54] sm:$0xf]
      %v2139 = vld [vmem:[#allocation2 + $0x58] sm:$0xf]
      %v2140 = vld [vmem:[#allocation2 + $0x5c] sm:$0xf]
      %v2141 = vld [vmem:[#allocation2 + $0x60] sm:$0xf]
      %v2142 = vld [vmem:[#allocation2 + $0x64] sm:$0xf]
      %v2143 = vld [vmem:[#allocation2 + $0x68] sm:$0xf]
      %v2144 = vld [vmem:[#allocation2 + $0x6c] sm:$0xf]
      %v2145 = vld [vmem:[#allocation2 + $0x70] sm:$0xf]
      %v2146 = vld [vmem:[#allocation2 + $0x74] sm:$0xf]
      %v2147 = vld [vmem:[#allocation2 + $0x78] sm:$0xf]
      %v2148 = vld [vmem:[#allocation2 + $0x7c] sm:$0xf]
      %v2149 = vld [vmem:[#allocation2 + $0x80] sm:$0xf]
      %v2150 = vld [vmem:[#allocation2 + $0x84] sm:$0xf]
      %v2151 = vld [vmem:[#allocation2 + $0x88] sm:$0xf]
      %v2152 = vld [vmem:[#allocation2 + $0x8c] sm:$0xf]
      %v2153 = vld [vmem:[#allocation2 + $0x90] sm:$0xf]
      %v2154 = vld [vmem:[#allocation2 + $0x94] sm:$0xf]
      %s2155 = scalar_lea.vmem %s5, 12
      %v2156 = vld [vmem:[%s2155] sm:$0x3]
      %v2190 = vunpack.c.l.b16 %v2122
      %v2191 = vunpack.c.l.b16 %v2123
      %v2192 = vunpack.c.l.b16 %v2124
      %v2193 = vunpack.c.l.b16 %v2125
      %v2194 = vunpack.c.l.b16 %v2126
      %v2195 = vunpack.c.l.b16 %v2127
      %v2196 = vunpack.c.l.b16 %v2128
      %v2197 = vunpack.c.l.b16 %v2129
      %v2198 = vunpack.c.l.b16 %v2130
      %v2199 = vunpack.c.l.b16 %v2131
      %v2200 = vunpack.c.l.b16 %v2132
      %v2201 = vunpack.c.l.b16 %v2133
      %v2202 = vunpack.c.l.b16 %v2134
      %v2203 = vunpack.c.l.b16 %v2135
      %v2204 = vunpack.c.l.b16 %v2136
      %v2205 = vunpack.c.l.b16 %v2137
      %v2206 = vunpack.c.l.b16 %v2138
      %v2207 = vunpack.c.l.b16 %v2139
      %v2208 = vunpack.c.l.b16 %v2140
      %v2209 = vunpack.c.l.b16 %v2141
      %v2210 = vunpack.c.l.b16 %v2142
      %v2211 = vunpack.c.l.b16 %v2143
      %v2212 = vunpack.c.l.b16 %v2144
      %v2213 = vunpack.c.l.b16 %v2145
      %v2214 = vunpack.c.l.b16 %v2146
      %v2215 = vunpack.c.l.b16 %v2147
      %v2216 = vunpack.c.l.b16 %v2148
      %v2217 = vunpack.c.l.b16 %v2149
      %v2218 = vunpack.c.l.b16 %v2150
      %v2219 = vunpack.c.l.b16 %v2151
      %v2220 = vunpack.c.l.b16 %v2152
      %v2221 = vunpack.c.l.b16 %v2153
      %v2222 = vunpack.c.l.b16 %v2154
      %v2223 = vpack.c.b16 %v2191, %v2190
      %v2224 = vpack.c.b16 %v2193, %v2192
      %v2225 = vpack.c.b16 %v2195, %v2194
      %v2226 = vpack.c.b16 %v2197, %v2196
      %v2227 = vpack.c.b16 %v2199, %v2198
      %v2228 = vpack.c.b16 %v2201, %v2200
      %v2229 = vpack.c.b16 %v2203, %v2202
      %v2230 = vpack.c.b16 %v2205, %v2204
      %v2231 = vpack.c.b16 %v2207, %v2206
      %v2232 = vpack.c.b16 %v2209, %v2208
      %v2233 = vpack.c.b16 %v2211, %v2210
      %v2234 = vpack.c.b16 %v2213, %v2212
      %v2235 = vpack.c.b16 %v2215, %v2214
      %v2236 = vpack.c.b16 %v2217, %v2216
      %v2237 = vpack.c.b16 %v2219, %v2218
      %v2238 = vpack.c.b16 %v2221, %v2220
      %v2239 = vpack.c.b16 %v2222, %v2222
      %v2241 = vshrl.u32 %v2223, 16
      %v2243 = vrot.slane %v2241, 3
      %v2244 = vshll.u32 %v2223, 16
      %v2246 = vrot.slane %v2244, 4
      %v2247 = vor.u32 %v2243, %v2246
      %v2249 = vshrl.u32 %v2224, 16
      %v2251 = vrot.slane %v2249, 3
      %v2252 = vshll.u32 %v2224, 16
      %v2254 = vrot.slane %v2252, 4
      %v2255 = vor.u32 %v2251, %v2254
      %v2256 = vsel %vm1548, %v2247, %v2255
      %v2258 = vshrl.u32 %v2225, 16
      %v2260 = vrot.slane %v2258, 3
      %v2261 = vshll.u32 %v2225, 16
      %v2263 = vrot.slane %v2261, 4
      %v2264 = vor.u32 %v2260, %v2263
      %v2265 = vsel %vm1548, %v2255, %v2264
      %v2267 = vshrl.u32 %v2226, 16
      %v2269 = vrot.slane %v2267, 3
      %v2270 = vshll.u32 %v2226, 16
      %v2272 = vrot.slane %v2270, 4
      %v2273 = vor.u32 %v2269, %v2272
      %v2274 = vsel %vm1548, %v2264, %v2273
      %v2276 = vshrl.u32 %v2227, 16
      %v2278 = vrot.slane %v2276, 3
      %v2279 = vshll.u32 %v2227, 16
      %v2281 = vrot.slane %v2279, 4
      %v2282 = vor.u32 %v2278, %v2281
      %v2283 = vsel %vm1548, %v2273, %v2282
      %v2285 = vshrl.u32 %v2228, 16
      %v2287 = vrot.slane %v2285, 3
      %v2288 = vshll.u32 %v2228, 16
      %v2290 = vrot.slane %v2288, 4
      %v2291 = vor.u32 %v2287, %v2290
      %v2292 = vsel %vm1548, %v2282, %v2291
      %v2294 = vshrl.u32 %v2229, 16
      %v2296 = vrot.slane %v2294, 3
      %v2297 = vshll.u32 %v2229, 16
      %v2299 = vrot.slane %v2297, 4
      %v2300 = vor.u32 %v2296, %v2299
      %v2301 = vsel %vm1548, %v2291, %v2300
      %v2303 = vshrl.u32 %v2230, 16
      %v2305 = vrot.slane %v2303, 3
      %v2306 = vshll.u32 %v2230, 16
      %v2308 = vrot.slane %v2306, 4
      %v2309 = vor.u32 %v2305, %v2308
      %v2310 = vsel %vm1548, %v2300, %v2309
      %v2312 = vshrl.u32 %v2231, 16
      %v2314 = vrot.slane %v2312, 3
      %v2315 = vshll.u32 %v2231, 16
      %v2317 = vrot.slane %v2315, 4
      %v2318 = vor.u32 %v2314, %v2317
      %v2319 = vsel %vm1548, %v2309, %v2318
      %v2321 = vshrl.u32 %v2232, 16
      %v2323 = vrot.slane %v2321, 3
      %v2324 = vshll.u32 %v2232, 16
      %v2326 = vrot.slane %v2324, 4
      %v2327 = vor.u32 %v2323, %v2326
      %v2328 = vsel %vm1548, %v2318, %v2327
      %v2330 = vshrl.u32 %v2233, 16
      %v2332 = vrot.slane %v2330, 3
      %v2333 = vshll.u32 %v2233, 16
      %v2335 = vrot.slane %v2333, 4
      %v2336 = vor.u32 %v2332, %v2335
      %v2337 = vsel %vm1548, %v2327, %v2336
      %v2339 = vshrl.u32 %v2234, 16
      %v2341 = vrot.slane %v2339, 3
      %v2342 = vshll.u32 %v2234, 16
      %v2344 = vrot.slane %v2342, 4
      %v2345 = vor.u32 %v2341, %v2344
      %v2346 = vsel %vm1548, %v2336, %v2345
      %v2348 = vshrl.u32 %v2235, 16
      %v2350 = vrot.slane %v2348, 3
      %v2351 = vshll.u32 %v2235, 16
      %v2353 = vrot.slane %v2351, 4
      %v2354 = vor.u32 %v2350, %v2353
      %v2355 = vsel %vm1548, %v2345, %v2354
      %v2357 = vshrl.u32 %v2236, 16
      %v2359 = vrot.slane %v2357, 3
      %v2360 = vshll.u32 %v2236, 16
      %v2362 = vrot.slane %v2360, 4
      %v2363 = vor.u32 %v2359, %v2362
      %v2364 = vsel %vm1548, %v2354, %v2363
      %v2366 = vshrl.u32 %v2237, 16
      %v2368 = vrot.slane %v2366, 3
      %v2369 = vshll.u32 %v2237, 16
      %v2371 = vrot.slane %v2369, 4
      %v2372 = vor.u32 %v2368, %v2371
      %v2373 = vsel %vm1548, %v2363, %v2372
      %v2375 = vshrl.u32 %v2238, 16
      %v2377 = vrot.slane %v2375, 3
      %v2378 = vshll.u32 %v2238, 16
      %v2380 = vrot.slane %v2378, 4
      %v2381 = vor.u32 %v2377, %v2380
      %v2382 = vsel %vm1548, %v2372, %v2381
      %v2384 = vshrl.u32 %v2239, 16
      %v2386 = vrot.slane %v2384, 3
      %v2387 = vshll.u32 %v2239, 16
      %v2389 = vrot.slane %v2387, 4
      %v2390 = vor.u32 %v2386, %v2389
      %v2391 = vsel %vm1548, %v2381, %v2390
      %v2393 = vsel %vm586, %v2256, 0
      %v2396 = vsel %vm586, %v2265, 0
      %v2399 = vsel %vm586, %v2274, 0
      %v2402 = vsel %vm586, %v2283, 0
      %v2405 = vsel %vm586, %v2292, 0
      %v2408 = vsel %vm586, %v2301, 0
      %v2411 = vsel %vm586, %v2310, 0
      %v2414 = vsel %vm586, %v2319, 0
      %v2417 = vsel %vm586, %v2328, 0
      %v2420 = vsel %vm586, %v2337, 0
      %v2423 = vsel %vm586, %v2346, 0
      %v2426 = vsel %vm586, %v2355, 0
      %v2429 = vsel %vm586, %v2364, 0
      %v2432 = vsel %vm586, %v2373, 0
      %v2435 = vsel %vm586, %v2382, 0
      %v2438 = vsel %vm586, %v2391, 0
      %v2441 = vsel %vm635, %v2156, 0
      %2443 = vmatprep.subr.bf16.mxu0 0
      %2444 = vmatpush1.bf16.msra.mxu0 0
      %2445 = vmatprep.subr.bf16.mxu0 0
      %2446 = vmatpush1.bf16.msra.mxu0 0
      %2447 = vmatprep.subr.bf16.mxu0 0
      %2448 = vmatpush1.bf16.msra.mxu0 0
      %2449 = vmatprep.subr.bf16.mxu0 0
      %2450 = vmatpush1.bf16.msra.mxu0 0
      %2451 = vmatprep.subr.bf16.mxu0 0
      %2452 = vmatpush1.bf16.msra.mxu0 0
      %2453 = vmatprep.subr.bf16.mxu0 0
      %2454 = vmatpush1.bf16.msra.mxu0 0
      %2455 = vmatprep.subr.bf16.mxu0 0
      %2456 = vmatpush1.bf16.msra.mxu0 0
      %2457 = vmatprep.subr.bf16.mxu0 0
      %2458 = vmatpush1.bf16.msra.mxu0 %v2441
      %2459 = vmatprep.subr.bf16.mxu0 0
      %2460 = vmatpush2.bf16.msra.mxu0 0
      %2461 = vmatprep.subr.bf16.mxu0 0
      %2462 = vmatpush2.bf16.msra.mxu0 0
      %2463 = vmatprep.subr.bf16.mxu0 0
      %2464 = vmatpush2.bf16.msra.mxu0 0
      %2465 = vmatprep.subr.bf16.mxu0 0
      %2466 = vmatpush2.bf16.msra.mxu0 0
      %2467 = vmatprep.subr.bf16.mxu0 0
      %2468 = vmatpush2.bf16.msra.mxu0 0
      %2469 = vmatprep.subr.bf16.mxu0 0
      %2470 = vmatpush2.bf16.msra.mxu0 0
      %2471 = vmatprep.subr.bf16.mxu0 0
      %2472 = vmatpush2.bf16.msra.mxu0 0
      %2473 = vmatprep.subr.bf16.mxu0 0
      %2474 = vmatpush2.bf16.msra.mxu0 0
      %2475 = vmatprep.mubr.bf16.mxu0 0
      %2476 = vmatmul.mubr.bf16.gmra.mxu0 %v2393
      %v2477 = vpop.f32.mrf.mxu0
      %v2478 = vadd.f32 0.0, %v2477
      %v2479 = vpop.f32.mrf.mxu0
      %v2480 = vpop.f32.mrf.mxu0
      %v2481 = vadd.f32 0.0, %v2480
      %v2482 = vpop.f32.mrf.mxu0
      %2483 = vmatprep.mubr.bf16.mxu0 0
      %2484 = vmatmul.mubr.bf16.gmra.mxu0 %v2396
      %v2485 = vpop.f32.mrf.mxu0
      %v2486 = vadd.f32 0.0, %v2485
      %v2487 = vpop.f32.mrf.mxu0
      %v2488 = vpop.f32.mrf.mxu0
      %v2489 = vadd.f32 0.0, %v2488
      %v2490 = vpop.f32.mrf.mxu0
      %2491 = vmatprep.mubr.bf16.mxu0 0
      %2492 = vmatmul.mubr.bf16.gmra.mxu0 %v2399
      %v2493 = vpop.f32.mrf.mxu0
      %v2494 = vadd.f32 0.0, %v2493
      %v2495 = vpop.f32.mrf.mxu0
      %v2496 = vpop.f32.mrf.mxu0
      %v2497 = vadd.f32 0.0, %v2496
      %v2498 = vpop.f32.mrf.mxu0
      %2499 = vmatprep.mubr.bf16.mxu0 0
      %2500 = vmatmul.mubr.bf16.gmra.mxu0 %v2402
      %v2501 = vpop.f32.mrf.mxu0
      %v2502 = vadd.f32 0.0, %v2501
      %v2503 = vpop.f32.mrf.mxu0
      %v2504 = vpop.f32.mrf.mxu0
      %v2505 = vadd.f32 0.0, %v2504
      %v2506 = vpop.f32.mrf.mxu0
      %2507 = vmatprep.mubr.bf16.mxu0 0
      %2508 = vmatmul.mubr.bf16.gmra.mxu0 %v2405
      %v2509 = vpop.f32.mrf.mxu0
      %v2510 = vadd.f32 0.0, %v2509
      %v2511 = vpop.f32.mrf.mxu0
      %v2512 = vpop.f32.mrf.mxu0
      %v2513 = vadd.f32 0.0, %v2512
      %v2514 = vpop.f32.mrf.mxu0
      %2515 = vmatprep.mubr.bf16.mxu0 0
      %2516 = vmatmul.mubr.bf16.gmra.mxu0 %v2408
      %v2517 = vpop.f32.mrf.mxu0
      %v2518 = vadd.f32 0.0, %v2517
      %v2519 = vpop.f32.mrf.mxu0
      %v2520 = vpop.f32.mrf.mxu0
      %v2521 = vadd.f32 0.0, %v2520
      %v2522 = vpop.f32.mrf.mxu0
      %2523 = vmatprep.mubr.bf16.mxu0 0
      %2524 = vmatmul.mubr.bf16.gmra.mxu0 %v2411
      %v2525 = vpop.f32.mrf.mxu0
      %v2526 = vadd.f32 0.0, %v2525
      %v2527 = vpop.f32.mrf.mxu0
      %v2528 = vpop.f32.mrf.mxu0
      %v2529 = vadd.f32 0.0, %v2528
      %v2530 = vpop.f32.mrf.mxu0
      %2531 = vmatprep.mubr.bf16.mxu0 0
      %2532 = vmatmul.mubr.bf16.gmra.mxu0 %v2414
      %v2533 = vpop.f32.mrf.mxu0
      %v2534 = vadd.f32 0.0, %v2533
      %v2535 = vpop.f32.mrf.mxu0
      %v2536 = vpop.f32.mrf.mxu0
      %v2537 = vadd.f32 0.0, %v2536
      %v2538 = vpop.f32.mrf.mxu0
      %2539 = vmatprep.mubr.bf16.mxu0 0
      %2540 = vmatmul.mubr.bf16.gmra.mxu0 %v2417
      %v2541 = vpop.f32.mrf.mxu0
      %v2542 = vadd.f32 0.0, %v2541
      %v2543 = vpop.f32.mrf.mxu0
      %v2544 = vpop.f32.mrf.mxu0
      %v2545 = vadd.f32 0.0, %v2544
      %v2546 = vpop.f32.mrf.mxu0
      %2547 = vmatprep.mubr.bf16.mxu0 0
      %2548 = vmatmul.mubr.bf16.gmra.mxu0 %v2420
      %v2549 = vpop.f32.mrf.mxu0
      %v2550 = vadd.f32 0.0, %v2549
      %v2551 = vpop.f32.mrf.mxu0
      %v2552 = vpop.f32.mrf.mxu0
      %v2553 = vadd.f32 0.0, %v2552
      %v2554 = vpop.f32.mrf.mxu0
      %2555 = vmatprep.mubr.bf16.mxu0 0
      %2556 = vmatmul.mubr.bf16.gmra.mxu0 %v2423
      %v2557 = vpop.f32.mrf.mxu0
      %v2558 = vadd.f32 0.0, %v2557
      %v2559 = vpop.f32.mrf.mxu0
      %v2560 = vpop.f32.mrf.mxu0
      %v2561 = vadd.f32 0.0, %v2560
      %v2562 = vpop.f32.mrf.mxu0
      %2563 = vmatprep.mubr.bf16.mxu0 0
      %2564 = vmatmul.mubr.bf16.gmra.mxu0 %v2426
      %v2565 = vpop.f32.mrf.mxu0
      %v2566 = vadd.f32 0.0, %v2565
      %v2567 = vpop.f32.mrf.mxu0
      %v2568 = vpop.f32.mrf.mxu0
      %v2569 = vadd.f32 0.0, %v2568
      %v2570 = vpop.f32.mrf.mxu0
      %2571 = vmatprep.mubr.bf16.mxu0 0
      %2572 = vmatmul.mubr.bf16.gmra.mxu0 %v2429
      %v2573 = vpop.f32.mrf.mxu0
      %v2574 = vadd.f32 0.0, %v2573
      %v2575 = vpop.f32.mrf.mxu0
      %v2576 = vpop.f32.mrf.mxu0
      %v2577 = vadd.f32 0.0, %v2576
      %v2578 = vpop.f32.mrf.mxu0
      %2579 = vmatprep.mubr.bf16.mxu0 0
      %2580 = vmatmul.mubr.bf16.gmra.mxu0 %v2432
      %v2581 = vpop.f32.mrf.mxu0
      %v2582 = vadd.f32 0.0, %v2581
      %v2583 = vpop.f32.mrf.mxu0
      %v2584 = vpop.f32.mrf.mxu0
      %v2585 = vadd.f32 0.0, %v2584
      %v2586 = vpop.f32.mrf.mxu0
      %2587 = vmatprep.mubr.bf16.mxu0 0
      %2588 = vmatmul.mubr.bf16.gmra.mxu0 %v2435
      %v2589 = vpop.f32.mrf.mxu0
      %v2590 = vadd.f32 0.0, %v2589
      %v2591 = vpop.f32.mrf.mxu0
      %v2592 = vpop.f32.mrf.mxu0
      %v2593 = vadd.f32 0.0, %v2592
      %v2594 = vpop.f32.mrf.mxu0
      %2595 = vmatprep.mubr.bf16.mxu0 0
      %2596 = vmatmul.mubr.bf16.gmra.mxu0 %v2438
      %v2597 = vpop.f32.mrf.mxu0
      %v2598 = vadd.f32 0.0, %v2597
      %v2599 = vpop.f32.mrf.mxu0
      %v2600 = vpop.f32.mrf.mxu0
      %v2601 = vadd.f32 0.0, %v2600
      %v2602 = vpop.f32.mrf.mxu0
      %2603 = vdwg.mxu0
      %v2604 = vadd.f32 %v1996, %v2478
      %v2605 = vadd.f32 %v1999, %v2481
      %v2606 = vadd.f32 %v2004, %v2486
      %v2607 = vadd.f32 %v2007, %v2489
      %v2608 = vadd.f32 %v2012, %v2494
      %v2609 = vadd.f32 %v2015, %v2497
      %v2610 = vadd.f32 %v2020, %v2502
      %v2611 = vadd.f32 %v2023, %v2505
      %v2612 = vadd.f32 %v2028, %v2510
      %v2613 = vadd.f32 %v2031, %v2513
      %v2614 = vadd.f32 %v2036, %v2518
      %v2615 = vadd.f32 %v2039, %v2521
      %v2616 = vadd.f32 %v2044, %v2526
      %v2617 = vadd.f32 %v2047, %v2529
      %v2618 = vadd.f32 %v2052, %v2534
      %v2619 = vadd.f32 %v2055, %v2537
      %v2620 = vadd.f32 %v2060, %v2542
      %v2621 = vadd.f32 %v2063, %v2545
      %v2622 = vadd.f32 %v2068, %v2550
      %v2623 = vadd.f32 %v2071, %v2553
      %v2624 = vadd.f32 %v2076, %v2558
      %v2625 = vadd.f32 %v2079, %v2561
      %v2626 = vadd.f32 %v2084, %v2566
      %v2627 = vadd.f32 %v2087, %v2569
      %v2628 = vadd.f32 %v2092, %v2574
      %v2629 = vadd.f32 %v2095, %v2577
      %v2630 = vadd.f32 %v2100, %v2582
      %v2631 = vadd.f32 %v2103, %v2585
      %v2632 = vadd.f32 %v2108, %v2590
      %v2633 = vadd.f32 %v2111, %v2593
      %v2634 = vadd.f32 %v2116, %v2598
      %v2635 = vadd.f32 %v2119, %v2601
      %vm2636 = vcmp.gt.s32.totalorder %v1386, 0
      %vm2637 = vcmp.gt.s32.totalorder %v1387, 0
      %vm2638 = vcmp.gt.s32.totalorder %v1388, 0
      %vm2639 = vcmp.gt.s32.totalorder %v1389, 0
      %vm2640 = vcmp.gt.s32.totalorder %v1390, 0
      %vm2641 = vcmp.gt.s32.totalorder %v1391, 0
      %vm2642 = vcmp.gt.s32.totalorder %v1392, 0
      %vm2643 = vcmp.gt.s32.totalorder %v1393, 0
      %vm2644 = vcmp.gt.s32.totalorder %v1394, 0
      %vm2645 = vcmp.gt.s32.totalorder %v1395, 0
      %vm2646 = vcmp.gt.s32.totalorder %v1396, 0
      %vm2647 = vcmp.gt.s32.totalorder %v1397, 0
      %vm2648 = vcmp.gt.s32.totalorder %v1398, 0
      %vm2649 = vcmp.gt.s32.totalorder %v1399, 0
      %vm2650 = vcmp.gt.s32.totalorder %v1400, 0
      %vm2651 = vcmp.gt.s32.totalorder %v1401, 0
      %vm2652 = vcmp.gt.s32.totalorder %v1402, 0
      %vm2653 = vcmp.gt.s32.totalorder %v1403, 0
      %vm2654 = vcmp.gt.s32.totalorder %v1404, 0
      %vm2655 = vcmp.gt.s32.totalorder %v1405, 0
      %vm2656 = vcmp.gt.s32.totalorder %v1406, 0
      %vm2657 = vcmp.gt.s32.totalorder %v1407, 0
      %vm2658 = vcmp.gt.s32.totalorder %v1408, 0
      %vm2659 = vcmp.gt.s32.totalorder %v1409, 0
      %vm2660 = vcmp.gt.s32.totalorder %v1410, 0
      %vm2661 = vcmp.gt.s32.totalorder %v1411, 0
      %vm2662 = vcmp.gt.s32.totalorder %v1412, 0
      %vm2663 = vcmp.gt.s32.totalorder %v1413, 0
      %vm2664 = vcmp.gt.s32.totalorder %v1414, 0
      %vm2665 = vcmp.gt.s32.totalorder %v1415, 0
      %vm2666 = vcmp.gt.s32.totalorder %v1416, 0
      %vm2667 = vcmp.gt.s32.totalorder %v1417, 0
      %v2668 = vsel %vm2636, 1, 0
      %v2669 = vsel %vm2637, 1, 0
      %v2670 = vsel %vm2638, 1, 0
      %v2671 = vsel %vm2639, 1, 0
      %v2672 = vsel %vm2640, 1, 0
      %v2673 = vsel %vm2641, 1, 0
      %v2674 = vsel %vm2642, 1, 0
      %v2675 = vsel %vm2643, 1, 0
      %v2676 = vsel %vm2644, 1, 0
      %v2677 = vsel %vm2645, 1, 0
      %v2678 = vsel %vm2646, 1, 0
      %v2679 = vsel %vm2647, 1, 0
      %v2680 = vsel %vm2648, 1, 0
      %v2681 = vsel %vm2649, 1, 0
      %v2682 = vsel %vm2650, 1, 0
      %v2683 = vsel %vm2651, 1, 0
      %v2684 = vsel %vm2652, 1, 0
      %v2685 = vsel %vm2653, 1, 0
      %v2686 = vsel %vm2654, 1, 0
      %v2687 = vsel %vm2655, 1, 0
      %v2688 = vsel %vm2656, 1, 0
      %v2689 = vsel %vm2657, 1, 0
      %v2690 = vsel %vm2658, 1, 0
      %v2691 = vsel %vm2659, 1, 0
      %v2692 = vsel %vm2660, 1, 0
      %v2693 = vsel %vm2661, 1, 0
      %v2694 = vsel %vm2662, 1, 0
      %v2695 = vsel %vm2663, 1, 0
      %v2696 = vsel %vm2664, 1, 0
      %v2697 = vsel %vm2665, 1, 0
      %v2698 = vsel %vm2666, 1, 0
      %v2699 = vsel %vm2667, 1, 0
      %vm2700 = vcmp.eq.s32.totalorder %v2668, 1
      %vm2701 = vcmp.eq.s32.totalorder %v2669, 1
      %vm2702 = vcmp.eq.s32.totalorder %v2670, 1
      %vm2703 = vcmp.eq.s32.totalorder %v2671, 1
      %vm2704 = vcmp.eq.s32.totalorder %v2672, 1
      %vm2705 = vcmp.eq.s32.totalorder %v2673, 1
      %vm2706 = vcmp.eq.s32.totalorder %v2674, 1
      %vm2707 = vcmp.eq.s32.totalorder %v2675, 1
      %vm2708 = vcmp.eq.s32.totalorder %v2676, 1
      %vm2709 = vcmp.eq.s32.totalorder %v2677, 1
      %vm2710 = vcmp.eq.s32.totalorder %v2678, 1
      %vm2711 = vcmp.eq.s32.totalorder %v2679, 1
      %vm2712 = vcmp.eq.s32.totalorder %v2680, 1
      %vm2713 = vcmp.eq.s32.totalorder %v2681, 1
      %vm2714 = vcmp.eq.s32.totalorder %v2682, 1
      %vm2715 = vcmp.eq.s32.totalorder %v2683, 1
      %vm2716 = vcmp.eq.s32.totalorder %v2684, 1
      %vm2717 = vcmp.eq.s32.totalorder %v2685, 1
      %vm2718 = vcmp.eq.s32.totalorder %v2686, 1
      %vm2719 = vcmp.eq.s32.totalorder %v2687, 1
      %vm2720 = vcmp.eq.s32.totalorder %v2688, 1
      %vm2721 = vcmp.eq.s32.totalorder %v2689, 1
      %vm2722 = vcmp.eq.s32.totalorder %v2690, 1
      %vm2723 = vcmp.eq.s32.totalorder %v2691, 1
      %vm2724 = vcmp.eq.s32.totalorder %v2692, 1
      %vm2725 = vcmp.eq.s32.totalorder %v2693, 1
      %vm2726 = vcmp.eq.s32.totalorder %v2694, 1
      %vm2727 = vcmp.eq.s32.totalorder %v2695, 1
      %vm2728 = vcmp.eq.s32.totalorder %v2696, 1
      %vm2729 = vcmp.eq.s32.totalorder %v2697, 1
      %vm2730 = vcmp.eq.s32.totalorder %v2698, 1
      %vm2731 = vcmp.eq.s32.totalorder %v2699, 1
      %v2732 = vsel %vm2700, %v2604, 0.0
      %v2733 = vsel %vm2701, %v2605, 0.0
      %v2734 = vsel %vm2702, %v2606, 0.0
      %v2735 = vsel %vm2703, %v2607, 0.0
      %v2736 = vsel %vm2704, %v2608, 0.0
      %v2737 = vsel %vm2705, %v2609, 0.0
      %v2738 = vsel %vm2706, %v2610, 0.0
      %v2739 = vsel %vm2707, %v2611, 0.0
      %v2740 = vsel %vm2708, %v2612, 0.0
      %v2741 = vsel %vm2709, %v2613, 0.0
      %v2742 = vsel %vm2710, %v2614, 0.0
      %v2743 = vsel %vm2711, %v2615, 0.0
      %v2744 = vsel %vm2712, %v2616, 0.0
      %v2745 = vsel %vm2713, %v2617, 0.0
      %v2746 = vsel %vm2714, %v2618, 0.0
      %v2747 = vsel %vm2715, %v2619, 0.0
      %v2748 = vsel %vm2716, %v2620, 0.0
      %v2749 = vsel %vm2717, %v2621, 0.0
      %v2750 = vsel %vm2718, %v2622, 0.0
      %v2751 = vsel %vm2719, %v2623, 0.0
      %v2752 = vsel %vm2720, %v2624, 0.0
      %v2753 = vsel %vm2721, %v2625, 0.0
      %v2754 = vsel %vm2722, %v2626, 0.0
      %v2755 = vsel %vm2723, %v2627, 0.0
      %v2756 = vsel %vm2724, %v2628, 0.0
      %v2757 = vsel %vm2725, %v2629, 0.0
      %v2758 = vsel %vm2726, %v2630, 0.0
      %v2759 = vsel %vm2727, %v2631, 0.0
      %v2760 = vsel %vm2728, %v2632, 0.0
      %v2761 = vsel %vm2729, %v2633, 0.0
      %v2762 = vsel %vm2730, %v2634, 0.0
      %v2763 = vsel %vm2731, %v2635, 0.0
      %v2764 = vadd.f32 %v1425, %v2732
      %v2765 = vadd.f32 %v1425, %v2733
      %v2766 = vadd.f32 %v1425, %v2734
      %v2767 = vadd.f32 %v1425, %v2735
      %v2768 = vadd.f32 %v1425, %v2736
      %v2769 = vadd.f32 %v1425, %v2737
      %v2770 = vadd.f32 %v1425, %v2738
      %v2771 = vadd.f32 %v1425, %v2739
      %v2772 = vadd.f32 %v1425, %v2740
      %v2773 = vadd.f32 %v1425, %v2741
      %v2774 = vadd.f32 %v1425, %v2742
      %v2775 = vadd.f32 %v1425, %v2743
      %v2776 = vadd.f32 %v1425, %v2744
      %v2777 = vadd.f32 %v1425, %v2745
      %v2778 = vadd.f32 %v1425, %v2746
      %v2779 = vadd.f32 %v1425, %v2747
      %v2780 = vadd.f32 %v1425, %v2748
      %v2781 = vadd.f32 %v1425, %v2749
      %v2782 = vadd.f32 %v1425, %v2750
      %v2783 = vadd.f32 %v1425, %v2751
      %v2784 = vadd.f32 %v1425, %v2752
      %v2785 = vadd.f32 %v1425, %v2753
      %v2786 = vadd.f32 %v1425, %v2754
      %v2787 = vadd.f32 %v1425, %v2755
      %v2788 = vadd.f32 %v1425, %v2756
      %v2789 = vadd.f32 %v1425, %v2757
      %v2790 = vadd.f32 %v1425, %v2758
      %v2791 = vadd.f32 %v1425, %v2759
      %v2792 = vadd.f32 %v1425, %v2760
      %v2793 = vadd.f32 %v1425, %v2761
      %v2794 = vadd.f32 %v1425, %v2762
      %v2795 = vadd.f32 %v1425, %v2763
      %s2796 = scalar_lea.vmem %s5, 2
      %v2797 = vld [vmem:[%s2796] sm:$0x3]
      %s2798 = scalar_lea.vmem %s5, 8
      %v2799 = vld [vmem:[%s2798] sm:$0x3]
      %v2800 = vpack.c.b16 %v1500, %v1499
      %v2801 = vpack.c.b16 %v1502, %v1501
      %v2802 = vpack.c.b16 %v1504, %v1503
      %v2803 = vpack.c.b16 %v1506, %v1505
      %v2804 = vpack.c.b16 %v1508, %v1507
      %v2805 = vpack.c.b16 %v1510, %v1509
      %v2806 = vpack.c.b16 %v1512, %v1511
      %v2807 = vpack.c.b16 %v1514, %v1513
      %v2808 = vpack.c.b16 %v1516, %v1515
      %v2809 = vpack.c.b16 %v1518, %v1517
      %v2810 = vpack.c.b16 %v1520, %v1519
      %v2811 = vpack.c.b16 %v1522, %v1521
      %v2812 = vpack.c.b16 %v1524, %v1523
      %v2813 = vpack.c.b16 %v1526, %v1525
      %v2814 = vpack.c.b16 %v1528, %v1527
      %v2815 = vpack.c.b16 %v1530, %v1529
      %v2817 = vsel %vm586, %v2800, 0
      %v2820 = vsel %vm586, %v2801, 0
      %v2823 = vsel %vm586, %v2802, 0
      %v2826 = vsel %vm586, %v2803, 0
      %v2829 = vsel %vm586, %v2804, 0
      %v2832 = vsel %vm586, %v2805, 0
      %v2835 = vsel %vm586, %v2806, 0
      %v2838 = vsel %vm586, %v2807, 0
      %v2841 = vsel %vm586, %v2808, 0
      %v2844 = vsel %vm586, %v2809, 0
      %v2847 = vsel %vm586, %v2810, 0
      %v2850 = vsel %vm586, %v2811, 0
      %v2853 = vsel %vm586, %v2812, 0
      %v2856 = vsel %vm586, %v2813, 0
      %v2859 = vsel %vm586, %v2814, 0
      %v2862 = vsel %vm586, %v2815, 0
      %v2865 = vsel %vm635, %v2799, 0
      %2867 = vmatprep.subr.bf16.mxu0 0
      %2868 = vmatpush1.bf16.msra.mxu0 0
      %2869 = vmatprep.subr.bf16.mxu0 0
      %2870 = vmatpush1.bf16.msra.mxu0 0
      %2871 = vmatprep.subr.bf16.mxu0 0
      %2872 = vmatpush1.bf16.msra.mxu0 0
      %2873 = vmatprep.subr.bf16.mxu0 0
      %2874 = vmatpush1.bf16.msra.mxu0 0
      %2875 = vmatprep.subr.bf16.mxu0 0
      %2876 = vmatpush1.bf16.msra.mxu0 0
      %2877 = vmatprep.subr.bf16.mxu0 0
      %2878 = vmatpush1.bf16.msra.mxu0 0
      %2879 = vmatprep.subr.bf16.mxu0 0
      %2880 = vmatpush1.bf16.msra.mxu0 0
      %2881 = vmatprep.subr.bf16.mxu0 0
      %2882 = vmatpush1.bf16.msra.mxu0 %v2865
      %2883 = vmatprep.subr.bf16.mxu0 0
      %2884 = vmatpush2.bf16.msra.mxu0 0
      %2885 = vmatprep.subr.bf16.mxu0 0
      %2886 = vmatpush2.bf16.msra.mxu0 0
      %2887 = vmatprep.subr.bf16.mxu0 0
      %2888 = vmatpush2.bf16.msra.mxu0 0
      %2889 = vmatprep.subr.bf16.mxu0 0
      %2890 = vmatpush2.bf16.msra.mxu0 0
      %2891 = vmatprep.subr.bf16.mxu0 0
      %2892 = vmatpush2.bf16.msra.mxu0 0
      %2893 = vmatprep.subr.bf16.mxu0 0
      %2894 = vmatpush2.bf16.msra.mxu0 0
      %2895 = vmatprep.subr.bf16.mxu0 0
      %2896 = vmatpush2.bf16.msra.mxu0 0
      %2897 = vmatprep.subr.bf16.mxu0 0
      %2898 = vmatpush2.bf16.msra.mxu0 0
      %2899 = vmatprep.mubr.bf16.mxu0 0
      %2900 = vmatmul.mubr.bf16.gmra.mxu0 %v2817
      %v2901 = vpop.f32.mrf.mxu0
      %v2902 = vadd.f32 0.0, %v2901
      %v2903 = vpop.f32.mrf.mxu0
      %v2904 = vpop.f32.mrf.mxu0
      %v2905 = vadd.f32 0.0, %v2904
      %v2906 = vpop.f32.mrf.mxu0
      %2907 = vmatprep.mubr.bf16.mxu0 0
      %2908 = vmatmul.mubr.bf16.gmra.mxu0 %v2820
      %v2909 = vpop.f32.mrf.mxu0
      %v2910 = vadd.f32 0.0, %v2909
      %v2911 = vpop.f32.mrf.mxu0
      %v2912 = vpop.f32.mrf.mxu0
      %v2913 = vadd.f32 0.0, %v2912
      %v2914 = vpop.f32.mrf.mxu0
      %2915 = vmatprep.mubr.bf16.mxu0 0
      %2916 = vmatmul.mubr.bf16.gmra.mxu0 %v2823
      %v2917 = vpop.f32.mrf.mxu0
      %v2918 = vadd.f32 0.0, %v2917
      %v2919 = vpop.f32.mrf.mxu0
      %v2920 = vpop.f32.mrf.mxu0
      %v2921 = vadd.f32 0.0, %v2920
      %v2922 = vpop.f32.mrf.mxu0
      %2923 = vmatprep.mubr.bf16.mxu0 0
      %2924 = vmatmul.mubr.bf16.gmra.mxu0 %v2826
      %v2925 = vpop.f32.mrf.mxu0
      %v2926 = vadd.f32 0.0, %v2925
      %v2927 = vpop.f32.mrf.mxu0
      %v2928 = vpop.f32.mrf.mxu0
      %v2929 = vadd.f32 0.0, %v2928
      %v2930 = vpop.f32.mrf.mxu0
      %2931 = vmatprep.mubr.bf16.mxu0 0
      %2932 = vmatmul.mubr.bf16.gmra.mxu0 %v2829
      %v2933 = vpop.f32.mrf.mxu0
      %v2934 = vadd.f32 0.0, %v2933
      %v2935 = vpop.f32.mrf.mxu0
      %v2936 = vpop.f32.mrf.mxu0
      %v2937 = vadd.f32 0.0, %v2936
      %v2938 = vpop.f32.mrf.mxu0
      %2939 = vmatprep.mubr.bf16.mxu0 0
      %2940 = vmatmul.mubr.bf16.gmra.mxu0 %v2832
      %v2941 = vpop.f32.mrf.mxu0
      %v2942 = vadd.f32 0.0, %v2941
      %v2943 = vpop.f32.mrf.mxu0
      %v2944 = vpop.f32.mrf.mxu0
      %v2945 = vadd.f32 0.0, %v2944
      %v2946 = vpop.f32.mrf.mxu0
      %2947 = vmatprep.mubr.bf16.mxu0 0
      %2948 = vmatmul.mubr.bf16.gmra.mxu0 %v2835
      %v2949 = vpop.f32.mrf.mxu0
      %v2950 = vadd.f32 0.0, %v2949
      %v2951 = vpop.f32.mrf.mxu0
      %v2952 = vpop.f32.mrf.mxu0
      %v2953 = vadd.f32 0.0, %v2952
      %v2954 = vpop.f32.mrf.mxu0
      %2955 = vmatprep.mubr.bf16.mxu0 0
      %2956 = vmatmul.mubr.bf16.gmra.mxu0 %v2838
      %v2957 = vpop.f32.mrf.mxu0
      %v2958 = vadd.f32 0.0, %v2957
      %v2959 = vpop.f32.mrf.mxu0
      %v2960 = vpop.f32.mrf.mxu0
      %v2961 = vadd.f32 0.0, %v2960
      %v2962 = vpop.f32.mrf.mxu0
      %2963 = vmatprep.mubr.bf16.mxu0 0
      %2964 = vmatmul.mubr.bf16.gmra.mxu0 %v2841
      %v2965 = vpop.f32.mrf.mxu0
      %v2966 = vadd.f32 0.0, %v2965
      %v2967 = vpop.f32.mrf.mxu0
      %v2968 = vpop.f32.mrf.mxu0
      %v2969 = vadd.f32 0.0, %v2968
      %v2970 = vpop.f32.mrf.mxu0
      %2971 = vmatprep.mubr.bf16.mxu0 0
      %2972 = vmatmul.mubr.bf16.gmra.mxu0 %v2844
      %v2973 = vpop.f32.mrf.mxu0
      %v2974 = vadd.f32 0.0, %v2973
      %v2975 = vpop.f32.mrf.mxu0
      %v2976 = vpop.f32.mrf.mxu0
      %v2977 = vadd.f32 0.0, %v2976
      %v2978 = vpop.f32.mrf.mxu0
      %2979 = vmatprep.mubr.bf16.mxu0 0
      %2980 = vmatmul.mubr.bf16.gmra.mxu0 %v2847
      %v2981 = vpop.f32.mrf.mxu0
      %v2982 = vadd.f32 0.0, %v2981
      %v2983 = vpop.f32.mrf.mxu0
      %v2984 = vpop.f32.mrf.mxu0
      %v2985 = vadd.f32 0.0, %v2984
      %v2986 = vpop.f32.mrf.mxu0
      %2987 = vmatprep.mubr.bf16.mxu0 0
      %2988 = vmatmul.mubr.bf16.gmra.mxu0 %v2850
      %v2989 = vpop.f32.mrf.mxu0
      %v2990 = vadd.f32 0.0, %v2989
      %v2991 = vpop.f32.mrf.mxu0
      %v2992 = vpop.f32.mrf.mxu0
      %v2993 = vadd.f32 0.0, %v2992
      %v2994 = vpop.f32.mrf.mxu0
      %2995 = vmatprep.mubr.bf16.mxu0 0
      %2996 = vmatmul.mubr.bf16.gmra.mxu0 %v2853
      %v2997 = vpop.f32.mrf.mxu0
      %v2998 = vadd.f32 0.0, %v2997
      %v2999 = vpop.f32.mrf.mxu0
      %v3000 = vpop.f32.mrf.mxu0
      %v3001 = vadd.f32 0.0, %v3000
      %v3002 = vpop.f32.mrf.mxu0
      %3003 = vmatprep.mubr.bf16.mxu0 0
      %3004 = vmatmul.mubr.bf16.gmra.mxu0 %v2856
      %v3005 = vpop.f32.mrf.mxu0
      %v3006 = vadd.f32 0.0, %v3005
      %v3007 = vpop.f32.mrf.mxu0
      %v3008 = vpop.f32.mrf.mxu0
      %v3009 = vadd.f32 0.0, %v3008
      %v3010 = vpop.f32.mrf.mxu0
      %3011 = vmatprep.mubr.bf16.mxu0 0
      %3012 = vmatmul.mubr.bf16.gmra.mxu0 %v2859
      %v3013 = vpop.f32.mrf.mxu0
      %v3014 = vadd.f32 0.0, %v3013
      %v3015 = vpop.f32.mrf.mxu0
      %v3016 = vpop.f32.mrf.mxu0
      %v3017 = vadd.f32 0.0, %v3016
      %v3018 = vpop.f32.mrf.mxu0
      %3019 = vmatprep.mubr.bf16.mxu0 0
      %3020 = vmatmul.mubr.bf16.gmra.mxu0 %v2862
      %v3021 = vpop.f32.mrf.mxu0
      %v3022 = vadd.f32 0.0, %v3021
      %v3023 = vpop.f32.mrf.mxu0
      %v3024 = vpop.f32.mrf.mxu0
      %v3025 = vadd.f32 0.0, %v3024
      %v3026 = vpop.f32.mrf.mxu0
      %3027 = vdwg.mxu0
      %v3028 = vpack.c.b16 %v1918, %v1917
      %v3030 = vsel %vm586, %v3028, 0
      %v3033 = vsel %vm635, %v2797, 0
      %3035 = vmatprep.subr.bf16.mxu0 0
      %3036 = vmatpush1.bf16.msra.mxu0 0
      %3037 = vmatprep.subr.bf16.mxu0 0
      %3038 = vmatpush1.bf16.msra.mxu0 0
      %3039 = vmatprep.subr.bf16.mxu0 0
      %3040 = vmatpush1.bf16.msra.mxu0 0
      %3041 = vmatprep.subr.bf16.mxu0 0
      %3042 = vmatpush1.bf16.msra.mxu0 0
      %3043 = vmatprep.subr.bf16.mxu0 0
      %3044 = vmatpush1.bf16.msra.mxu0 0
      %3045 = vmatprep.subr.bf16.mxu0 0
      %3046 = vmatpush1.bf16.msra.mxu0 0
      %3047 = vmatprep.subr.bf16.mxu0 0
      %3048 = vmatpush1.bf16.msra.mxu0 0
      %3049 = vmatprep.subr.bf16.mxu0 0
      %3050 = vmatpush1.bf16.msra.mxu0 %v3033
      %3051 = vmatprep.subr.bf16.mxu0 0
      %3052 = vmatpush2.bf16.msra.mxu0 0
      %3053 = vmatprep.subr.bf16.mxu0 0
      %3054 = vmatpush2.bf16.msra.mxu0 0
      %3055 = vmatprep.subr.bf16.mxu0 0
      %3056 = vmatpush2.bf16.msra.mxu0 0
      %3057 = vmatprep.subr.bf16.mxu0 0
      %3058 = vmatpush2.bf16.msra.mxu0 0
      %3059 = vmatprep.subr.bf16.mxu0 0
      %3060 = vmatpush2.bf16.msra.mxu0 0
      %3061 = vmatprep.subr.bf16.mxu0 0
      %3062 = vmatpush2.bf16.msra.mxu0 0
      %3063 = vmatprep.subr.bf16.mxu0 0
      %3064 = vmatpush2.bf16.msra.mxu0 0
      %3065 = vmatprep.subr.bf16.mxu0 0
      %3066 = vmatpush2.bf16.msra.mxu0 0
      %3067 = vmatprep.mubr.bf16.mxu0 0
      %3068 = vmatmul.mubr.bf16.gmra.mxu0 %v3030
      %v3069 = vpop.f32.mrf.mxu0
      %v3070 = vadd.f32 %v2902, %v3069
      %v3071 = vpop.f32.mrf.mxu0
      %v3072 = vpop.f32.mrf.mxu0
      %v3073 = vadd.f32 %v2905, %v3072
      %v3074 = vpop.f32.mrf.mxu0
      %3075 = vmatprep.mubr.bf16.mxu0 0
      %3076 = vmatmul.mubr.bf16.gmra.mxu0 %v2817
      %v3077 = vpop.f32.mrf.mxu0
      %v3078 = vadd.f32 %v2910, %v3077
      %v3079 = vpop.f32.mrf.mxu0
      %v3080 = vpop.f32.mrf.mxu0
      %v3081 = vadd.f32 %v2913, %v3080
      %v3082 = vpop.f32.mrf.mxu0
      %3083 = vmatprep.mubr.bf16.mxu0 0
      %3084 = vmatmul.mubr.bf16.gmra.mxu0 %v2820
      %v3085 = vpop.f32.mrf.mxu0
      %v3086 = vadd.f32 %v2918, %v3085
      %v3087 = vpop.f32.mrf.mxu0
      %v3088 = vpop.f32.mrf.mxu0
      %v3089 = vadd.f32 %v2921, %v3088
      %v3090 = vpop.f32.mrf.mxu0
      %3091 = vmatprep.mubr.bf16.mxu0 0
      %3092 = vmatmul.mubr.bf16.gmra.mxu0 %v2823
      %v3093 = vpop.f32.mrf.mxu0
      %v3094 = vadd.f32 %v2926, %v3093
      %v3095 = vpop.f32.mrf.mxu0
      %v3096 = vpop.f32.mrf.mxu0
      %v3097 = vadd.f32 %v2929, %v3096
      %v3098 = vpop.f32.mrf.mxu0
      %3099 = vmatprep.mubr.bf16.mxu0 0
      %3100 = vmatmul.mubr.bf16.gmra.mxu0 %v2826
      %v3101 = vpop.f32.mrf.mxu0
      %v3102 = vadd.f32 %v2934, %v3101
      %v3103 = vpop.f32.mrf.mxu0
      %v3104 = vpop.f32.mrf.mxu0
      %v3105 = vadd.f32 %v2937, %v3104
      %v3106 = vpop.f32.mrf.mxu0
      %3107 = vmatprep.mubr.bf16.mxu0 0
      %3108 = vmatmul.mubr.bf16.gmra.mxu0 %v2829
      %v3109 = vpop.f32.mrf.mxu0
      %v3110 = vadd.f32 %v2942, %v3109
      %v3111 = vpop.f32.mrf.mxu0
      %v3112 = vpop.f32.mrf.mxu0
      %v3113 = vadd.f32 %v2945, %v3112
      %v3114 = vpop.f32.mrf.mxu0
      %3115 = vmatprep.mubr.bf16.mxu0 0
      %3116 = vmatmul.mubr.bf16.gmra.mxu0 %v2832
      %v3117 = vpop.f32.mrf.mxu0
      %v3118 = vadd.f32 %v2950, %v3117
      %v3119 = vpop.f32.mrf.mxu0
      %v3120 = vpop.f32.mrf.mxu0
      %v3121 = vadd.f32 %v2953, %v3120
      %v3122 = vpop.f32.mrf.mxu0
      %3123 = vmatprep.mubr.bf16.mxu0 0
      %3124 = vmatmul.mubr.bf16.gmra.mxu0 %v2835
      %v3125 = vpop.f32.mrf.mxu0
      %v3126 = vadd.f32 %v2958, %v3125
      %v3127 = vpop.f32.mrf.mxu0
      %v3128 = vpop.f32.mrf.mxu0
      %v3129 = vadd.f32 %v2961, %v3128
      %v3130 = vpop.f32.mrf.mxu0
      %3131 = vmatprep.mubr.bf16.mxu0 0
      %3132 = vmatmul.mubr.bf16.gmra.mxu0 %v2838
      %v3133 = vpop.f32.mrf.mxu0
      %v3134 = vadd.f32 %v2966, %v3133
      %v3135 = vpop.f32.mrf.mxu0
      %v3136 = vpop.f32.mrf.mxu0
      %v3137 = vadd.f32 %v2969, %v3136
      %v3138 = vpop.f32.mrf.mxu0
      %3139 = vmatprep.mubr.bf16.mxu0 0
      %3140 = vmatmul.mubr.bf16.gmra.mxu0 %v2841
      %v3141 = vpop.f32.mrf.mxu0
      %v3142 = vadd.f32 %v2974, %v3141
      %v3143 = vpop.f32.mrf.mxu0
      %v3144 = vpop.f32.mrf.mxu0
      %v3145 = vadd.f32 %v2977, %v3144
      %v3146 = vpop.f32.mrf.mxu0
      %3147 = vmatprep.mubr.bf16.mxu0 0
      %3148 = vmatmul.mubr.bf16.gmra.mxu0 %v2844
      %v3149 = vpop.f32.mrf.mxu0
      %v3150 = vadd.f32 %v2982, %v3149
      %v3151 = vpop.f32.mrf.mxu0
      %v3152 = vpop.f32.mrf.mxu0
      %v3153 = vadd.f32 %v2985, %v3152
      %v3154 = vpop.f32.mrf.mxu0
      %3155 = vmatprep.mubr.bf16.mxu0 0
      %3156 = vmatmul.mubr.bf16.gmra.mxu0 %v2847
      %v3157 = vpop.f32.mrf.mxu0
      %v3158 = vadd.f32 %v2990, %v3157
      %v3159 = vpop.f32.mrf.mxu0
      %v3160 = vpop.f32.mrf.mxu0
      %v3161 = vadd.f32 %v2993, %v3160
      %v3162 = vpop.f32.mrf.mxu0
      %3163 = vmatprep.mubr.bf16.mxu0 0
      %3164 = vmatmul.mubr.bf16.gmra.mxu0 %v2850
      %v3165 = vpop.f32.mrf.mxu0
      %v3166 = vadd.f32 %v2998, %v3165
      %v3167 = vpop.f32.mrf.mxu0
      %v3168 = vpop.f32.mrf.mxu0
      %v3169 = vadd.f32 %v3001, %v3168
      %v3170 = vpop.f32.mrf.mxu0
      %3171 = vmatprep.mubr.bf16.mxu0 0
      %3172 = vmatmul.mubr.bf16.gmra.mxu0 %v2853
      %v3173 = vpop.f32.mrf.mxu0
      %v3174 = vadd.f32 %v3006, %v3173
      %v3175 = vpop.f32.mrf.mxu0
      %v3176 = vpop.f32.mrf.mxu0
      %v3177 = vadd.f32 %v3009, %v3176
      %v3178 = vpop.f32.mrf.mxu0
      %3179 = vmatprep.mubr.bf16.mxu0 0
      %3180 = vmatmul.mubr.bf16.gmra.mxu0 %v2856
      %v3181 = vpop.f32.mrf.mxu0
      %v3182 = vadd.f32 %v3014, %v3181
      %v3183 = vpop.f32.mrf.mxu0
      %v3184 = vpop.f32.mrf.mxu0
      %v3185 = vadd.f32 %v3017, %v3184
      %v3186 = vpop.f32.mrf.mxu0
      %3187 = vmatprep.mubr.bf16.mxu0 0
      %3188 = vmatmul.mubr.bf16.gmra.mxu0 %v2859
      %v3189 = vpop.f32.mrf.mxu0
      %v3190 = vadd.f32 %v3022, %v3189
      %v3191 = vpop.f32.mrf.mxu0
      %v3192 = vpop.f32.mrf.mxu0
      %v3193 = vadd.f32 %v3025, %v3192
      %v3194 = vpop.f32.mrf.mxu0
      %3195 = vdwg.mxu0
      %s3196 = scalar_lea.vmem %s5, 14
      %v3197 = vld [vmem:[%s3196] sm:$0x3]
      %v3198 = vpack.c.b16 %v2192, %v2191
      %v3199 = vpack.c.b16 %v2194, %v2193
      %v3200 = vpack.c.b16 %v2196, %v2195
      %v3201 = vpack.c.b16 %v2198, %v2197
      %v3202 = vpack.c.b16 %v2200, %v2199
      %v3203 = vpack.c.b16 %v2202, %v2201
      %v3204 = vpack.c.b16 %v2204, %v2203
      %v3205 = vpack.c.b16 %v2206, %v2205
      %v3206 = vpack.c.b16 %v2208, %v2207
      %v3207 = vpack.c.b16 %v2210, %v2209
      %v3208 = vpack.c.b16 %v2212, %v2211
      %v3209 = vpack.c.b16 %v2214, %v2213
      %v3210 = vpack.c.b16 %v2216, %v2215
      %v3211 = vpack.c.b16 %v2218, %v2217
      %v3212 = vpack.c.b16 %v2220, %v2219
      %v3213 = vpack.c.b16 %v2222, %v2221
      %v3215 = vsel %vm586, %v3198, 0
      %v3218 = vsel %vm586, %v3199, 0
      %v3221 = vsel %vm586, %v3200, 0
      %v3224 = vsel %vm586, %v3201, 0
      %v3227 = vsel %vm586, %v3202, 0
      %v3230 = vsel %vm586, %v3203, 0
      %v3233 = vsel %vm586, %v3204, 0
      %v3236 = vsel %vm586, %v3205, 0
      %v3239 = vsel %vm586, %v3206, 0
      %v3242 = vsel %vm586, %v3207, 0
      %v3245 = vsel %vm586, %v3208, 0
      %v3248 = vsel %vm586, %v3209, 0
      %v3251 = vsel %vm586, %v3210, 0
      %v3254 = vsel %vm586, %v3211, 0
      %v3257 = vsel %vm586, %v3212, 0
      %v3260 = vsel %vm586, %v3213, 0
      %v3263 = vsel %vm635, %v3197, 0
      %3265 = vmatprep.subr.bf16.mxu0 0
      %3266 = vmatpush1.bf16.msra.mxu0 0
      %3267 = vmatprep.subr.bf16.mxu0 0
      %3268 = vmatpush1.bf16.msra.mxu0 0
      %3269 = vmatprep.subr.bf16.mxu0 0
      %3270 = vmatpush1.bf16.msra.mxu0 0
      %3271 = vmatprep.subr.bf16.mxu0 0
      %3272 = vmatpush1.bf16.msra.mxu0 0
      %3273 = vmatprep.subr.bf16.mxu0 0
      %3274 = vmatpush1.bf16.msra.mxu0 0
      %3275 = vmatprep.subr.bf16.mxu0 0
      %3276 = vmatpush1.bf16.msra.mxu0 0
      %3277 = vmatprep.subr.bf16.mxu0 0
      %3278 = vmatpush1.bf16.msra.mxu0 0
      %3279 = vmatprep.subr.bf16.mxu0 0
      %3280 = vmatpush1.bf16.msra.mxu0 %v3263
      %3281 = vmatprep.subr.bf16.mxu0 0
      %3282 = vmatpush2.bf16.msra.mxu0 0
      %3283 = vmatprep.subr.bf16.mxu0 0
      %3284 = vmatpush2.bf16.msra.mxu0 0
      %3285 = vmatprep.subr.bf16.mxu0 0
      %3286 = vmatpush2.bf16.msra.mxu0 0
      %3287 = vmatprep.subr.bf16.mxu0 0
      %3288 = vmatpush2.bf16.msra.mxu0 0
      %3289 = vmatprep.subr.bf16.mxu0 0
      %3290 = vmatpush2.bf16.msra.mxu0 0
      %3291 = vmatprep.subr.bf16.mxu0 0
      %3292 = vmatpush2.bf16.msra.mxu0 0
      %3293 = vmatprep.subr.bf16.mxu0 0
      %3294 = vmatpush2.bf16.msra.mxu0 0
      %3295 = vmatprep.subr.bf16.mxu0 0
      %3296 = vmatpush2.bf16.msra.mxu0 0
      %3297 = vmatprep.mubr.bf16.mxu0 0
      %3298 = vmatmul.mubr.bf16.gmra.mxu0 %v3215
      %v3299 = vpop.f32.mrf.mxu0
      %v3300 = vadd.f32 0.0, %v3299
      %v3301 = vpop.f32.mrf.mxu0
      %v3302 = vpop.f32.mrf.mxu0
      %v3303 = vadd.f32 0.0, %v3302
      %v3304 = vpop.f32.mrf.mxu0
      %3305 = vmatprep.mubr.bf16.mxu0 0
      %3306 = vmatmul.mubr.bf16.gmra.mxu0 %v3218
      %v3307 = vpop.f32.mrf.mxu0
      %v3308 = vadd.f32 0.0, %v3307
      %v3309 = vpop.f32.mrf.mxu0
      %v3310 = vpop.f32.mrf.mxu0
      %v3311 = vadd.f32 0.0, %v3310
      %v3312 = vpop.f32.mrf.mxu0
      %3313 = vmatprep.mubr.bf16.mxu0 0
      %3314 = vmatmul.mubr.bf16.gmra.mxu0 %v3221
      %v3315 = vpop.f32.mrf.mxu0
      %v3316 = vadd.f32 0.0, %v3315
      %v3317 = vpop.f32.mrf.mxu0
      %v3318 = vpop.f32.mrf.mxu0
      %v3319 = vadd.f32 0.0, %v3318
      %v3320 = vpop.f32.mrf.mxu0
      %3321 = vmatprep.mubr.bf16.mxu0 0
      %3322 = vmatmul.mubr.bf16.gmra.mxu0 %v3224
      %v3323 = vpop.f32.mrf.mxu0
      %v3324 = vadd.f32 0.0, %v3323
      %v3325 = vpop.f32.mrf.mxu0
      %v3326 = vpop.f32.mrf.mxu0
      %v3327 = vadd.f32 0.0, %v3326
      %v3328 = vpop.f32.mrf.mxu0
      %3329 = vmatprep.mubr.bf16.mxu0 0
      %3330 = vmatmul.mubr.bf16.gmra.mxu0 %v3227
      %v3331 = vpop.f32.mrf.mxu0
      %v3332 = vadd.f32 0.0, %v3331
      %v3333 = vpop.f32.mrf.mxu0
      %v3334 = vpop.f32.mrf.mxu0
      %v3335 = vadd.f32 0.0, %v3334
      %v3336 = vpop.f32.mrf.mxu0
      %3337 = vmatprep.mubr.bf16.mxu0 0
      %3338 = vmatmul.mubr.bf16.gmra.mxu0 %v3230
      %v3339 = vpop.f32.mrf.mxu0
      %v3340 = vadd.f32 0.0, %v3339
      %v3341 = vpop.f32.mrf.mxu0
      %v3342 = vpop.f32.mrf.mxu0
      %v3343 = vadd.f32 0.0, %v3342
      %v3344 = vpop.f32.mrf.mxu0
      %3345 = vmatprep.mubr.bf16.mxu0 0
      %3346 = vmatmul.mubr.bf16.gmra.mxu0 %v3233
      %v3347 = vpop.f32.mrf.mxu0
      %v3348 = vadd.f32 0.0, %v3347
      %v3349 = vpop.f32.mrf.mxu0
      %v3350 = vpop.f32.mrf.mxu0
      %v3351 = vadd.f32 0.0, %v3350
      %v3352 = vpop.f32.mrf.mxu0
      %3353 = vmatprep.mubr.bf16.mxu0 0
      %3354 = vmatmul.mubr.bf16.gmra.mxu0 %v3236
      %v3355 = vpop.f32.mrf.mxu0
      %v3356 = vadd.f32 0.0, %v3355
      %v3357 = vpop.f32.mrf.mxu0
      %v3358 = vpop.f32.mrf.mxu0
      %v3359 = vadd.f32 0.0, %v3358
      %v3360 = vpop.f32.mrf.mxu0
      %3361 = vmatprep.mubr.bf16.mxu0 0
      %3362 = vmatmul.mubr.bf16.gmra.mxu0 %v3239
      %v3363 = vpop.f32.mrf.mxu0
      %v3364 = vadd.f32 0.0, %v3363
      %v3365 = vpop.f32.mrf.mxu0
      %v3366 = vpop.f32.mrf.mxu0
      %v3367 = vadd.f32 0.0, %v3366
      %v3368 = vpop.f32.mrf.mxu0
      %3369 = vmatprep.mubr.bf16.mxu0 0
      %3370 = vmatmul.mubr.bf16.gmra.mxu0 %v3242
      %v3371 = vpop.f32.mrf.mxu0
      %v3372 = vadd.f32 0.0, %v3371
      %v3373 = vpop.f32.mrf.mxu0
      %v3374 = vpop.f32.mrf.mxu0
      %v3375 = vadd.f32 0.0, %v3374
      %v3376 = vpop.f32.mrf.mxu0
      %3377 = vmatprep.mubr.bf16.mxu0 0
      %3378 = vmatmul.mubr.bf16.gmra.mxu0 %v3245
      %v3379 = vpop.f32.mrf.mxu0
      %v3380 = vadd.f32 0.0, %v3379
      %v3381 = vpop.f32.mrf.mxu0
      %v3382 = vpop.f32.mrf.mxu0
      %v3383 = vadd.f32 0.0, %v3382
      %v3384 = vpop.f32.mrf.mxu0
      %3385 = vmatprep.mubr.bf16.mxu0 0
      %3386 = vmatmul.mubr.bf16.gmra.mxu0 %v3248
      %v3387 = vpop.f32.mrf.mxu0
      %v3388 = vadd.f32 0.0, %v3387
      %v3389 = vpop.f32.mrf.mxu0
      %v3390 = vpop.f32.mrf.mxu0
      %v3391 = vadd.f32 0.0, %v3390
      %v3392 = vpop.f32.mrf.mxu0
      %3393 = vmatprep.mubr.bf16.mxu0 0
      %3394 = vmatmul.mubr.bf16.gmra.mxu0 %v3251
      %v3395 = vpop.f32.mrf.mxu0
      %v3396 = vadd.f32 0.0, %v3395
      %v3397 = vpop.f32.mrf.mxu0
      %v3398 = vpop.f32.mrf.mxu0
      %v3399 = vadd.f32 0.0, %v3398
      %v3400 = vpop.f32.mrf.mxu0
      %3401 = vmatprep.mubr.bf16.mxu0 0
      %3402 = vmatmul.mubr.bf16.gmra.mxu0 %v3254
      %v3403 = vpop.f32.mrf.mxu0
      %v3404 = vadd.f32 0.0, %v3403
      %v3405 = vpop.f32.mrf.mxu0
      %v3406 = vpop.f32.mrf.mxu0
      %v3407 = vadd.f32 0.0, %v3406
      %v3408 = vpop.f32.mrf.mxu0
      %3409 = vmatprep.mubr.bf16.mxu0 0
      %3410 = vmatmul.mubr.bf16.gmra.mxu0 %v3257
      %v3411 = vpop.f32.mrf.mxu0
      %v3412 = vadd.f32 0.0, %v3411
      %v3413 = vpop.f32.mrf.mxu0
      %v3414 = vpop.f32.mrf.mxu0
      %v3415 = vadd.f32 0.0, %v3414
      %v3416 = vpop.f32.mrf.mxu0
      %3417 = vmatprep.mubr.bf16.mxu0 0
      %3418 = vmatmul.mubr.bf16.gmra.mxu0 %v3260
      %v3419 = vpop.f32.mrf.mxu0
      %v3420 = vadd.f32 0.0, %v3419
      %v3421 = vpop.f32.mrf.mxu0
      %v3422 = vpop.f32.mrf.mxu0
      %v3423 = vadd.f32 0.0, %v3422
      %v3424 = vpop.f32.mrf.mxu0
      %3425 = vdwg.mxu0
      %v3426 = vadd.f32 %v3070, %v3300
      %v3427 = vadd.f32 %v3073, %v3303
      %v3428 = vadd.f32 %v3078, %v3308
      %v3429 = vadd.f32 %v3081, %v3311
      %v3430 = vadd.f32 %v3086, %v3316
      %v3431 = vadd.f32 %v3089, %v3319
      %v3432 = vadd.f32 %v3094, %v3324
      %v3433 = vadd.f32 %v3097, %v3327
      %v3434 = vadd.f32 %v3102, %v3332
      %v3435 = vadd.f32 %v3105, %v3335
      %v3436 = vadd.f32 %v3110, %v3340
      %v3437 = vadd.f32 %v3113, %v3343
      %v3438 = vadd.f32 %v3118, %v3348
      %v3439 = vadd.f32 %v3121, %v3351
      %v3440 = vadd.f32 %v3126, %v3356
      %v3441 = vadd.f32 %v3129, %v3359
      %v3442 = vadd.f32 %v3134, %v3364
      %v3443 = vadd.f32 %v3137, %v3367
      %v3444 = vadd.f32 %v3142, %v3372
      %v3445 = vadd.f32 %v3145, %v3375
      %v3446 = vadd.f32 %v3150, %v3380
      %v3447 = vadd.f32 %v3153, %v3383
      %v3448 = vadd.f32 %v3158, %v3388
      %v3449 = vadd.f32 %v3161, %v3391
      %v3450 = vadd.f32 %v3166, %v3396
      %v3451 = vadd.f32 %v3169, %v3399
      %v3452 = vadd.f32 %v3174, %v3404
      %v3453 = vadd.f32 %v3177, %v3407
      %v3454 = vadd.f32 %v3182, %v3412
      %v3455 = vadd.f32 %v3185, %v3415
      %v3456 = vadd.f32 %v3190, %v3420
      %v3457 = vadd.f32 %v3193, %v3423
      %v3458 = vadd.f32 %v2764, %v3426
      %v3459 = vadd.f32 %v2765, %v3427
      %v3460 = vadd.f32 %v2766, %v3428
      %v3461 = vadd.f32 %v2767, %v3429
      %v3462 = vadd.f32 %v2768, %v3430
      %v3463 = vadd.f32 %v2769, %v3431
      %v3464 = vadd.f32 %v2770, %v3432
      %v3465 = vadd.f32 %v2771, %v3433
      %v3466 = vadd.f32 %v2772, %v3434
      %v3467 = vadd.f32 %v2773, %v3435
      %v3468 = vadd.f32 %v2774, %v3436
      %v3469 = vadd.f32 %v2775, %v3437
      %v3470 = vadd.f32 %v2776, %v3438
      %v3471 = vadd.f32 %v2777, %v3439
      %v3472 = vadd.f32 %v2778, %v3440
      %v3473 = vadd.f32 %v2779, %v3441
      %v3474 = vadd.f32 %v2780, %v3442
      %v3475 = vadd.f32 %v2781, %v3443
      %v3476 = vadd.f32 %v2782, %v3444
      %v3477 = vadd.f32 %v2783, %v3445
      %v3478 = vadd.f32 %v2784, %v3446
      %v3479 = vadd.f32 %v2785, %v3447
      %v3480 = vadd.f32 %v2786, %v3448
      %v3481 = vadd.f32 %v2787, %v3449
      %v3482 = vadd.f32 %v2788, %v3450
      %v3483 = vadd.f32 %v2789, %v3451
      %v3484 = vadd.f32 %v2790, %v3452
      %v3485 = vadd.f32 %v2791, %v3453
      %v3486 = vadd.f32 %v2792, %v3454
      %v3487 = vadd.f32 %v2793, %v3455
      %v3488 = vadd.f32 %v2794, %v3456
      %v3489 = vadd.f32 %v2795, %v3457
      %v3490 = vld [vmem:[#allocation2 + $0x8] sm:$0xf]
      %v3491 = vld [vmem:[#allocation2 + $0xc] sm:$0xf]
      %v3492 = vld [vmem:[#allocation2 + $0x10] sm:$0xf]
      %v3493 = vld [vmem:[#allocation2 + $0x14] sm:$0xf]
      %v3494 = vld [vmem:[#allocation2 + $0x18] sm:$0xf]
      %v3495 = vld [vmem:[#allocation2 + $0x1c] sm:$0xf]
      %v3496 = vld [vmem:[#allocation2 + $0x20] sm:$0xf]
      %v3497 = vld [vmem:[#allocation2 + $0x24] sm:$0xf]
      %v3498 = vld [vmem:[#allocation2 + $0x28] sm:$0xf]
      %v3499 = vld [vmem:[#allocation2 + $0x2c] sm:$0xf]
      %v3500 = vld [vmem:[#allocation2 + $0x30] sm:$0xf]
      %v3501 = vld [vmem:[#allocation2 + $0x34] sm:$0xf]
      %v3502 = vld [vmem:[#allocation2 + $0x38] sm:$0xf]
      %v3503 = vld [vmem:[#allocation2 + $0x3c] sm:$0xf]
      %v3504 = vld [vmem:[#allocation2 + $0x40] sm:$0xf]
      %v3505 = vld [vmem:[#allocation2 + $0x44] sm:$0xf]
      %v3506 = vld [vmem:[#allocation2 + $0x48] sm:$0xf]
      %v3507 = vld [vmem:[#allocation2 + $0x4c] sm:$0xf]
      %v3508 = vld [vmem:[#allocation2 + $0x50] sm:$0xf]
      %v3509 = vld [vmem:[#allocation2 + $0x54] sm:$0xf]
      %v3510 = vld [vmem:[#allocation2 + $0x58] sm:$0xf]
      %v3511 = vld [vmem:[#allocation2 + $0x5c] sm:$0xf]
      %v3512 = vld [vmem:[#allocation2 + $0x60] sm:$0xf]
      %v3513 = vld [vmem:[#allocation2 + $0x64] sm:$0xf]
      %v3514 = vld [vmem:[#allocation2 + $0x68] sm:$0xf]
      %v3515 = vld [vmem:[#allocation2 + $0x6c] sm:$0xf]
      %v3516 = vld [vmem:[#allocation2 + $0x70] sm:$0xf]
      %v3517 = vld [vmem:[#allocation2 + $0x74] sm:$0xf]
      %v3518 = vld [vmem:[#allocation2 + $0x78] sm:$0xf]
      %v3519 = vld [vmem:[#allocation2 + $0x7c] sm:$0xf]
      %v3520 = vld [vmem:[#allocation2 + $0x80] sm:$0xf]
      %v3521 = vld [vmem:[#allocation2 + $0x84] sm:$0xf]
      %v3522 = vld [vmem:[#allocation2 + $0x88] sm:$0x1]
      %s3523 = scalar_lea.vmem %s5, 4
      %v3524 = vld [vmem:[%s3523] sm:$0x3]
      %v3525 = vld [vmem:[#allocation2 + $0x88] sm:$0xf]
      %v3526 = vld [vmem:[#allocation2 + $0x8c] sm:$0xf]
      %v3527 = vld [vmem:[#allocation2 + $0x90] sm:$0x1]
      %s3528 = scalar_lea.vmem %s5, 10
      %v3529 = vld [vmem:[%s3528] sm:$0x3]
      %v3563 = vunpack.c.l.b16 %v3492
      %v3564 = vunpack.c.l.b16 %v3493
      %v3565 = vunpack.c.l.b16 %v3494
      %v3566 = vunpack.c.l.b16 %v3495
      %v3567 = vunpack.c.l.b16 %v3496
      %v3568 = vunpack.c.l.b16 %v3497
      %v3569 = vunpack.c.l.b16 %v3498
      %v3570 = vunpack.c.l.b16 %v3499
      %v3571 = vunpack.c.l.b16 %v3500
      %v3572 = vunpack.c.l.b16 %v3501
      %v3573 = vunpack.c.l.b16 %v3502
      %v3574 = vunpack.c.l.b16 %v3503
      %v3575 = vunpack.c.l.b16 %v3504
      %v3576 = vunpack.c.l.b16 %v3505
      %v3577 = vunpack.c.l.b16 %v3506
      %v3578 = vunpack.c.l.b16 %v3507
      %v3579 = vunpack.c.l.b16 %v3508
      %v3580 = vunpack.c.l.b16 %v3509
      %v3581 = vunpack.c.l.b16 %v3510
      %v3582 = vunpack.c.l.b16 %v3511
      %v3583 = vunpack.c.l.b16 %v3512
      %v3584 = vunpack.c.l.b16 %v3513
      %v3585 = vunpack.c.l.b16 %v3514
      %v3586 = vunpack.c.l.b16 %v3515
      %v3587 = vunpack.c.l.b16 %v3516
      %v3588 = vunpack.c.l.b16 %v3517
      %v3589 = vunpack.c.l.b16 %v3518
      %v3590 = vunpack.c.l.b16 %v3519
      %v3591 = vunpack.c.l.b16 %v3520
      %v3592 = vunpack.c.l.b16 %v3521
      %v3593 = vunpack.c.l.b16 %v3525
      %v3594 = vunpack.c.l.b16 %v3526
      %v3595 = vunpack.c.l.b16 %v3527
      %v3596 = vpack.c.b16 %v3564, %v3563
      %v3597 = vpack.c.b16 %v3566, %v3565
      %v3598 = vpack.c.b16 %v3568, %v3567
      %v3599 = vpack.c.b16 %v3570, %v3569
      %v3600 = vpack.c.b16 %v3572, %v3571
      %v3601 = vpack.c.b16 %v3574, %v3573
      %v3602 = vpack.c.b16 %v3576, %v3575
      %v3603 = vpack.c.b16 %v3578, %v3577
      %v3604 = vpack.c.b16 %v3580, %v3579
      %v3605 = vpack.c.b16 %v3582, %v3581
      %v3606 = vpack.c.b16 %v3584, %v3583
      %v3607 = vpack.c.b16 %v3586, %v3585
      %v3608 = vpack.c.b16 %v3588, %v3587
      %v3609 = vpack.c.b16 %v3590, %v3589
      %v3610 = vpack.c.b16 %v3592, %v3591
      %v3611 = vpack.c.b16 %v3594, %v3593
      %v3612 = vpack.c.b16 %v3595, %v3595
      %vm3613 = vsmask.f32 7424
      %v3615 = vshrl.u32 %v3596, 16
      %v3617 = vshll.u32 %v3596, 16
      %v3619 = vrot.slane %v3617, 1
      %v3620 = vor.u32 %v3615, %v3619
      %v3622 = vshll.u32 %v3597, 16
      %v3624 = vrot.slane %v3622, 1
      %v3625 = vsel %vm3613, %v3620, %v3624
      %v3626 = vshrl.u32 %v3597, 16
      %v3628 = vor.u32 %v3626, %v3624
      %v3630 = vshll.u32 %v3598, 16
      %v3632 = vrot.slane %v3630, 1
      %v3633 = vsel %vm3613, %v3628, %v3632
      %v3634 = vshrl.u32 %v3598, 16
      %v3636 = vor.u32 %v3634, %v3632
      %v3638 = vshll.u32 %v3599, 16
      %v3640 = vrot.slane %v3638, 1
      %v3641 = vsel %vm3613, %v3636, %v3640
      %v3642 = vshrl.u32 %v3599, 16
      %v3644 = vor.u32 %v3642, %v3640
      %v3646 = vshll.u32 %v3600, 16
      %v3648 = vrot.slane %v3646, 1
      %v3649 = vsel %vm3613, %v3644, %v3648
      %v3650 = vshrl.u32 %v3600, 16
      %v3652 = vor.u32 %v3650, %v3648
      %v3654 = vshll.u32 %v3601, 16
      %v3656 = vrot.slane %v3654, 1
      %v3657 = vsel %vm3613, %v3652, %v3656
      %v3658 = vshrl.u32 %v3601, 16
      %v3660 = vor.u32 %v3658, %v3656
      %v3662 = vshll.u32 %v3602, 16
      %v3664 = vrot.slane %v3662, 1
      %v3665 = vsel %vm3613, %v3660, %v3664
      %v3666 = vshrl.u32 %v3602, 16
      %v3668 = vor.u32 %v3666, %v3664
      %v3670 = vshll.u32 %v3603, 16
      %v3672 = vrot.slane %v3670, 1
      %v3673 = vsel %vm3613, %v3668, %v3672
      %v3674 = vshrl.u32 %v3603, 16
      %v3676 = vor.u32 %v3674, %v3672
      %v3678 = vshll.u32 %v3604, 16
      %v3680 = vrot.slane %v3678, 1
      %v3681 = vsel %vm3613, %v3676, %v3680
      %v3682 = vshrl.u32 %v3604, 16
      %v3684 = vor.u32 %v3682, %v3680
      %v3686 = vshll.u32 %v3605, 16
      %v3688 = vrot.slane %v3686, 1
      %v3689 = vsel %vm3613, %v3684, %v3688
      %v3690 = vshrl.u32 %v3605, 16
      %v3692 = vor.u32 %v3690, %v3688
      %v3694 = vshll.u32 %v3606, 16
      %v3696 = vrot.slane %v3694, 1
      %v3697 = vsel %vm3613, %v3692, %v3696
      %v3698 = vshrl.u32 %v3606, 16
      %v3700 = vor.u32 %v3698, %v3696
      %v3702 = vshll.u32 %v3607, 16
      %v3704 = vrot.slane %v3702, 1
      %v3705 = vsel %vm3613, %v3700, %v3704
      %v3706 = vshrl.u32 %v3607, 16
      %v3708 = vor.u32 %v3706, %v3704
      %v3710 = vshll.u32 %v3608, 16
      %v3712 = vrot.slane %v3710, 1
      %v3713 = vsel %vm3613, %v3708, %v3712
      %v3714 = vshrl.u32 %v3608, 16
      %v3716 = vor.u32 %v3714, %v3712
      %v3718 = vshll.u32 %v3609, 16
      %v3720 = vrot.slane %v3718, 1
      %v3721 = vsel %vm3613, %v3716, %v3720
      %v3722 = vshrl.u32 %v3609, 16
      %v3724 = vor.u32 %v3722, %v3720
      %v3726 = vshll.u32 %v3610, 16
      %v3728 = vrot.slane %v3726, 1
      %v3729 = vsel %vm3613, %v3724, %v3728
      %v3730 = vshrl.u32 %v3610, 16
      %v3732 = vor.u32 %v3730, %v3728
      %v3734 = vshll.u32 %v3611, 16
      %v3736 = vrot.slane %v3734, 1
      %v3737 = vsel %vm3613, %v3732, %v3736
      %v3738 = vshrl.u32 %v3611, 16
      %v3740 = vor.u32 %v3738, %v3736
      %v3742 = vshll.u32 %v3612, 16
      %v3744 = vrot.slane %v3742, 1
      %v3745 = vsel %vm3613, %v3740, %v3744
      %v3747 = vsel %vm586, %v3625, 0
      %v3750 = vsel %vm586, %v3633, 0
      %v3753 = vsel %vm586, %v3641, 0
      %v3756 = vsel %vm586, %v3649, 0
      %v3759 = vsel %vm586, %v3657, 0
      %v3762 = vsel %vm586, %v3665, 0
      %v3765 = vsel %vm586, %v3673, 0
      %v3768 = vsel %vm586, %v3681, 0
      %v3771 = vsel %vm586, %v3689, 0
      %v3774 = vsel %vm586, %v3697, 0
      %v3777 = vsel %vm586, %v3705, 0
      %v3780 = vsel %vm586, %v3713, 0
      %v3783 = vsel %vm586, %v3721, 0
      %v3786 = vsel %vm586, %v3729, 0
      %v3789 = vsel %vm586, %v3737, 0
      %v3792 = vsel %vm586, %v3745, 0
      %v3795 = vsel %vm635, %v3529, 0
      %3797 = vmatprep.subr.bf16.mxu0 0
      %3798 = vmatpush1.bf16.msra.mxu0 0
      %3799 = vmatprep.subr.bf16.mxu0 0
      %3800 = vmatpush1.bf16.msra.mxu0 0
      %3801 = vmatprep.subr.bf16.mxu0 0
      %3802 = vmatpush1.bf16.msra.mxu0 0
      %3803 = vmatprep.subr.bf16.mxu0 0
      %3804 = vmatpush1.bf16.msra.mxu0 0
      %3805 = vmatprep.subr.bf16.mxu0 0
      %3806 = vmatpush1.bf16.msra.mxu0 0
      %3807 = vmatprep.subr.bf16.mxu0 0
      %3808 = vmatpush1.bf16.msra.mxu0 0
      %3809 = vmatprep.subr.bf16.mxu0 0
      %3810 = vmatpush1.bf16.msra.mxu0 0
      %3811 = vmatprep.subr.bf16.mxu0 0
      %3812 = vmatpush1.bf16.msra.mxu0 %v3795
      %3813 = vmatprep.subr.bf16.mxu0 0
      %3814 = vmatpush2.bf16.msra.mxu0 0
      %3815 = vmatprep.subr.bf16.mxu0 0
      %3816 = vmatpush2.bf16.msra.mxu0 0
      %3817 = vmatprep.subr.bf16.mxu0 0
      %3818 = vmatpush2.bf16.msra.mxu0 0
      %3819 = vmatprep.subr.bf16.mxu0 0
      %3820 = vmatpush2.bf16.msra.mxu0 0
      %3821 = vmatprep.subr.bf16.mxu0 0
      %3822 = vmatpush2.bf16.msra.mxu0 0
      %3823 = vmatprep.subr.bf16.mxu0 0
      %3824 = vmatpush2.bf16.msra.mxu0 0
      %3825 = vmatprep.subr.bf16.mxu0 0
      %3826 = vmatpush2.bf16.msra.mxu0 0
      %3827 = vmatprep.subr.bf16.mxu0 0
      %3828 = vmatpush2.bf16.msra.mxu0 0
      %3829 = vmatprep.mubr.bf16.mxu0 0
      %3830 = vmatmul.mubr.bf16.gmra.mxu0 %v3747
      %v3831 = vpop.f32.mrf.mxu0
      %v3832 = vadd.f32 0.0, %v3831
      %v3833 = vpop.f32.mrf.mxu0
      %v3834 = vpop.f32.mrf.mxu0
      %v3835 = vadd.f32 0.0, %v3834
      %v3836 = vpop.f32.mrf.mxu0
      %3837 = vmatprep.mubr.bf16.mxu0 0
      %3838 = vmatmul.mubr.bf16.gmra.mxu0 %v3750
      %v3839 = vpop.f32.mrf.mxu0
      %v3840 = vadd.f32 0.0, %v3839
      %v3841 = vpop.f32.mrf.mxu0
      %v3842 = vpop.f32.mrf.mxu0
      %v3843 = vadd.f32 0.0, %v3842
      %v3844 = vpop.f32.mrf.mxu0
      %3845 = vmatprep.mubr.bf16.mxu0 0
      %3846 = vmatmul.mubr.bf16.gmra.mxu0 %v3753
      %v3847 = vpop.f32.mrf.mxu0
      %v3848 = vadd.f32 0.0, %v3847
      %v3849 = vpop.f32.mrf.mxu0
      %v3850 = vpop.f32.mrf.mxu0
      %v3851 = vadd.f32 0.0, %v3850
      %v3852 = vpop.f32.mrf.mxu0
      %3853 = vmatprep.mubr.bf16.mxu0 0
      %3854 = vmatmul.mubr.bf16.gmra.mxu0 %v3756
      %v3855 = vpop.f32.mrf.mxu0
      %v3856 = vadd.f32 0.0, %v3855
      %v3857 = vpop.f32.mrf.mxu0
      %v3858 = vpop.f32.mrf.mxu0
      %v3859 = vadd.f32 0.0, %v3858
      %v3860 = vpop.f32.mrf.mxu0
      %3861 = vmatprep.mubr.bf16.mxu0 0
      %3862 = vmatmul.mubr.bf16.gmra.mxu0 %v3759
      %v3863 = vpop.f32.mrf.mxu0
      %v3864 = vadd.f32 0.0, %v3863
      %v3865 = vpop.f32.mrf.mxu0
      %v3866 = vpop.f32.mrf.mxu0
      %v3867 = vadd.f32 0.0, %v3866
      %v3868 = vpop.f32.mrf.mxu0
      %3869 = vmatprep.mubr.bf16.mxu0 0
      %3870 = vmatmul.mubr.bf16.gmra.mxu0 %v3762
      %v3871 = vpop.f32.mrf.mxu0
      %v3872 = vadd.f32 0.0, %v3871
      %v3873 = vpop.f32.mrf.mxu0
      %v3874 = vpop.f32.mrf.mxu0
      %v3875 = vadd.f32 0.0, %v3874
      %v3876 = vpop.f32.mrf.mxu0
      %3877 = vmatprep.mubr.bf16.mxu0 0
      %3878 = vmatmul.mubr.bf16.gmra.mxu0 %v3765
      %v3879 = vpop.f32.mrf.mxu0
      %v3880 = vadd.f32 0.0, %v3879
      %v3881 = vpop.f32.mrf.mxu0
      %v3882 = vpop.f32.mrf.mxu0
      %v3883 = vadd.f32 0.0, %v3882
      %v3884 = vpop.f32.mrf.mxu0
      %3885 = vmatprep.mubr.bf16.mxu0 0
      %3886 = vmatmul.mubr.bf16.gmra.mxu0 %v3768
      %v3887 = vpop.f32.mrf.mxu0
      %v3888 = vadd.f32 0.0, %v3887
      %v3889 = vpop.f32.mrf.mxu0
      %v3890 = vpop.f32.mrf.mxu0
      %v3891 = vadd.f32 0.0, %v3890
      %v3892 = vpop.f32.mrf.mxu0
      %3893 = vmatprep.mubr.bf16.mxu0 0
      %3894 = vmatmul.mubr.bf16.gmra.mxu0 %v3771
      %v3895 = vpop.f32.mrf.mxu0
      %v3896 = vadd.f32 0.0, %v3895
      %v3897 = vpop.f32.mrf.mxu0
      %v3898 = vpop.f32.mrf.mxu0
      %v3899 = vadd.f32 0.0, %v3898
      %v3900 = vpop.f32.mrf.mxu0
      %3901 = vmatprep.mubr.bf16.mxu0 0
      %3902 = vmatmul.mubr.bf16.gmra.mxu0 %v3774
      %v3903 = vpop.f32.mrf.mxu0
      %v3904 = vadd.f32 0.0, %v3903
      %v3905 = vpop.f32.mrf.mxu0
      %v3906 = vpop.f32.mrf.mxu0
      %v3907 = vadd.f32 0.0, %v3906
      %v3908 = vpop.f32.mrf.mxu0
      %3909 = vmatprep.mubr.bf16.mxu0 0
      %3910 = vmatmul.mubr.bf16.gmra.mxu0 %v3777
      %v3911 = vpop.f32.mrf.mxu0
      %v3912 = vadd.f32 0.0, %v3911
      %v3913 = vpop.f32.mrf.mxu0
      %v3914 = vpop.f32.mrf.mxu0
      %v3915 = vadd.f32 0.0, %v3914
      %v3916 = vpop.f32.mrf.mxu0
      %3917 = vmatprep.mubr.bf16.mxu0 0
      %3918 = vmatmul.mubr.bf16.gmra.mxu0 %v3780
      %v3919 = vpop.f32.mrf.mxu0
      %v3920 = vadd.f32 0.0, %v3919
      %v3921 = vpop.f32.mrf.mxu0
      %v3922 = vpop.f32.mrf.mxu0
      %v3923 = vadd.f32 0.0, %v3922
      %v3924 = vpop.f32.mrf.mxu0
      %3925 = vmatprep.mubr.bf16.mxu0 0
      %3926 = vmatmul.mubr.bf16.gmra.mxu0 %v3783
      %v3927 = vpop.f32.mrf.mxu0
      %v3928 = vadd.f32 0.0, %v3927
      %v3929 = vpop.f32.mrf.mxu0
      %v3930 = vpop.f32.mrf.mxu0
      %v3931 = vadd.f32 0.0, %v3930
      %v3932 = vpop.f32.mrf.mxu0
      %3933 = vmatprep.mubr.bf16.mxu0 0
      %3934 = vmatmul.mubr.bf16.gmra.mxu0 %v3786
      %v3935 = vpop.f32.mrf.mxu0
      %v3936 = vadd.f32 0.0, %v3935
      %v3937 = vpop.f32.mrf.mxu0
      %v3938 = vpop.f32.mrf.mxu0
      %v3939 = vadd.f32 0.0, %v3938
      %v3940 = vpop.f32.mrf.mxu0
      %3941 = vmatprep.mubr.bf16.mxu0 0
      %3942 = vmatmul.mubr.bf16.gmra.mxu0 %v3789
      %v3943 = vpop.f32.mrf.mxu0
      %v3944 = vadd.f32 0.0, %v3943
      %v3945 = vpop.f32.mrf.mxu0
      %v3946 = vpop.f32.mrf.mxu0
      %v3947 = vadd.f32 0.0, %v3946
      %v3948 = vpop.f32.mrf.mxu0
      %3949 = vmatprep.mubr.bf16.mxu0 0
      %3950 = vmatmul.mubr.bf16.gmra.mxu0 %v3792
      %v3951 = vpop.f32.mrf.mxu0
      %v3952 = vadd.f32 0.0, %v3951
      %v3953 = vpop.f32.mrf.mxu0
      %v3954 = vpop.f32.mrf.mxu0
      %v3955 = vadd.f32 0.0, %v3954
      %v3956 = vpop.f32.mrf.mxu0
      %3957 = vdwg.mxu0
      %v3961 = vunpack.c.l.b16 %v3490
      %v3962 = vunpack.c.l.b16 %v3491
      %v3963 = vunpack.c.l.b16 %v3522
      %v3964 = vpack.c.b16 %v3962, %v3961
      %v3965 = vpack.c.b16 %v3963, %v3963
      %v3967 = vshrl.u32 %v3964, 16
      %v3969 = vshll.u32 %v3964, 16
      %v3971 = vrot.slane %v3969, 1
      %v3972 = vor.u32 %v3967, %v3971
      %v3973 = vsel %vm3613, %v3972, %v3619
      %v3975 = vshll.u32 %v3965, 16
      %v3977 = vrot.slane %v3975, 1
      %v3978 = vsel %vm3613, %v3732, %v3977
      %v3980 = vsel %vm586, %v3973, 0
      %v3983 = vsel %vm586, %v3978, 0
      %v3986 = vsel %vm635, %v3524, 0
      %3988 = vmatprep.subr.bf16.mxu0 0
      %3989 = vmatpush1.bf16.msra.mxu0 0
      %3990 = vmatprep.subr.bf16.mxu0 0
      %3991 = vmatpush1.bf16.msra.mxu0 0
      %3992 = vmatprep.subr.bf16.mxu0 0
      %3993 = vmatpush1.bf16.msra.mxu0 0
      %3994 = vmatprep.subr.bf16.mxu0 0
      %3995 = vmatpush1.bf16.msra.mxu0 0
      %3996 = vmatprep.subr.bf16.mxu0 0
      %3997 = vmatpush1.bf16.msra.mxu0 0
      %3998 = vmatprep.subr.bf16.mxu0 0
      %3999 = vmatpush1.bf16.msra.mxu0 0
      %4000 = vmatprep.subr.bf16.mxu0 0
      %4001 = vmatpush1.bf16.msra.mxu0 0
      %4002 = vmatprep.subr.bf16.mxu0 0
      %4003 = vmatpush1.bf16.msra.mxu0 %v3986
      %4004 = vmatprep.subr.bf16.mxu0 0
      %4005 = vmatpush2.bf16.msra.mxu0 0
      %4006 = vmatprep.subr.bf16.mxu0 0
      %4007 = vmatpush2.bf16.msra.mxu0 0
      %4008 = vmatprep.subr.bf16.mxu0 0
      %4009 = vmatpush2.bf16.msra.mxu0 0
      %4010 = vmatprep.subr.bf16.mxu0 0
      %4011 = vmatpush2.bf16.msra.mxu0 0
      %4012 = vmatprep.subr.bf16.mxu0 0
      %4013 = vmatpush2.bf16.msra.mxu0 0
      %4014 = vmatprep.subr.bf16.mxu0 0
      %4015 = vmatpush2.bf16.msra.mxu0 0
      %4016 = vmatprep.subr.bf16.mxu0 0
      %4017 = vmatpush2.bf16.msra.mxu0 0
      %4018 = vmatprep.subr.bf16.mxu0 0
      %4019 = vmatpush2.bf16.msra.mxu0 0
      %4020 = vmatprep.mubr.bf16.mxu0 0
      %4021 = vmatmul.mubr.bf16.gmra.mxu0 %v3980
      %v4022 = vpop.f32.mrf.mxu0
      %v4023 = vadd.f32 %v3832, %v4022
      %v4024 = vpop.f32.mrf.mxu0
      %v4025 = vpop.f32.mrf.mxu0
      %v4026 = vadd.f32 %v3835, %v4025
      %v4027 = vpop.f32.mrf.mxu0
      %4028 = vmatprep.mubr.bf16.mxu0 0
      %4029 = vmatmul.mubr.bf16.gmra.mxu0 %v3747
      %v4030 = vpop.f32.mrf.mxu0
      %v4031 = vadd.f32 %v3840, %v4030
      %v4032 = vpop.f32.mrf.mxu0
      %v4033 = vpop.f32.mrf.mxu0
      %v4034 = vadd.f32 %v3843, %v4033
      %v4035 = vpop.f32.mrf.mxu0
      %4036 = vmatprep.mubr.bf16.mxu0 0
      %4037 = vmatmul.mubr.bf16.gmra.mxu0 %v3750
      %v4038 = vpop.f32.mrf.mxu0
      %v4039 = vadd.f32 %v3848, %v4038
      %v4040 = vpop.f32.mrf.mxu0
      %v4041 = vpop.f32.mrf.mxu0
      %v4042 = vadd.f32 %v3851, %v4041
      %v4043 = vpop.f32.mrf.mxu0
      %4044 = vmatprep.mubr.bf16.mxu0 0
      %4045 = vmatmul.mubr.bf16.gmra.mxu0 %v3753
      %v4046 = vpop.f32.mrf.mxu0
      %v4047 = vadd.f32 %v3856, %v4046
      %v4048 = vpop.f32.mrf.mxu0
      %v4049 = vpop.f32.mrf.mxu0
      %v4050 = vadd.f32 %v3859, %v4049
      %v4051 = vpop.f32.mrf.mxu0
      %4052 = vmatprep.mubr.bf16.mxu0 0
      %4053 = vmatmul.mubr.bf16.gmra.mxu0 %v3756
      %v4054 = vpop.f32.mrf.mxu0
      %v4055 = vadd.f32 %v3864, %v4054
      %v4056 = vpop.f32.mrf.mxu0
      %v4057 = vpop.f32.mrf.mxu0
      %v4058 = vadd.f32 %v3867, %v4057
      %v4059 = vpop.f32.mrf.mxu0
      %4060 = vmatprep.mubr.bf16.mxu0 0
      %4061 = vmatmul.mubr.bf16.gmra.mxu0 %v3759
      %v4062 = vpop.f32.mrf.mxu0
      %v4063 = vadd.f32 %v3872, %v4062
      %v4064 = vpop.f32.mrf.mxu0
      %v4065 = vpop.f32.mrf.mxu0
      %v4066 = vadd.f32 %v3875, %v4065
      %v4067 = vpop.f32.mrf.mxu0
      %4068 = vmatprep.mubr.bf16.mxu0 0
      %4069 = vmatmul.mubr.bf16.gmra.mxu0 %v3762
      %v4070 = vpop.f32.mrf.mxu0
      %v4071 = vadd.f32 %v3880, %v4070
      %v4072 = vpop.f32.mrf.mxu0
      %v4073 = vpop.f32.mrf.mxu0
      %v4074 = vadd.f32 %v3883, %v4073
      %v4075 = vpop.f32.mrf.mxu0
      %4076 = vmatprep.mubr.bf16.mxu0 0
      %4077 = vmatmul.mubr.bf16.gmra.mxu0 %v3765
      %v4078 = vpop.f32.mrf.mxu0
      %v4079 = vadd.f32 %v3888, %v4078
      %v4080 = vpop.f32.mrf.mxu0
      %v4081 = vpop.f32.mrf.mxu0
      %v4082 = vadd.f32 %v3891, %v4081
      %v4083 = vpop.f32.mrf.mxu0
      %4084 = vmatprep.mubr.bf16.mxu0 0
      %4085 = vmatmul.mubr.bf16.gmra.mxu0 %v3768
      %v4086 = vpop.f32.mrf.mxu0
      %v4087 = vadd.f32 %v3896, %v4086
      %v4088 = vpop.f32.mrf.mxu0
      %v4089 = vpop.f32.mrf.mxu0
      %v4090 = vadd.f32 %v3899, %v4089
      %v4091 = vpop.f32.mrf.mxu0
      %4092 = vmatprep.mubr.bf16.mxu0 0
      %4093 = vmatmul.mubr.bf16.gmra.mxu0 %v3771
      %v4094 = vpop.f32.mrf.mxu0
      %v4095 = vadd.f32 %v3904, %v4094
      %v4096 = vpop.f32.mrf.mxu0
      %v4097 = vpop.f32.mrf.mxu0
      %v4098 = vadd.f32 %v3907, %v4097
      %v4099 = vpop.f32.mrf.mxu0
      %4100 = vmatprep.mubr.bf16.mxu0 0
      %4101 = vmatmul.mubr.bf16.gmra.mxu0 %v3774
      %v4102 = vpop.f32.mrf.mxu0
      %v4103 = vadd.f32 %v3912, %v4102
      %v4104 = vpop.f32.mrf.mxu0
      %v4105 = vpop.f32.mrf.mxu0
      %v4106 = vadd.f32 %v3915, %v4105
      %v4107 = vpop.f32.mrf.mxu0
      %4108 = vmatprep.mubr.bf16.mxu0 0
      %4109 = vmatmul.mubr.bf16.gmra.mxu0 %v3777
      %v4110 = vpop.f32.mrf.mxu0
      %v4111 = vadd.f32 %v3920, %v4110
      %v4112 = vpop.f32.mrf.mxu0
      %v4113 = vpop.f32.mrf.mxu0
      %v4114 = vadd.f32 %v3923, %v4113
      %v4115 = vpop.f32.mrf.mxu0
      %4116 = vmatprep.mubr.bf16.mxu0 0
      %4117 = vmatmul.mubr.bf16.gmra.mxu0 %v3780
      %v4118 = vpop.f32.mrf.mxu0
      %v4119 = vadd.f32 %v3928, %v4118
      %v4120 = vpop.f32.mrf.mxu0
      %v4121 = vpop.f32.mrf.mxu0
      %v4122 = vadd.f32 %v3931, %v4121
      %v4123 = vpop.f32.mrf.mxu0
      %4124 = vmatprep.mubr.bf16.mxu0 0
      %4125 = vmatmul.mubr.bf16.gmra.mxu0 %v3783
      %v4126 = vpop.f32.mrf.mxu0
      %v4127 = vadd.f32 %v3936, %v4126
      %v4128 = vpop.f32.mrf.mxu0
      %v4129 = vpop.f32.mrf.mxu0
      %v4130 = vadd.f32 %v3939, %v4129
      %v4131 = vpop.f32.mrf.mxu0
      %4132 = vmatprep.mubr.bf16.mxu0 0
      %4133 = vmatmul.mubr.bf16.gmra.mxu0 %v3786
      %v4134 = vpop.f32.mrf.mxu0
      %v4135 = vadd.f32 %v3944, %v4134
      %v4136 = vpop.f32.mrf.mxu0
      %v4137 = vpop.f32.mrf.mxu0
      %v4138 = vadd.f32 %v3947, %v4137
      %v4139 = vpop.f32.mrf.mxu0
      %4140 = vmatprep.mubr.bf16.mxu0 0
      %4141 = vmatmul.mubr.bf16.gmra.mxu0 %v3983
      %v4142 = vpop.f32.mrf.mxu0
      %v4143 = vadd.f32 %v3952, %v4142
      %v4144 = vpop.f32.mrf.mxu0
      %v4145 = vpop.f32.mrf.mxu0
      %v4146 = vadd.f32 %v3955, %v4145
      %v4147 = vpop.f32.mrf.mxu0
      %4148 = vdwg.mxu0
      %v4149 = vld [vmem:[#allocation2 + $0x18] sm:$0xf]
      %v4150 = vld [vmem:[#allocation2 + $0x1c] sm:$0xf]
      %v4151 = vld [vmem:[#allocation2 + $0x20] sm:$0xf]
      %v4152 = vld [vmem:[#allocation2 + $0x24] sm:$0xf]
      %v4153 = vld [vmem:[#allocation2 + $0x28] sm:$0xf]
      %v4154 = vld [vmem:[#allocation2 + $0x2c] sm:$0xf]
      %v4155 = vld [vmem:[#allocation2 + $0x30] sm:$0xf]
      %v4156 = vld [vmem:[#allocation2 + $0x34] sm:$0xf]
      %v4157 = vld [vmem:[#allocation2 + $0x38] sm:$0xf]
      %v4158 = vld [vmem:[#allocation2 + $0x3c] sm:$0xf]
      %v4159 = vld [vmem:[#allocation2 + $0x40] sm:$0xf]
      %v4160 = vld [vmem:[#allocation2 + $0x44] sm:$0xf]
      %v4161 = vld [vmem:[#allocation2 + $0x48] sm:$0xf]
      %v4162 = vld [vmem:[#allocation2 + $0x4c] sm:$0xf]
      %v4163 = vld [vmem:[#allocation2 + $0x50] sm:$0xf]
      %v4164 = vld [vmem:[#allocation2 + $0x54] sm:$0xf]
      %v4165 = vld [vmem:[#allocation2 + $0x58] sm:$0xf]
      %v4166 = vld [vmem:[#allocation2 + $0x5c] sm:$0xf]
      %v4167 = vld [vmem:[#allocation2 + $0x60] sm:$0xf]
      %v4168 = vld [vmem:[#allocation2 + $0x64] sm:$0xf]
      %v4169 = vld [vmem:[#allocation2 + $0x68] sm:$0xf]
      %v4170 = vld [vmem:[#allocation2 + $0x6c] sm:$0xf]
      %v4171 = vld [vmem:[#allocation2 + $0x70] sm:$0xf]
      %v4172 = vld [vmem:[#allocation2 + $0x74] sm:$0xf]
      %v4173 = vld [vmem:[#allocation2 + $0x78] sm:$0xf]
      %v4174 = vld [vmem:[#allocation2 + $0x7c] sm:$0xf]
      %v4175 = vld [vmem:[#allocation2 + $0x80] sm:$0xf]
      %v4176 = vld [vmem:[#allocation2 + $0x84] sm:$0xf]
      %v4177 = vld [vmem:[#allocation2 + $0x88] sm:$0xf]
      %v4178 = vld [vmem:[#allocation2 + $0x8c] sm:$0xf]
      %v4179 = vld [vmem:[#allocation2 + $0x90] sm:$0xf]
      %v4180 = vld [vmem:[#allocation2 + $0x94] sm:$0xf]
      %v4181 = vld [vmem:[#allocation2 + $0x98] sm:$0x1]
      %s4182 = scalar_lea.vmem %s5, 16
      %v4183 = vld [vmem:[%s4182] sm:$0x3]
      %v4217 = vunpack.c.l.b16 %v4149
      %v4218 = vunpack.c.l.b16 %v4150
      %v4219 = vunpack.c.l.b16 %v4151
      %v4220 = vunpack.c.l.b16 %v4152
      %v4221 = vunpack.c.l.b16 %v4153
      %v4222 = vunpack.c.l.b16 %v4154
      %v4223 = vunpack.c.l.b16 %v4155
      %v4224 = vunpack.c.l.b16 %v4156
      %v4225 = vunpack.c.l.b16 %v4157
      %v4226 = vunpack.c.l.b16 %v4158
      %v4227 = vunpack.c.l.b16 %v4159
      %v4228 = vunpack.c.l.b16 %v4160
      %v4229 = vunpack.c.l.b16 %v4161
      %v4230 = vunpack.c.l.b16 %v4162
      %v4231 = vunpack.c.l.b16 %v4163
      %v4232 = vunpack.c.l.b16 %v4164
      %v4233 = vunpack.c.l.b16 %v4165
      %v4234 = vunpack.c.l.b16 %v4166
      %v4235 = vunpack.c.l.b16 %v4167
      %v4236 = vunpack.c.l.b16 %v4168
      %v4237 = vunpack.c.l.b16 %v4169
      %v4238 = vunpack.c.l.b16 %v4170
      %v4239 = vunpack.c.l.b16 %v4171
      %v4240 = vunpack.c.l.b16 %v4172
      %v4241 = vunpack.c.l.b16 %v4173
      %v4242 = vunpack.c.l.b16 %v4174
      %v4243 = vunpack.c.l.b16 %v4175
      %v4244 = vunpack.c.l.b16 %v4176
      %v4245 = vunpack.c.l.b16 %v4177
      %v4246 = vunpack.c.l.b16 %v4178
      %v4247 = vunpack.c.l.b16 %v4179
      %v4248 = vunpack.c.l.b16 %v4180
      %v4249 = vunpack.c.l.b16 %v4181
      %v4250 = vpack.c.b16 %v4218, %v4217
      %v4251 = vpack.c.b16 %v4220, %v4219
      %v4252 = vpack.c.b16 %v4222, %v4221
      %v4253 = vpack.c.b16 %v4224, %v4223
      %v4254 = vpack.c.b16 %v4226, %v4225
      %v4255 = vpack.c.b16 %v4228, %v4227
      %v4256 = vpack.c.b16 %v4230, %v4229
      %v4257 = vpack.c.b16 %v4232, %v4231
      %v4258 = vpack.c.b16 %v4234, %v4233
      %v4259 = vpack.c.b16 %v4236, %v4235
      %v4260 = vpack.c.b16 %v4238, %v4237
      %v4261 = vpack.c.b16 %v4240, %v4239
      %v4262 = vpack.c.b16 %v4242, %v4241
      %v4263 = vpack.c.b16 %v4244, %v4243
      %v4264 = vpack.c.b16 %v4246, %v4245
      %v4265 = vpack.c.b16 %v4248, %v4247
      %v4266 = vpack.c.b16 %v4249, %v4249
      %v4268 = vshrl.u32 %v4250, 16
      %v4270 = vshll.u32 %v4250, 16
      %v4272 = vrot.slane %v4270, 1
      %v4273 = vor.u32 %v4268, %v4272
      %v4275 = vshll.u32 %v4251, 16
      %v4277 = vrot.slane %v4275, 1
      %v4278 = vsel %vm3613, %v4273, %v4277
      %v4279 = vshrl.u32 %v4251, 16
      %v4281 = vor.u32 %v4279, %v4277
      %v4283 = vshll.u32 %v4252, 16
      %v4285 = vrot.slane %v4283, 1
      %v4286 = vsel %vm3613, %v4281, %v4285
      %v4287 = vshrl.u32 %v4252, 16
      %v4289 = vor.u32 %v4287, %v4285
      %v4291 = vshll.u32 %v4253, 16
      %v4293 = vrot.slane %v4291, 1
      %v4294 = vsel %vm3613, %v4289, %v4293
      %v4295 = vshrl.u32 %v4253, 16
      %v4297 = vor.u32 %v4295, %v4293
      %v4299 = vshll.u32 %v4254, 16
      %v4301 = vrot.slane %v4299, 1
      %v4302 = vsel %vm3613, %v4297, %v4301
      %v4303 = vshrl.u32 %v4254, 16
      %v4305 = vor.u32 %v4303, %v4301
      %v4307 = vshll.u32 %v4255, 16
      %v4309 = vrot.slane %v4307, 1
      %v4310 = vsel %vm3613, %v4305, %v4309
      %v4311 = vshrl.u32 %v4255, 16
      %v4313 = vor.u32 %v4311, %v4309
      %v4315 = vshll.u32 %v4256, 16
      %v4317 = vrot.slane %v4315, 1
      %v4318 = vsel %vm3613, %v4313, %v4317
      %v4319 = vshrl.u32 %v4256, 16
      %v4321 = vor.u32 %v4319, %v4317
      %v4323 = vshll.u32 %v4257, 16
      %v4325 = vrot.slane %v4323, 1
      %v4326 = vsel %vm3613, %v4321, %v4325
      %v4327 = vshrl.u32 %v4257, 16
      %v4329 = vor.u32 %v4327, %v4325
      %v4331 = vshll.u32 %v4258, 16
      %v4333 = vrot.slane %v4331, 1
      %v4334 = vsel %vm3613, %v4329, %v4333
      %v4335 = vshrl.u32 %v4258, 16
      %v4337 = vor.u32 %v4335, %v4333
      %v4339 = vshll.u32 %v4259, 16
      %v4341 = vrot.slane %v4339, 1
      %v4342 = vsel %vm3613, %v4337, %v4341
      %v4343 = vshrl.u32 %v4259, 16
      %v4345 = vor.u32 %v4343, %v4341
      %v4347 = vshll.u32 %v4260, 16
      %v4349 = vrot.slane %v4347, 1
      %v4350 = vsel %vm3613, %v4345, %v4349
      %v4351 = vshrl.u32 %v4260, 16
      %v4353 = vor.u32 %v4351, %v4349
      %v4355 = vshll.u32 %v4261, 16
      %v4357 = vrot.slane %v4355, 1
      %v4358 = vsel %vm3613, %v4353, %v4357
      %v4359 = vshrl.u32 %v4261, 16
      %v4361 = vor.u32 %v4359, %v4357
      %v4363 = vshll.u32 %v4262, 16
      %v4365 = vrot.slane %v4363, 1
      %v4366 = vsel %vm3613, %v4361, %v4365
      %v4367 = vshrl.u32 %v4262, 16
      %v4369 = vor.u32 %v4367, %v4365
      %v4371 = vshll.u32 %v4263, 16
      %v4373 = vrot.slane %v4371, 1
      %v4374 = vsel %vm3613, %v4369, %v4373
      %v4375 = vshrl.u32 %v4263, 16
      %v4377 = vor.u32 %v4375, %v4373
      %v4379 = vshll.u32 %v4264, 16
      %v4381 = vrot.slane %v4379, 1
      %v4382 = vsel %vm3613, %v4377, %v4381
      %v4383 = vshrl.u32 %v4264, 16
      %v4385 = vor.u32 %v4383, %v4381
      %v4387 = vshll.u32 %v4265, 16
      %v4389 = vrot.slane %v4387, 1
      %v4390 = vsel %vm3613, %v4385, %v4389
      %v4391 = vshrl.u32 %v4265, 16
      %v4393 = vor.u32 %v4391, %v4389
      %v4395 = vshll.u32 %v4266, 16
      %v4397 = vrot.slane %v4395, 1
      %v4398 = vsel %vm3613, %v4393, %v4397
      %v4400 = vsel %vm586, %v4278, 0
      %v4403 = vsel %vm586, %v4286, 0
      %v4406 = vsel %vm586, %v4294, 0
      %v4409 = vsel %vm586, %v4302, 0
      %v4412 = vsel %vm586, %v4310, 0
      %v4415 = vsel %vm586, %v4318, 0
      %v4418 = vsel %vm586, %v4326, 0
      %v4421 = vsel %vm586, %v4334, 0
      %v4424 = vsel %vm586, %v4342, 0
      %v4427 = vsel %vm586, %v4350, 0
      %v4430 = vsel %vm586, %v4358, 0
      %v4433 = vsel %vm586, %v4366, 0
      %v4436 = vsel %vm586, %v4374, 0
      %v4439 = vsel %vm586, %v4382, 0
      %v4442 = vsel %vm586, %v4390, 0
      %v4445 = vsel %vm586, %v4398, 0
      %v4448 = vsel %vm635, %v4183, 0
      %4450 = vmatprep.subr.bf16.mxu0 0
      %4451 = vmatpush1.bf16.msra.mxu0 0
      %4452 = vmatprep.subr.bf16.mxu0 0
      %4453 = vmatpush1.bf16.msra.mxu0 0
      %4454 = vmatprep.subr.bf16.mxu0 0
      %4455 = vmatpush1.bf16.msra.mxu0 0
      %4456 = vmatprep.subr.bf16.mxu0 0
      %4457 = vmatpush1.bf16.msra.mxu0 0
      %4458 = vmatprep.subr.bf16.mxu0 0
      %4459 = vmatpush1.bf16.msra.mxu0 0
      %4460 = vmatprep.subr.bf16.mxu0 0
      %4461 = vmatpush1.bf16.msra.mxu0 0
      %4462 = vmatprep.subr.bf16.mxu0 0
      %4463 = vmatpush1.bf16.msra.mxu0 0
      %4464 = vmatprep.subr.bf16.mxu0 0
      %4465 = vmatpush1.bf16.msra.mxu0 %v4448
      %4466 = vmatprep.subr.bf16.mxu0 0
      %4467 = vmatpush2.bf16.msra.mxu0 0
      %4468 = vmatprep.subr.bf16.mxu0 0
      %4469 = vmatpush2.bf16.msra.mxu0 0
      %4470 = vmatprep.subr.bf16.mxu0 0
      %4471 = vmatpush2.bf16.msra.mxu0 0
      %4472 = vmatprep.subr.bf16.mxu0 0
      %4473 = vmatpush2.bf16.msra.mxu0 0
      %4474 = vmatprep.subr.bf16.mxu0 0
      %4475 = vmatpush2.bf16.msra.mxu0 0
      %4476 = vmatprep.subr.bf16.mxu0 0
      %4477 = vmatpush2.bf16.msra.mxu0 0
      %4478 = vmatprep.subr.bf16.mxu0 0
      %4479 = vmatpush2.bf16.msra.mxu0 0
      %4480 = vmatprep.subr.bf16.mxu0 0
      %4481 = vmatpush2.bf16.msra.mxu0 0
      %4482 = vmatprep.mubr.bf16.mxu0 0
      %4483 = vmatmul.mubr.bf16.gmra.mxu0 %v4400
      %v4484 = vpop.f32.mrf.mxu0
      %v4485 = vadd.f32 0.0, %v4484
      %v4486 = vpop.f32.mrf.mxu0
      %v4487 = vpop.f32.mrf.mxu0
      %v4488 = vadd.f32 0.0, %v4487
      %v4489 = vpop.f32.mrf.mxu0
      %4490 = vmatprep.mubr.bf16.mxu0 0
      %4491 = vmatmul.mubr.bf16.gmra.mxu0 %v4403
      %v4492 = vpop.f32.mrf.mxu0
      %v4493 = vadd.f32 0.0, %v4492
      %v4494 = vpop.f32.mrf.mxu0
      %v4495 = vpop.f32.mrf.mxu0
      %v4496 = vadd.f32 0.0, %v4495
      %v4497 = vpop.f32.mrf.mxu0
      %4498 = vmatprep.mubr.bf16.mxu0 0
      %4499 = vmatmul.mubr.bf16.gmra.mxu0 %v4406
      %v4500 = vpop.f32.mrf.mxu0
      %v4501 = vadd.f32 0.0, %v4500
      %v4502 = vpop.f32.mrf.mxu0
      %v4503 = vpop.f32.mrf.mxu0
      %v4504 = vadd.f32 0.0, %v4503
      %v4505 = vpop.f32.mrf.mxu0
      %4506 = vmatprep.mubr.bf16.mxu0 0
      %4507 = vmatmul.mubr.bf16.gmra.mxu0 %v4409
      %v4508 = vpop.f32.mrf.mxu0
      %v4509 = vadd.f32 0.0, %v4508
      %v4510 = vpop.f32.mrf.mxu0
      %v4511 = vpop.f32.mrf.mxu0
      %v4512 = vadd.f32 0.0, %v4511
      %v4513 = vpop.f32.mrf.mxu0
      %4514 = vmatprep.mubr.bf16.mxu0 0
      %4515 = vmatmul.mubr.bf16.gmra.mxu0 %v4412
      %v4516 = vpop.f32.mrf.mxu0
      %v4517 = vadd.f32 0.0, %v4516
      %v4518 = vpop.f32.mrf.mxu0
      %v4519 = vpop.f32.mrf.mxu0
      %v4520 = vadd.f32 0.0, %v4519
      %v4521 = vpop.f32.mrf.mxu0
      %4522 = vmatprep.mubr.bf16.mxu0 0
      %4523 = vmatmul.mubr.bf16.gmra.mxu0 %v4415
      %v4524 = vpop.f32.mrf.mxu0
      %v4525 = vadd.f32 0.0, %v4524
      %v4526 = vpop.f32.mrf.mxu0
      %v4527 = vpop.f32.mrf.mxu0
      %v4528 = vadd.f32 0.0, %v4527
      %v4529 = vpop.f32.mrf.mxu0
      %4530 = vmatprep.mubr.bf16.mxu0 0
      %4531 = vmatmul.mubr.bf16.gmra.mxu0 %v4418
      %v4532 = vpop.f32.mrf.mxu0
      %v4533 = vadd.f32 0.0, %v4532
      %v4534 = vpop.f32.mrf.mxu0
      %v4535 = vpop.f32.mrf.mxu0
      %v4536 = vadd.f32 0.0, %v4535
      %v4537 = vpop.f32.mrf.mxu0
      %4538 = vmatprep.mubr.bf16.mxu0 0
      %4539 = vmatmul.mubr.bf16.gmra.mxu0 %v4421
      %v4540 = vpop.f32.mrf.mxu0
      %v4541 = vadd.f32 0.0, %v4540
      %v4542 = vpop.f32.mrf.mxu0
      %v4543 = vpop.f32.mrf.mxu0
      %v4544 = vadd.f32 0.0, %v4543
      %v4545 = vpop.f32.mrf.mxu0
      %4546 = vmatprep.mubr.bf16.mxu0 0
      %4547 = vmatmul.mubr.bf16.gmra.mxu0 %v4424
      %v4548 = vpop.f32.mrf.mxu0
      %v4549 = vadd.f32 0.0, %v4548
      %v4550 = vpop.f32.mrf.mxu0
      %v4551 = vpop.f32.mrf.mxu0
      %v4552 = vadd.f32 0.0, %v4551
      %v4553 = vpop.f32.mrf.mxu0
      %4554 = vmatprep.mubr.bf16.mxu0 0
      %4555 = vmatmul.mubr.bf16.gmra.mxu0 %v4427
      %v4556 = vpop.f32.mrf.mxu0
      %v4557 = vadd.f32 0.0, %v4556
      %v4558 = vpop.f32.mrf.mxu0
      %v4559 = vpop.f32.mrf.mxu0
      %v4560 = vadd.f32 0.0, %v4559
      %v4561 = vpop.f32.mrf.mxu0
      %4562 = vmatprep.mubr.bf16.mxu0 0
      %4563 = vmatmul.mubr.bf16.gmra.mxu0 %v4430
      %v4564 = vpop.f32.mrf.mxu0
      %v4565 = vadd.f32 0.0, %v4564
      %v4566 = vpop.f32.mrf.mxu0
      %v4567 = vpop.f32.mrf.mxu0
      %v4568 = vadd.f32 0.0, %v4567
      %v4569 = vpop.f32.mrf.mxu0
      %4570 = vmatprep.mubr.bf16.mxu0 0
      %4571 = vmatmul.mubr.bf16.gmra.mxu0 %v4433
      %v4572 = vpop.f32.mrf.mxu0
      %v4573 = vadd.f32 0.0, %v4572
      %v4574 = vpop.f32.mrf.mxu0
      %v4575 = vpop.f32.mrf.mxu0
      %v4576 = vadd.f32 0.0, %v4575
      %v4577 = vpop.f32.mrf.mxu0
      %4578 = vmatprep.mubr.bf16.mxu0 0
      %4579 = vmatmul.mubr.bf16.gmra.mxu0 %v4436
      %v4580 = vpop.f32.mrf.mxu0
      %v4581 = vadd.f32 0.0, %v4580
      %v4582 = vpop.f32.mrf.mxu0
      %v4583 = vpop.f32.mrf.mxu0
      %v4584 = vadd.f32 0.0, %v4583
      %v4585 = vpop.f32.mrf.mxu0
      %4586 = vmatprep.mubr.bf16.mxu0 0
      %4587 = vmatmul.mubr.bf16.gmra.mxu0 %v4439
      %v4588 = vpop.f32.mrf.mxu0
      %v4589 = vadd.f32 0.0, %v4588
      %v4590 = vpop.f32.mrf.mxu0
      %v4591 = vpop.f32.mrf.mxu0
      %v4592 = vadd.f32 0.0, %v4591
      %v4593 = vpop.f32.mrf.mxu0
      %4594 = vmatprep.mubr.bf16.mxu0 0
      %4595 = vmatmul.mubr.bf16.gmra.mxu0 %v4442
      %v4596 = vpop.f32.mrf.mxu0
      %v4597 = vadd.f32 0.0, %v4596
      %v4598 = vpop.f32.mrf.mxu0
      %v4599 = vpop.f32.mrf.mxu0
      %v4600 = vadd.f32 0.0, %v4599
      %v4601 = vpop.f32.mrf.mxu0
      %4602 = vmatprep.mubr.bf16.mxu0 0
      %4603 = vmatmul.mubr.bf16.gmra.mxu0 %v4445
      %v4604 = vpop.f32.mrf.mxu0
      %v4605 = vadd.f32 0.0, %v4604
      %v4606 = vpop.f32.mrf.mxu0
      %v4607 = vpop.f32.mrf.mxu0
      %v4608 = vadd.f32 0.0, %v4607
      %v4609 = vpop.f32.mrf.mxu0
      %4610 = vdwg.mxu0
      %v4611 = vadd.f32 %v4023, %v4485
      %v4612 = vadd.f32 %v4026, %v4488
      %v4613 = vadd.f32 %v4031, %v4493
      %v4614 = vadd.f32 %v4034, %v4496
      %v4615 = vadd.f32 %v4039, %v4501
      %v4616 = vadd.f32 %v4042, %v4504
      %v4617 = vadd.f32 %v4047, %v4509
      %v4618 = vadd.f32 %v4050, %v4512
      %v4619 = vadd.f32 %v4055, %v4517
      %v4620 = vadd.f32 %v4058, %v4520
      %v4621 = vadd.f32 %v4063, %v4525
      %v4622 = vadd.f32 %v4066, %v4528
      %v4623 = vadd.f32 %v4071, %v4533
      %v4624 = vadd.f32 %v4074, %v4536
      %v4625 = vadd.f32 %v4079, %v4541
      %v4626 = vadd.f32 %v4082, %v4544
      %v4627 = vadd.f32 %v4087, %v4549
      %v4628 = vadd.f32 %v4090, %v4552
      %v4629 = vadd.f32 %v4095, %v4557
      %v4630 = vadd.f32 %v4098, %v4560
      %v4631 = vadd.f32 %v4103, %v4565
      %v4632 = vadd.f32 %v4106, %v4568
      %v4633 = vadd.f32 %v4111, %v4573
      %v4634 = vadd.f32 %v4114, %v4576
      %v4635 = vadd.f32 %v4119, %v4581
      %v4636 = vadd.f32 %v4122, %v4584
      %v4637 = vadd.f32 %v4127, %v4589
      %v4638 = vadd.f32 %v4130, %v4592
      %v4639 = vadd.f32 %v4135, %v4597
      %v4640 = vadd.f32 %v4138, %v4600
      %v4641 = vadd.f32 %v4143, %v4605
      %v4642 = vadd.f32 %v4146, %v4608
      %vm4643 = vcmp.lt.s32.totalorder %v1386, 15
      %vm4644 = vcmp.lt.s32.totalorder %v1387, 15
      %vm4645 = vcmp.lt.s32.totalorder %v1388, 15
      %vm4646 = vcmp.lt.s32.totalorder %v1389, 15
      %vm4647 = vcmp.lt.s32.totalorder %v1390, 15
      %vm4648 = vcmp.lt.s32.totalorder %v1391, 15
      %vm4649 = vcmp.lt.s32.totalorder %v1392, 15
      %vm4650 = vcmp.lt.s32.totalorder %v1393, 15
      %vm4651 = vcmp.lt.s32.totalorder %v1394, 15
      %vm4652 = vcmp.lt.s32.totalorder %v1395, 15
      %vm4653 = vcmp.lt.s32.totalorder %v1396, 15
      %vm4654 = vcmp.lt.s32.totalorder %v1397, 15
      %vm4655 = vcmp.lt.s32.totalorder %v1398, 15
      %vm4656 = vcmp.lt.s32.totalorder %v1399, 15
      %vm4657 = vcmp.lt.s32.totalorder %v1400, 15
      %vm4658 = vcmp.lt.s32.totalorder %v1401, 15
      %vm4659 = vcmp.lt.s32.totalorder %v1402, 15
      %vm4660 = vcmp.lt.s32.totalorder %v1403, 15
      %vm4661 = vcmp.lt.s32.totalorder %v1404, 15
      %vm4662 = vcmp.lt.s32.totalorder %v1405, 15
      %vm4663 = vcmp.lt.s32.totalorder %v1406, 15
      %vm4664 = vcmp.lt.s32.totalorder %v1407, 15
      %vm4665 = vcmp.lt.s32.totalorder %v1408, 15
      %vm4666 = vcmp.lt.s32.totalorder %v1409, 15
      %vm4667 = vcmp.lt.s32.totalorder %v1410, 15
      %vm4668 = vcmp.lt.s32.totalorder %v1411, 15
      %vm4669 = vcmp.lt.s32.totalorder %v1412, 15
      %vm4670 = vcmp.lt.s32.totalorder %v1413, 15
      %vm4671 = vcmp.lt.s32.totalorder %v1414, 15
      %vm4672 = vcmp.lt.s32.totalorder %v1415, 15
      %vm4673 = vcmp.lt.s32.totalorder %v1416, 15
      %vm4674 = vcmp.lt.s32.totalorder %v1417, 15
      %v4675 = vsel %vm4643, 1, 0
      %v4676 = vsel %vm4644, 1, 0
      %v4677 = vsel %vm4645, 1, 0
      %v4678 = vsel %vm4646, 1, 0
      %v4679 = vsel %vm4647, 1, 0
      %v4680 = vsel %vm4648, 1, 0
      %v4681 = vsel %vm4649, 1, 0
      %v4682 = vsel %vm4650, 1, 0
      %v4683 = vsel %vm4651, 1, 0
      %v4684 = vsel %vm4652, 1, 0
      %v4685 = vsel %vm4653, 1, 0
      %v4686 = vsel %vm4654, 1, 0
      %v4687 = vsel %vm4655, 1, 0
      %v4688 = vsel %vm4656, 1, 0
      %v4689 = vsel %vm4657, 1, 0
      %v4690 = vsel %vm4658, 1, 0
      %v4691 = vsel %vm4659, 1, 0
      %v4692 = vsel %vm4660, 1, 0
      %v4693 = vsel %vm4661, 1, 0
      %v4694 = vsel %vm4662, 1, 0
      %v4695 = vsel %vm4663, 1, 0
      %v4696 = vsel %vm4664, 1, 0
      %v4697 = vsel %vm4665, 1, 0
      %v4698 = vsel %vm4666, 1, 0
      %v4699 = vsel %vm4667, 1, 0
      %v4700 = vsel %vm4668, 1, 0
      %v4701 = vsel %vm4669, 1, 0
      %v4702 = vsel %vm4670, 1, 0
      %v4703 = vsel %vm4671, 1, 0
      %v4704 = vsel %vm4672, 1, 0
      %v4705 = vsel %vm4673, 1, 0
      %v4706 = vsel %vm4674, 1, 0
      %vm4707 = vcmp.eq.s32.totalorder %v4675, 1
      %vm4708 = vcmp.eq.s32.totalorder %v4676, 1
      %vm4709 = vcmp.eq.s32.totalorder %v4677, 1
      %vm4710 = vcmp.eq.s32.totalorder %v4678, 1
      %vm4711 = vcmp.eq.s32.totalorder %v4679, 1
      %vm4712 = vcmp.eq.s32.totalorder %v4680, 1
      %vm4713 = vcmp.eq.s32.totalorder %v4681, 1
      %vm4714 = vcmp.eq.s32.totalorder %v4682, 1
      %vm4715 = vcmp.eq.s32.totalorder %v4683, 1
      %vm4716 = vcmp.eq.s32.totalorder %v4684, 1
      %vm4717 = vcmp.eq.s32.totalorder %v4685, 1
      %vm4718 = vcmp.eq.s32.totalorder %v4686, 1
      %vm4719 = vcmp.eq.s32.totalorder %v4687, 1
      %vm4720 = vcmp.eq.s32.totalorder %v4688, 1
      %vm4721 = vcmp.eq.s32.totalorder %v4689, 1
      %vm4722 = vcmp.eq.s32.totalorder %v4690, 1
      %vm4723 = vcmp.eq.s32.totalorder %v4691, 1
      %vm4724 = vcmp.eq.s32.totalorder %v4692, 1
      %vm4725 = vcmp.eq.s32.totalorder %v4693, 1
      %vm4726 = vcmp.eq.s32.totalorder %v4694, 1
      %vm4727 = vcmp.eq.s32.totalorder %v4695, 1
      %vm4728 = vcmp.eq.s32.totalorder %v4696, 1
      %vm4729 = vcmp.eq.s32.totalorder %v4697, 1
      %vm4730 = vcmp.eq.s32.totalorder %v4698, 1
      %vm4731 = vcmp.eq.s32.totalorder %v4699, 1
      %vm4732 = vcmp.eq.s32.totalorder %v4700, 1
      %vm4733 = vcmp.eq.s32.totalorder %v4701, 1
      %vm4734 = vcmp.eq.s32.totalorder %v4702, 1
      %vm4735 = vcmp.eq.s32.totalorder %v4703, 1
      %vm4736 = vcmp.eq.s32.totalorder %v4704, 1
      %vm4737 = vcmp.eq.s32.totalorder %v4705, 1
      %vm4738 = vcmp.eq.s32.totalorder %v4706, 1
      %v4739 = vsel %vm4707, %v4611, 0.0
      %v4740 = vsel %vm4708, %v4612, 0.0
      %v4741 = vsel %vm4709, %v4613, 0.0
      %v4742 = vsel %vm4710, %v4614, 0.0
      %v4743 = vsel %vm4711, %v4615, 0.0
      %v4744 = vsel %vm4712, %v4616, 0.0
      %v4745 = vsel %vm4713, %v4617, 0.0
      %v4746 = vsel %vm4714, %v4618, 0.0
      %v4747 = vsel %vm4715, %v4619, 0.0
      %v4748 = vsel %vm4716, %v4620, 0.0
      %v4749 = vsel %vm4717, %v4621, 0.0
      %v4750 = vsel %vm4718, %v4622, 0.0
      %v4751 = vsel %vm4719, %v4623, 0.0
      %v4752 = vsel %vm4720, %v4624, 0.0
      %v4753 = vsel %vm4721, %v4625, 0.0
      %v4754 = vsel %vm4722, %v4626, 0.0
      %v4755 = vsel %vm4723, %v4627, 0.0
      %v4756 = vsel %vm4724, %v4628, 0.0
      %v4757 = vsel %vm4725, %v4629, 0.0
      %v4758 = vsel %vm4726, %v4630, 0.0
      %v4759 = vsel %vm4727, %v4631, 0.0
      %v4760 = vsel %vm4728, %v4632, 0.0
      %v4761 = vsel %vm4729, %v4633, 0.0
      %v4762 = vsel %vm4730, %v4634, 0.0
      %v4763 = vsel %vm4731, %v4635, 0.0
      %v4764 = vsel %vm4732, %v4636, 0.0
      %v4765 = vsel %vm4733, %v4637, 0.0
      %v4766 = vsel %vm4734, %v4638, 0.0
      %v4767 = vsel %vm4735, %v4639, 0.0
      %v4768 = vsel %vm4736, %v4640, 0.0
      %v4769 = vsel %vm4737, %v4641, 0.0
      %v4770 = vsel %vm4738, %v4642, 0.0
      %v4771 = vadd.f32 %v3458, %v4739
      %v4772 = vadd.f32 %v3459, %v4740
      %v4773 = vadd.f32 %v3460, %v4741
      %v4774 = vadd.f32 %v3461, %v4742
      %v4775 = vadd.f32 %v3462, %v4743
      %v4776 = vadd.f32 %v3463, %v4744
      %v4777 = vadd.f32 %v3464, %v4745
      %v4778 = vadd.f32 %v3465, %v4746
      %v4779 = vadd.f32 %v3466, %v4747
      %v4780 = vadd.f32 %v3467, %v4748
      %v4781 = vadd.f32 %v3468, %v4749
      %v4782 = vadd.f32 %v3469, %v4750
      %v4783 = vadd.f32 %v3470, %v4751
      %v4784 = vadd.f32 %v3471, %v4752
      %v4785 = vadd.f32 %v3472, %v4753
      %v4786 = vadd.f32 %v3473, %v4754
      %v4787 = vadd.f32 %v3474, %v4755
      %v4788 = vadd.f32 %v3475, %v4756
      %v4789 = vadd.f32 %v3476, %v4757
      %v4790 = vadd.f32 %v3477, %v4758
      %v4791 = vadd.f32 %v3478, %v4759
      %v4792 = vadd.f32 %v3479, %v4760
      %v4793 = vadd.f32 %v3480, %v4761
      %v4794 = vadd.f32 %v3481, %v4762
      %v4795 = vadd.f32 %v3482, %v4763
      %v4796 = vadd.f32 %v3483, %v4764
      %v4797 = vadd.f32 %v3484, %v4765
      %v4798 = vadd.f32 %v3485, %v4766
      %v4799 = vadd.f32 %v3486, %v4767
      %v4800 = vadd.f32 %v3487, %v4768
      %v4801 = vadd.f32 %v3488, %v4769
      %v4802 = vadd.f32 %v3489, %v4770
      %v4803 = vmax.f32 %v4771, 0.0
      %v4804 = vmax.f32 %v4772, 0.0
      %v4805 = vmax.f32 %v4773, 0.0
      %v4806 = vmax.f32 %v4774, 0.0
      %v4807 = vmax.f32 %v4775, 0.0
      %v4808 = vmax.f32 %v4776, 0.0
      %v4809 = vmax.f32 %v4777, 0.0
      %v4810 = vmax.f32 %v4778, 0.0
      %v4811 = vmax.f32 %v4779, 0.0
      %v4812 = vmax.f32 %v4780, 0.0
      %v4813 = vmax.f32 %v4781, 0.0
      %v4814 = vmax.f32 %v4782, 0.0
      %v4815 = vmax.f32 %v4783, 0.0
      %v4816 = vmax.f32 %v4784, 0.0
      %v4817 = vmax.f32 %v4785, 0.0
      %v4818 = vmax.f32 %v4786, 0.0
      %v4819 = vmax.f32 %v4787, 0.0
      %v4820 = vmax.f32 %v4788, 0.0
      %v4821 = vmax.f32 %v4789, 0.0
      %v4822 = vmax.f32 %v4790, 0.0
      %v4823 = vmax.f32 %v4791, 0.0
      %v4824 = vmax.f32 %v4792, 0.0
      %v4825 = vmax.f32 %v4793, 0.0
      %v4826 = vmax.f32 %v4794, 0.0
      %v4827 = vmax.f32 %v4795, 0.0
      %v4828 = vmax.f32 %v4796, 0.0
      %v4829 = vmax.f32 %v4797, 0.0
      %v4830 = vmax.f32 %v4798, 0.0
      %v4831 = vmax.f32 %v4799, 0.0
      %v4832 = vmax.f32 %v4800, 0.0
      %v4833 = vmax.f32 %v4801, 0.0
      %v4834 = vmax.f32 %v4802, 0.0
      %v4835 = vpack.c.bf16 %v4804, %v4803
      %v4836 = vpack.c.bf16 %v4806, %v4805
      %v4837 = vpack.c.bf16 %v4808, %v4807
      %v4838 = vpack.c.bf16 %v4810, %v4809
      %v4839 = vpack.c.bf16 %v4812, %v4811
      %v4840 = vpack.c.bf16 %v4814, %v4813
      %v4841 = vpack.c.bf16 %v4816, %v4815
      %v4842 = vpack.c.bf16 %v4818, %v4817
      %v4843 = vpack.c.bf16 %v4820, %v4819
      %v4844 = vpack.c.bf16 %v4822, %v4821
      %v4845 = vpack.c.bf16 %v4824, %v4823
      %v4846 = vpack.c.bf16 %v4826, %v4825
      %v4847 = vpack.c.bf16 %v4828, %v4827
      %v4848 = vpack.c.bf16 %v4830, %v4829
      %v4849 = vpack.c.bf16 %v4832, %v4831
      %v4850 = vpack.c.bf16 %v4834, %v4833
      %v4851 = vld [vmem:[%s7] sm:$0x3]
      %v4852 = vld [vmem:[%s8] sm:$0x1]
      %v4854 = vlaneseq
      %v4855 = vshrl.u32 %v4854, 7
      %v4856 = vsub.s32 0, %v4855
      %v4857 = vrot.slane %v4852, %v4856
      %v4860 = vsel %vm586, %v4835, 0
      %v4863 = vsel %vm586, %v4836, 0
      %v4866 = vsel %vm586, %v4837, 0
      %v4869 = vsel %vm586, %v4838, 0
      %v4872 = vsel %vm586, %v4839, 0
      %v4875 = vsel %vm586, %v4840, 0
      %v4878 = vsel %vm586, %v4841, 0
      %v4881 = vsel %vm586, %v4842, 0
      %v4884 = vsel %vm586, %v4843, 0
      %v4887 = vsel %vm586, %v4844, 0
      %v4890 = vsel %vm586, %v4845, 0
      %v4893 = vsel %vm586, %v4846, 0
      %v4896 = vsel %vm586, %v4847, 0
      %v4899 = vsel %vm586, %v4848, 0
      %v4902 = vsel %vm586, %v4849, 0
      %v4905 = vsel %vm586, %v4850, 0
      %v4908 = vsel %vm635, %v4851, 0
      %4910 = vmatprep.subr.bf16.mxu0 0
      %4911 = vmatpush1.bf16.msra.mxu0 0
      %4912 = vmatprep.subr.bf16.mxu0 0
      %4913 = vmatpush1.bf16.msra.mxu0 0
      %4914 = vmatprep.subr.bf16.mxu0 0
      %4915 = vmatpush1.bf16.msra.mxu0 0
      %4916 = vmatprep.subr.bf16.mxu0 0
      %4917 = vmatpush1.bf16.msra.mxu0 0
      %4918 = vmatprep.subr.bf16.mxu0 0
      %4919 = vmatpush1.bf16.msra.mxu0 0
      %4920 = vmatprep.subr.bf16.mxu0 0
      %4921 = vmatpush1.bf16.msra.mxu0 0
      %4922 = vmatprep.subr.bf16.mxu0 0
      %4923 = vmatpush1.bf16.msra.mxu0 0
      %4924 = vmatprep.subr.bf16.mxu0 0
      %4925 = vmatpush1.bf16.msra.mxu0 %v4908
      %4926 = vmatprep.subr.bf16.mxu0 0
      %4927 = vmatpush2.bf16.msra.mxu0 0
      %4928 = vmatprep.subr.bf16.mxu0 0
      %4929 = vmatpush2.bf16.msra.mxu0 0
      %4930 = vmatprep.subr.bf16.mxu0 0
      %4931 = vmatpush2.bf16.msra.mxu0 0
      %4932 = vmatprep.subr.bf16.mxu0 0
      %4933 = vmatpush2.bf16.msra.mxu0 0
      %4934 = vmatprep.subr.bf16.mxu0 0
      %4935 = vmatpush2.bf16.msra.mxu0 0
      %4936 = vmatprep.subr.bf16.mxu0 0
      %4937 = vmatpush2.bf16.msra.mxu0 0
      %4938 = vmatprep.subr.bf16.mxu0 0
      %4939 = vmatpush2.bf16.msra.mxu0 0
      %4940 = vmatprep.subr.bf16.mxu0 0
      %4941 = vmatpush2.bf16.msra.mxu0 0
      %4942 = vmatprep.mubr.bf16.mxu0 0
      %4943 = vmatmul.mubr.bf16.gmra.mxu0 %v4860
      %v4944 = vpop.f32.mrf.mxu0
      %v4945 = vadd.f32 %v4857, %v4944
      %v4946 = vpop.f32.mrf.mxu0
      %v4947 = vpop.f32.mrf.mxu0
      %v4948 = vadd.f32 %v4857, %v4947
      %v4949 = vpop.f32.mrf.mxu0
      %4950 = vmatprep.mubr.bf16.mxu0 0
      %4951 = vmatmul.mubr.bf16.gmra.mxu0 %v4863
      %v4952 = vpop.f32.mrf.mxu0
      %v4953 = vadd.f32 %v4857, %v4952
      %v4954 = vpop.f32.mrf.mxu0
      %v4955 = vpop.f32.mrf.mxu0
      %v4956 = vadd.f32 %v4857, %v4955
      %v4957 = vpop.f32.mrf.mxu0
      %4958 = vmatprep.mubr.bf16.mxu0 0
      %4959 = vmatmul.mubr.bf16.gmra.mxu0 %v4866
      %v4960 = vpop.f32.mrf.mxu0
      %v4961 = vadd.f32 %v4857, %v4960
      %v4962 = vpop.f32.mrf.mxu0
      %v4963 = vpop.f32.mrf.mxu0
      %v4964 = vadd.f32 %v4857, %v4963
      %v4965 = vpop.f32.mrf.mxu0
      %4966 = vmatprep.mubr.bf16.mxu0 0
      %4967 = vmatmul.mubr.bf16.gmra.mxu0 %v4869
      %v4968 = vpop.f32.mrf.mxu0
      %v4969 = vadd.f32 %v4857, %v4968
      %v4970 = vpop.f32.mrf.mxu0
      %v4971 = vpop.f32.mrf.mxu0
      %v4972 = vadd.f32 %v4857, %v4971
      %v4973 = vpop.f32.mrf.mxu0
      %4974 = vmatprep.mubr.bf16.mxu0 0
      %4975 = vmatmul.mubr.bf16.gmra.mxu0 %v4872
      %v4976 = vpop.f32.mrf.mxu0
      %v4977 = vadd.f32 %v4857, %v4976
      %v4978 = vpop.f32.mrf.mxu0
      %v4979 = vpop.f32.mrf.mxu0
      %v4980 = vadd.f32 %v4857, %v4979
      %v4981 = vpop.f32.mrf.mxu0
      %4982 = vmatprep.mubr.bf16.mxu0 0
      %4983 = vmatmul.mubr.bf16.gmra.mxu0 %v4875
      %v4984 = vpop.f32.mrf.mxu0
      %v4985 = vadd.f32 %v4857, %v4984
      %v4986 = vpop.f32.mrf.mxu0
      %v4987 = vpop.f32.mrf.mxu0
      %v4988 = vadd.f32 %v4857, %v4987
      %v4989 = vpop.f32.mrf.mxu0
      %4990 = vmatprep.mubr.bf16.mxu0 0
      %4991 = vmatmul.mubr.bf16.gmra.mxu0 %v4878
      %v4992 = vpop.f32.mrf.mxu0
      %v4993 = vadd.f32 %v4857, %v4992
      %v4994 = vpop.f32.mrf.mxu0
      %v4995 = vpop.f32.mrf.mxu0
      %v4996 = vadd.f32 %v4857, %v4995
      %v4997 = vpop.f32.mrf.mxu0
      %4998 = vmatprep.mubr.bf16.mxu0 0
      %4999 = vmatmul.mubr.bf16.gmra.mxu0 %v4881
      %v5000 = vpop.f32.mrf.mxu0
      %v5001 = vadd.f32 %v4857, %v5000
      %v5002 = vpop.f32.mrf.mxu0
      %v5003 = vpop.f32.mrf.mxu0
      %v5004 = vadd.f32 %v4857, %v5003
      %v5005 = vpop.f32.mrf.mxu0
      %5006 = vmatprep.mubr.bf16.mxu0 0
      %5007 = vmatmul.mubr.bf16.gmra.mxu0 %v4884
      %v5008 = vpop.f32.mrf.mxu0
      %v5009 = vadd.f32 %v4857, %v5008
      %v5010 = vpop.f32.mrf.mxu0
      %v5011 = vpop.f32.mrf.mxu0
      %v5012 = vadd.f32 %v4857, %v5011
      %v5013 = vpop.f32.mrf.mxu0
      %5014 = vmatprep.mubr.bf16.mxu0 0
      %5015 = vmatmul.mubr.bf16.gmra.mxu0 %v4887
      %v5016 = vpop.f32.mrf.mxu0
      %v5017 = vadd.f32 %v4857, %v5016
      %v5018 = vpop.f32.mrf.mxu0
      %v5019 = vpop.f32.mrf.mxu0
      %v5020 = vadd.f32 %v4857, %v5019
      %v5021 = vpop.f32.mrf.mxu0
      %5022 = vmatprep.mubr.bf16.mxu0 0
      %5023 = vmatmul.mubr.bf16.gmra.mxu0 %v4890
      %v5024 = vpop.f32.mrf.mxu0
      %v5025 = vadd.f32 %v4857, %v5024
      %v5026 = vpop.f32.mrf.mxu0
      %v5027 = vpop.f32.mrf.mxu0
      %v5028 = vadd.f32 %v4857, %v5027
      %v5029 = vpop.f32.mrf.mxu0
      %5030 = vmatprep.mubr.bf16.mxu0 0
      %5031 = vmatmul.mubr.bf16.gmra.mxu0 %v4893
      %v5032 = vpop.f32.mrf.mxu0
      %v5033 = vadd.f32 %v4857, %v5032
      %v5034 = vpop.f32.mrf.mxu0
      %v5035 = vpop.f32.mrf.mxu0
      %v5036 = vadd.f32 %v4857, %v5035
      %v5037 = vpop.f32.mrf.mxu0
      %5038 = vmatprep.mubr.bf16.mxu0 0
      %5039 = vmatmul.mubr.bf16.gmra.mxu0 %v4896
      %v5040 = vpop.f32.mrf.mxu0
      %v5041 = vadd.f32 %v4857, %v5040
      %v5042 = vpop.f32.mrf.mxu0
      %v5043 = vpop.f32.mrf.mxu0
      %v5044 = vadd.f32 %v4857, %v5043
      %v5045 = vpop.f32.mrf.mxu0
      %5046 = vmatprep.mubr.bf16.mxu0 0
      %5047 = vmatmul.mubr.bf16.gmra.mxu0 %v4899
      %v5048 = vpop.f32.mrf.mxu0
      %v5049 = vadd.f32 %v4857, %v5048
      %v5050 = vpop.f32.mrf.mxu0
      %v5051 = vpop.f32.mrf.mxu0
      %v5052 = vadd.f32 %v4857, %v5051
      %v5053 = vpop.f32.mrf.mxu0
      %5054 = vmatprep.mubr.bf16.mxu0 0
      %5055 = vmatmul.mubr.bf16.gmra.mxu0 %v4902
      %v5056 = vpop.f32.mrf.mxu0
      %v5057 = vadd.f32 %v4857, %v5056
      %v5058 = vpop.f32.mrf.mxu0
      %v5059 = vpop.f32.mrf.mxu0
      %v5060 = vadd.f32 %v4857, %v5059
      %v5061 = vpop.f32.mrf.mxu0
      %5062 = vmatprep.mubr.bf16.mxu0 0
      %5063 = vmatmul.mubr.bf16.gmra.mxu0 %v4905
      %v5064 = vpop.f32.mrf.mxu0
      %v5065 = vadd.f32 %v4857, %v5064
      %v5066 = vpop.f32.mrf.mxu0
      %v5067 = vpop.f32.mrf.mxu0
      %v5068 = vadd.f32 %v4857, %v5067
      %v5069 = vpop.f32.mrf.mxu0
      %5070 = vdwg.mxu0
      %v5071 = vld [vmem:[%s9] sm:$0x3]
      %v5104 = vunpack.c.l.b16 %v388
      %v5105 = vunpack.c.l.b16 %v389
      %v5106 = vunpack.c.l.b16 %v390
      %v5107 = vunpack.c.l.b16 %v391
      %v5108 = vunpack.c.l.b16 %v392
      %v5109 = vunpack.c.l.b16 %v393
      %v5110 = vunpack.c.l.b16 %v394
      %v5111 = vunpack.c.l.b16 %v395
      %v5112 = vunpack.c.l.b16 %v396
      %v5113 = vunpack.c.l.b16 %v397
      %v5114 = vunpack.c.l.b16 %v398
      %v5115 = vunpack.c.l.b16 %v399
      %v5116 = vunpack.c.l.b16 %v400
      %v5117 = vunpack.c.l.b16 %v401
      %v5118 = vunpack.c.l.b16 %v402
      %v5119 = vunpack.c.l.b16 %v403
      %v5120 = vunpack.c.l.b16 %v404
      %v5121 = vunpack.c.l.b16 %v405
      %v5122 = vunpack.c.l.b16 %v406
      %v5123 = vunpack.c.l.b16 %v407
      %v5124 = vunpack.c.l.b16 %v408
      %v5125 = vunpack.c.l.b16 %v409
      %v5126 = vunpack.c.l.b16 %v410
      %v5127 = vunpack.c.l.b16 %v411
      %v5128 = vunpack.c.l.b16 %v412
      %v5129 = vunpack.c.l.b16 %v413
      %v5130 = vunpack.c.l.b16 %v414
      %v5131 = vunpack.c.l.b16 %v415
      %v5132 = vunpack.c.l.b16 %v416
      %v5133 = vunpack.c.l.b16 %v417
      %v5134 = vunpack.c.l.b16 %v418
      %v5135 = vunpack.c.l.b16 %v419
      %v5136 = vpack.c.b16 %v5105, %v5104
      %v5137 = vpack.c.b16 %v5107, %v5106
      %v5138 = vpack.c.b16 %v5109, %v5108
      %v5139 = vpack.c.b16 %v5111, %v5110
      %v5140 = vpack.c.b16 %v5113, %v5112
      %v5141 = vpack.c.b16 %v5115, %v5114
      %v5142 = vpack.c.b16 %v5117, %v5116
      %v5143 = vpack.c.b16 %v5119, %v5118
      %v5144 = vpack.c.b16 %v5121, %v5120
      %v5145 = vpack.c.b16 %v5123, %v5122
      %v5146 = vpack.c.b16 %v5125, %v5124
      %v5147 = vpack.c.b16 %v5127, %v5126
      %v5148 = vpack.c.b16 %v5129, %v5128
      %v5149 = vpack.c.b16 %v5131, %v5130
      %v5150 = vpack.c.b16 %v5133, %v5132
      %v5151 = vpack.c.b16 %v5135, %v5134
      %v5153 = vsel %vm586, %v5136, 0
      %v5156 = vsel %vm586, %v5137, 0
      %v5159 = vsel %vm586, %v5138, 0
      %v5162 = vsel %vm586, %v5139, 0
      %v5165 = vsel %vm586, %v5140, 0
      %v5168 = vsel %vm586, %v5141, 0
      %v5171 = vsel %vm586, %v5142, 0
      %v5174 = vsel %vm586, %v5143, 0
      %v5177 = vsel %vm586, %v5144, 0
      %v5180 = vsel %vm586, %v5145, 0
      %v5183 = vsel %vm586, %v5146, 0
      %v5186 = vsel %vm586, %v5147, 0
      %v5189 = vsel %vm586, %v5148, 0
      %v5192 = vsel %vm586, %v5149, 0
      %v5195 = vsel %vm586, %v5150, 0
      %v5198 = vsel %vm586, %v5151, 0
      %v5201 = vsel %vm635, %v5071, 0
      %5203 = vmatprep.subr.bf16.mxu0 0
      %5204 = vmatpush1.bf16.msra.mxu0 0
      %5205 = vmatprep.subr.bf16.mxu0 0
      %5206 = vmatpush1.bf16.msra.mxu0 0
      %5207 = vmatprep.subr.bf16.mxu0 0
      %5208 = vmatpush1.bf16.msra.mxu0 0
      %5209 = vmatprep.subr.bf16.mxu0 0
      %5210 = vmatpush1.bf16.msra.mxu0 0
      %5211 = vmatprep.subr.bf16.mxu0 0
      %5212 = vmatpush1.bf16.msra.mxu0 0
      %5213 = vmatprep.subr.bf16.mxu0 0
      %5214 = vmatpush1.bf16.msra.mxu0 0
      %5215 = vmatprep.subr.bf16.mxu0 0
      %5216 = vmatpush1.bf16.msra.mxu0 0
      %5217 = vmatprep.subr.bf16.mxu0 0
      %5218 = vmatpush1.bf16.msra.mxu0 %v5201
      %5219 = vmatprep.subr.bf16.mxu0 0
      %5220 = vmatpush2.bf16.msra.mxu0 0
      %5221 = vmatprep.subr.bf16.mxu0 0
      %5222 = vmatpush2.bf16.msra.mxu0 0
      %5223 = vmatprep.subr.bf16.mxu0 0
      %5224 = vmatpush2.bf16.msra.mxu0 0
      %5225 = vmatprep.subr.bf16.mxu0 0
      %5226 = vmatpush2.bf16.msra.mxu0 0
      %5227 = vmatprep.subr.bf16.mxu0 0
      %5228 = vmatpush2.bf16.msra.mxu0 0
      %5229 = vmatprep.subr.bf16.mxu0 0
      %5230 = vmatpush2.bf16.msra.mxu0 0
      %5231 = vmatprep.subr.bf16.mxu0 0
      %5232 = vmatpush2.bf16.msra.mxu0 0
      %5233 = vmatprep.subr.bf16.mxu0 0
      %5234 = vmatpush2.bf16.msra.mxu0 0
      %5235 = vmatprep.mubr.bf16.mxu0 0
      %5236 = vmatmul.mubr.bf16.gmra.mxu0 %v5153
      %v5237 = vpop.f32.mrf.mxu0
      %v5238 = vadd.f32 0.0, %v5237
      %v5239 = vpop.f32.mrf.mxu0
      %v5240 = vpop.f32.mrf.mxu0
      %v5241 = vadd.f32 0.0, %v5240
      %v5242 = vpop.f32.mrf.mxu0
      %5243 = vmatprep.mubr.bf16.mxu0 0
      %5244 = vmatmul.mubr.bf16.gmra.mxu0 %v5156
      %v5245 = vpop.f32.mrf.mxu0
      %v5246 = vadd.f32 0.0, %v5245
      %v5247 = vpop.f32.mrf.mxu0
      %v5248 = vpop.f32.mrf.mxu0
      %v5249 = vadd.f32 0.0, %v5248
      %v5250 = vpop.f32.mrf.mxu0
      %5251 = vmatprep.mubr.bf16.mxu0 0
      %5252 = vmatmul.mubr.bf16.gmra.mxu0 %v5159
      %v5253 = vpop.f32.mrf.mxu0
      %v5254 = vadd.f32 0.0, %v5253
      %v5255 = vpop.f32.mrf.mxu0
      %v5256 = vpop.f32.mrf.mxu0
      %v5257 = vadd.f32 0.0, %v5256
      %v5258 = vpop.f32.mrf.mxu0
      %5259 = vmatprep.mubr.bf16.mxu0 0
      %5260 = vmatmul.mubr.bf16.gmra.mxu0 %v5162
      %v5261 = vpop.f32.mrf.mxu0
      %v5262 = vadd.f32 0.0, %v5261
      %v5263 = vpop.f32.mrf.mxu0
      %v5264 = vpop.f32.mrf.mxu0
      %v5265 = vadd.f32 0.0, %v5264
      %v5266 = vpop.f32.mrf.mxu0
      %5267 = vmatprep.mubr.bf16.mxu0 0
      %5268 = vmatmul.mubr.bf16.gmra.mxu0 %v5165
      %v5269 = vpop.f32.mrf.mxu0
      %v5270 = vadd.f32 0.0, %v5269
      %v5271 = vpop.f32.mrf.mxu0
      %v5272 = vpop.f32.mrf.mxu0
      %v5273 = vadd.f32 0.0, %v5272
      %v5274 = vpop.f32.mrf.mxu0
      %5275 = vmatprep.mubr.bf16.mxu0 0
      %5276 = vmatmul.mubr.bf16.gmra.mxu0 %v5168
      %v5277 = vpop.f32.mrf.mxu0
      %v5278 = vadd.f32 0.0, %v5277
      %v5279 = vpop.f32.mrf.mxu0
      %v5280 = vpop.f32.mrf.mxu0
      %v5281 = vadd.f32 0.0, %v5280
      %v5282 = vpop.f32.mrf.mxu0
      %5283 = vmatprep.mubr.bf16.mxu0 0
      %5284 = vmatmul.mubr.bf16.gmra.mxu0 %v5171
      %v5285 = vpop.f32.mrf.mxu0
      %v5286 = vadd.f32 0.0, %v5285
      %v5287 = vpop.f32.mrf.mxu0
      %v5288 = vpop.f32.mrf.mxu0
      %v5289 = vadd.f32 0.0, %v5288
      %v5290 = vpop.f32.mrf.mxu0
      %5291 = vmatprep.mubr.bf16.mxu0 0
      %5292 = vmatmul.mubr.bf16.gmra.mxu0 %v5174
      %v5293 = vpop.f32.mrf.mxu0
      %v5294 = vadd.f32 0.0, %v5293
      %v5295 = vpop.f32.mrf.mxu0
      %v5296 = vpop.f32.mrf.mxu0
      %v5297 = vadd.f32 0.0, %v5296
      %v5298 = vpop.f32.mrf.mxu0
      %5299 = vmatprep.mubr.bf16.mxu0 0
      %5300 = vmatmul.mubr.bf16.gmra.mxu0 %v5177
      %v5301 = vpop.f32.mrf.mxu0
      %v5302 = vadd.f32 0.0, %v5301
      %v5303 = vpop.f32.mrf.mxu0
      %v5304 = vpop.f32.mrf.mxu0
      %v5305 = vadd.f32 0.0, %v5304
      %v5306 = vpop.f32.mrf.mxu0
      %5307 = vmatprep.mubr.bf16.mxu0 0
      %5308 = vmatmul.mubr.bf16.gmra.mxu0 %v5180
      %v5309 = vpop.f32.mrf.mxu0
      %v5310 = vadd.f32 0.0, %v5309
      %v5311 = vpop.f32.mrf.mxu0
      %v5312 = vpop.f32.mrf.mxu0
      %v5313 = vadd.f32 0.0, %v5312
      %v5314 = vpop.f32.mrf.mxu0
      %5315 = vmatprep.mubr.bf16.mxu0 0
      %5316 = vmatmul.mubr.bf16.gmra.mxu0 %v5183
      %v5317 = vpop.f32.mrf.mxu0
      %v5318 = vadd.f32 0.0, %v5317
      %v5319 = vpop.f32.mrf.mxu0
      %v5320 = vpop.f32.mrf.mxu0
      %v5321 = vadd.f32 0.0, %v5320
      %v5322 = vpop.f32.mrf.mxu0
      %5323 = vmatprep.mubr.bf16.mxu0 0
      %5324 = vmatmul.mubr.bf16.gmra.mxu0 %v5186
      %v5325 = vpop.f32.mrf.mxu0
      %v5326 = vadd.f32 0.0, %v5325
      %v5327 = vpop.f32.mrf.mxu0
      %v5328 = vpop.f32.mrf.mxu0
      %v5329 = vadd.f32 0.0, %v5328
      %v5330 = vpop.f32.mrf.mxu0
      %5331 = vmatprep.mubr.bf16.mxu0 0
      %5332 = vmatmul.mubr.bf16.gmra.mxu0 %v5189
      %v5333 = vpop.f32.mrf.mxu0
      %v5334 = vadd.f32 0.0, %v5333
      %v5335 = vpop.f32.mrf.mxu0
      %v5336 = vpop.f32.mrf.mxu0
      %v5337 = vadd.f32 0.0, %v5336
      %v5338 = vpop.f32.mrf.mxu0
      %5339 = vmatprep.mubr.bf16.mxu0 0
      %5340 = vmatmul.mubr.bf16.gmra.mxu0 %v5192
      %v5341 = vpop.f32.mrf.mxu0
      %v5342 = vadd.f32 0.0, %v5341
      %v5343 = vpop.f32.mrf.mxu0
      %v5344 = vpop.f32.mrf.mxu0
      %v5345 = vadd.f32 0.0, %v5344
      %v5346 = vpop.f32.mrf.mxu0
      %5347 = vmatprep.mubr.bf16.mxu0 0
      %5348 = vmatmul.mubr.bf16.gmra.mxu0 %v5195
      %v5349 = vpop.f32.mrf.mxu0
      %v5350 = vadd.f32 0.0, %v5349
      %v5351 = vpop.f32.mrf.mxu0
      %v5352 = vpop.f32.mrf.mxu0
      %v5353 = vadd.f32 0.0, %v5352
      %v5354 = vpop.f32.mrf.mxu0
      %5355 = vmatprep.mubr.bf16.mxu0 0
      %5356 = vmatmul.mubr.bf16.gmra.mxu0 %v5198
      %v5357 = vpop.f32.mrf.mxu0
      %v5358 = vadd.f32 0.0, %v5357
      %v5359 = vpop.f32.mrf.mxu0
      %v5360 = vpop.f32.mrf.mxu0
      %v5361 = vadd.f32 0.0, %v5360
      %v5362 = vpop.f32.mrf.mxu0
      %5363 = vdwg.mxu0
      %v5364 = vadd.f32 %v4945, %v5238
      %v5365 = vadd.f32 %v4948, %v5241
      %v5366 = vadd.f32 %v4953, %v5246
      %v5367 = vadd.f32 %v4956, %v5249
      %v5368 = vadd.f32 %v4961, %v5254
      %v5369 = vadd.f32 %v4964, %v5257
      %v5370 = vadd.f32 %v4969, %v5262
      %v5371 = vadd.f32 %v4972, %v5265
      %v5372 = vadd.f32 %v4977, %v5270
      %v5373 = vadd.f32 %v4980, %v5273
      %v5374 = vadd.f32 %v4985, %v5278
      %v5375 = vadd.f32 %v4988, %v5281
      %v5376 = vadd.f32 %v4993, %v5286
      %v5377 = vadd.f32 %v4996, %v5289
      %v5378 = vadd.f32 %v5001, %v5294
      %v5379 = vadd.f32 %v5004, %v5297
      %v5380 = vadd.f32 %v5009, %v5302
      %v5381 = vadd.f32 %v5012, %v5305
      %v5382 = vadd.f32 %v5017, %v5310
      %v5383 = vadd.f32 %v5020, %v5313
      %v5384 = vadd.f32 %v5025, %v5318
      %v5385 = vadd.f32 %v5028, %v5321
      %v5386 = vadd.f32 %v5033, %v5326
      %v5387 = vadd.f32 %v5036, %v5329
      %v5388 = vadd.f32 %v5041, %v5334
      %v5389 = vadd.f32 %v5044, %v5337
      %v5390 = vadd.f32 %v5049, %v5342
      %v5391 = vadd.f32 %v5052, %v5345
      %v5392 = vadd.f32 %v5057, %v5350
      %v5393 = vadd.f32 %v5060, %v5353
      %v5394 = vadd.f32 %v5065, %v5358
      %v5395 = vadd.f32 %v5068, %v5361
      %v5396 = vld [vmem:[%s10] sm:$0x1]
      %v5398 = vlaneseq
      %v5399 = vshrl.u32 %v5398, 7
      %v5400 = vsub.s32 0, %v5399
      %v5401 = vrot.slane %v5396, %v5400
      %v5403 = vadd.f32 %v5364, %v5401
      %v5404 = vadd.f32 %v5365, %v5401
      %v5405 = vadd.f32 %v5366, %v5401
      %v5406 = vadd.f32 %v5367, %v5401
      %v5407 = vadd.f32 %v5368, %v5401
      %v5408 = vadd.f32 %v5369, %v5401
      %v5409 = vadd.f32 %v5370, %v5401
      %v5410 = vadd.f32 %v5371, %v5401
      %v5411 = vadd.f32 %v5372, %v5401
      %v5412 = vadd.f32 %v5373, %v5401
      %v5413 = vadd.f32 %v5374, %v5401
      %v5414 = vadd.f32 %v5375, %v5401
      %v5415 = vadd.f32 %v5376, %v5401
      %v5416 = vadd.f32 %v5377, %v5401
      %v5417 = vadd.f32 %v5378, %v5401
      %v5418 = vadd.f32 %v5379, %v5401
      %v5419 = vadd.f32 %v5380, %v5401
      %v5420 = vadd.f32 %v5381, %v5401
      %v5421 = vadd.f32 %v5382, %v5401
      %v5422 = vadd.f32 %v5383, %v5401
      %v5423 = vadd.f32 %v5384, %v5401
      %v5424 = vadd.f32 %v5385, %v5401
      %v5425 = vadd.f32 %v5386, %v5401
      %v5426 = vadd.f32 %v5387, %v5401
      %v5427 = vadd.f32 %v5388, %v5401
      %v5428 = vadd.f32 %v5389, %v5401
      %v5429 = vadd.f32 %v5390, %v5401
      %v5430 = vadd.f32 %v5391, %v5401
      %v5431 = vadd.f32 %v5392, %v5401
      %v5432 = vadd.f32 %v5393, %v5401
      %v5433 = vadd.f32 %v5394, %v5401
      %v5434 = vadd.f32 %v5395, %v5401
      %vm5435 = vcmask 64512
      %5436 = vst.msk [vmem:[%s386] sm:$0xff] %vm5435, %v5403
      %5437 = vst.msk [vmem:[%s386 + $0x8] sm:$0xff] %vm5435, %v5404
      %5438 = vst.msk [vmem:[%s386 + $0x10] sm:$0xff] %vm5435, %v5405
      %5439 = vst.msk [vmem:[%s386 + $0x18] sm:$0xff] %vm5435, %v5406
      %5440 = vst.msk [vmem:[%s386 + $0x20] sm:$0xff] %vm5435, %v5407
      %5441 = vst.msk [vmem:[%s386 + $0x28] sm:$0xff] %vm5435, %v5408
      %5442 = vst.msk [vmem:[%s386 + $0x30] sm:$0xff] %vm5435, %v5409
      %5443 = vst.msk [vmem:[%s386 + $0x38] sm:$0xff] %vm5435, %v5410
      %5444 = vst.msk [vmem:[%s386 + $0x40] sm:$0xff] %vm5435, %v5411
      %5445 = vst.msk [vmem:[%s386 + $0x48] sm:$0xff] %vm5435, %v5412
      %5446 = vst.msk [vmem:[%s386 + $0x50] sm:$0xff] %vm5435, %v5413
      %5447 = vst.msk [vmem:[%s386 + $0x58] sm:$0xff] %vm5435, %v5414
      %5448 = vst.msk [vmem:[%s386 + $0x60] sm:$0xff] %vm5435, %v5415
      %5449 = vst.msk [vmem:[%s386 + $0x68] sm:$0xff] %vm5435, %v5416
      %5450 = vst.msk [vmem:[%s386 + $0x70] sm:$0xff] %vm5435, %v5417
      %5451 = vst.msk [vmem:[%s386 + $0x78] sm:$0xff] %vm5435, %v5418
      %5452 = vst.msk [vmem:[%s386 + $0x80] sm:$0xff] %vm5435, %v5419
      %5453 = vst.msk [vmem:[%s386 + $0x88] sm:$0xff] %vm5435, %v5420
      %5454 = vst.msk [vmem:[%s386 + $0x90] sm:$0xff] %vm5435, %v5421
      %5455 = vst.msk [vmem:[%s386 + $0x98] sm:$0xff] %vm5435, %v5422
      %5456 = vst.msk [vmem:[%s386 + $0xa0] sm:$0xff] %vm5435, %v5423
      %5457 = vst.msk [vmem:[%s386 + $0xa8] sm:$0xff] %vm5435, %v5424
      %5458 = vst.msk [vmem:[%s386 + $0xb0] sm:$0xff] %vm5435, %v5425
      %5459 = vst.msk [vmem:[%s386 + $0xb8] sm:$0xff] %vm5435, %v5426
      %5460 = vst.msk [vmem:[%s386 + $0xc0] sm:$0xff] %vm5435, %v5427
      %5461 = vst.msk [vmem:[%s386 + $0xc8] sm:$0xff] %vm5435, %v5428
      %5462 = vst.msk [vmem:[%s386 + $0xd0] sm:$0xff] %vm5435, %v5429
      %5463 = vst.msk [vmem:[%s386 + $0xd8] sm:$0xff] %vm5435, %v5430
      %5464 = vst.msk [vmem:[%s386 + $0xe0] sm:$0xff] %vm5435, %v5431
      %5465 = vst.msk [vmem:[%s386 + $0xe8] sm:$0xff] %vm5435, %v5432
      %5466 = vst.msk [vmem:[%s386 + $0xf0] sm:$0xff] %vm5435, %v5433
      %5467 = vst.msk [vmem:[%s386 + $0xf8] sm:$0xff] %vm5435, %v5434
      %p5468 = scmp.lt.s32.totalorder %s22, 1
      %s5469 = scalar_select %p5468, %s22, 1
      %s5470 = smul.addr %s5469, 32
      %s5471 = smul.addr %s5470, 8
      %s5472 = scalar_lea.vmem %s11, %s5471
      // Predicated region
      $region65: #{tpu_custom_call.1} parent=63 // pred_check
        %p5473 = pneg %p276
      $region66: #{tpu_custom_call.1} parent=63 // pred_check_branch
        %5475 = sbr.rel (%p5473) target = $region68
      $region67: #{tpu_custom_call.1} parent=63 // pred_region
        _
      $region68: #{tpu_custom_call.1} parent=63 // pred_fallthru
        _
    $region64: #{tpu_custom_call.1} parent=5 // pred_fallthru
      _
    %p5476 = scmp.le.s32.totalorder 2, %s17
    // Predicated region
    $region69: #{tpu_custom_call.1} parent=5 // pred_check
      %p5477 = pneg %p5476
    $region70: #{tpu_custom_call.1} parent=5 // pred_check_branch
      %5479 = sbr.rel (%p5477) target = $region72
    $region71: #{tpu_custom_call.1} parent=5 // pred_region
      %s5480 = ssub.s32 %s17, 2
      // Predicated region
      $region73: #{tpu_custom_call.1} parent=71 // pred_check
        %p5481 = pneg %p282
      $region74: #{tpu_custom_call.1} parent=71 // pred_check_branch
        %5483 = sbr.rel (%p5481) target = $region76
      $region75: #{tpu_custom_call.1} parent=71 // pred_region
        %p5484 = scmp.lt.s32.totalorder %s23, 1
        %s5485 = scalar_select %p5484, %s23, 1
        %s5486 = smul.addr %s5485, 32
        %s5487 = smul.addr %s5486, 8
        %s5488 = scalar_lea.vmem %s11, %s5487
      $region76: #{tpu_custom_call.1} parent=71 // pred_fallthru
        _
    $region72: #{tpu_custom_call.1} parent=5 // pred_fallthru
      _
  $region6: #{tpu_custom_call.1} parent=0 // loop_footer
    %s21 = sadd.s32 1, %s17
  $region7: #{tpu_custom_call.1} parent=0 // loop_footer_branch
    %16 = sbr.rel target = $region3
  $region8: #{tpu_custom_call.1} parent=0 // loop_exit
    _

</llo_original>
